<compile_context>
chip_gen: v6e
topology: v6e:2x2x1
jax: 0.10.0
libtpu: 0.0.40
codegen_flags: <defaults>
</compile_context>

<pallas_src>
import functools

import jax
import jax.numpy as jnp
from jax.experimental import pallas as pl
from jax.experimental.pallas import tpu as pltpu


def _round_up(x, m):
    return ((x + m - 1) // m) * m


# ----------------------------------------------------------------------------
# Fused tiled matmul kernel: out = maybe_relu((x @ w) * scale + bias)
# ----------------------------------------------------------------------------
def _fused_matmul_kernel(x_ref, w_ref, s_ref, b_ref, o_ref, acc_ref, *, relu):
    k = pl.program_id(2)

    @pl.when(k == 0)
    def _():
        acc_ref[...] = jnp.zeros_like(acc_ref)

    acc_ref[...] += jnp.dot(x_ref[...], w_ref[...], preferred_element_type=jnp.float32)

    @pl.when(k == pl.num_programs(2) - 1)
    def _():
        out = acc_ref[...] * s_ref[...] + b_ref[...]
        if relu:
            out = jnp.maximum(out, 0.0)
        o_ref[...] = out.astype(o_ref.dtype)


def fused_matmul(x, w, scale, bias, relu=False, out_dtype=jnp.bfloat16):
    """x: (M, K), w: (K, N), scale/bias: (N,). Returns (M, N) in out_dtype."""
    M, K = x.shape
    Kw, N = w.shape
    assert K == Kw

    # Lane-/MXU-friendly padding and tile selection.
    K_pad = _round_up(K, 128)
    if K_pad <= 1024:
        tk = K_pad                      # single K step for these channel widths
    else:
        tk = 512
        K_pad = _round_up(K, tk)
    N_pad = _round_up(N, 128)
    tn = 256 if (N_pad % 256 == 0) else 128
    tm = min(256, _round_up(M, 8))
    M_pad = _round_up(M, tm)

    xb = jnp.pad(x.astype(jnp.bfloat16), ((0, M_pad - M), (0, K_pad - K)))
    wb = jnp.pad(w.astype(jnp.bfloat16), ((0, K_pad - K), (0, N_pad - N)))
    s2 = jnp.pad(scale.reshape(1, N).astype(jnp.float32), ((0, 0), (0, N_pad - N)))
    b2 = jnp.pad(bias.reshape(1, N).astype(jnp.float32), ((0, 0), (0, N_pad - N)))

    grid = (M_pad // tm, N_pad // tn, K_pad // tk)

    flops = 2 * M_pad * K_pad * N_pad
    bytes_accessed = (
        M_pad * K_pad * 2 + K_pad * N_pad * 2
        + M_pad * N_pad * jnp.dtype(out_dtype).itemsize
        + 2 * N_pad * 4
    )

    out = pl.pallas_call(
        functools.partial(_fused_matmul_kernel, relu=relu),
        out_shape=jax.ShapeDtypeStruct((M_pad, N_pad), out_dtype),
        grid=grid,
        in_specs=[
            pl.BlockSpec((tm, tk), lambda i, j, k: (i, k)),
            pl.BlockSpec((tk, tn), lambda i, j, k: (k, j)),
            pl.BlockSpec((1, tn), lambda i, j, k: (0, j)),
            pl.BlockSpec((1, tn), lambda i, j, k: (0, j)),
        ],
        out_specs=pl.BlockSpec((tm, tn), lambda i, j, k: (i, j)),
        scratch_shapes=[pltpu.VMEM((tm, tn), jnp.float32)],
        compiler_params=pltpu.CompilerParams(
            dimension_semantics=("parallel", "parallel", "arbitrary")
        ),
        cost_estimate=pl.CostEstimate(
            flops=flops, transcendentals=0, bytes_accessed=bytes_accessed
        ),
    )(xb, wb, s2, b2)
    return out[:M, :N]


# ----------------------------------------------------------------------------
# Head kernel: GAP (tiled reduction over HW) -> Linear -> folded BN1d -> softmax/T
# ----------------------------------------------------------------------------
def _head_kernel(x_ref, w_ref, s_ref, b_ref, o_ref, acc_ref, *, inv_t, inv_hw):
    step = pl.program_id(0)

    @pl.when(step == 0)
    def _():
        acc_ref[...] = jnp.zeros_like(acc_ref)

    acc_ref[...] += jnp.sum(x_ref[...].astype(jnp.float32), axis=1)

    @pl.when(step == pl.num_programs(0) - 1)
    def _():
        feat = acc_ref[...] * inv_hw                                  # GAP (B, C)
        logits = jnp.dot(feat, w_ref[...], preferred_element_type=jnp.float32)
        y = (logits * s_ref[...] + b_ref[...]) * inv_t                # Linear+BN1d folded, /T
        y = y - jnp.max(y, axis=1, keepdims=True)                     # stable softmax
        e = jnp.exp(y)
        o_ref[...] = e / jnp.sum(e, axis=1, keepdims=True)


def head(x_flat, fc_w, fc_scale, fc_bias, temperature):
    """x_flat: (B, HW, C);  fc_w: (C, num_classes)."""
    B, HW, C = x_flat.shape
    nc = fc_w.shape[1]
    hw_tile = min(512, _round_up(HW, 8))
    HW_pad = _round_up(HW, hw_tile)
    xp = jnp.pad(x_flat, ((0, 0), (0, HW_pad - HW), (0, 0)))          # zeros don't affect the sum

    kernel = functools.partial(
        _head_kernel, inv_t=float(1.0 / temperature), inv_hw=float(1.0 / HW)
    )
    return pl.pallas_call(
        kernel,
        out_shape=jax.ShapeDtypeStruct((B, nc), jnp.float32),
        grid=(HW_pad // hw_tile,),
        in_specs=[
            pl.BlockSpec((B, hw_tile, C), lambda s: (0, s, 0)),
            pl.BlockSpec((C, nc), lambda s: (0, 0)),
            pl.BlockSpec((1, nc), lambda s: (0, 0)),
            pl.BlockSpec((1, nc), lambda s: (0, 0)),
        ],
        out_specs=pl.BlockSpec((B, nc), lambda s: (0, 0)),
        scratch_shapes=[pltpu.VMEM((B, C), jnp.float32)],
        compiler_params=pltpu.CompilerParams(dimension_semantics=("arbitrary",)),
    )(
        xp,
        fc_w.astype(jnp.float32),
        fc_scale.reshape(1, nc).astype(jnp.float32),
        fc_bias.reshape(1, nc).astype(jnp.float32),
    )


# ----------------------------------------------------------------------------
# Plain-JAX glue: im2col (3x3 / 7x7 only), BN folding, network assembly
# ----------------------------------------------------------------------------
def im2col(x, kh, kw, stride, pad):
    """x: NHWC.  Returns ((N*Ho*Wo, kh*kw*C), (N, Ho, Wo)); patch order (i, j, c)."""
    N, H, W, C = x.shape
    xp = jnp.pad(x, ((0, 0), (pad, pad), (pad, pad), (0, 0)))
    Ho = (H + 2 * pad - kh) // stride + 1
    Wo = (W + 2 * pad - kw) // stride + 1
    patches = []
    for i in range(kh):
        for j in range(kw):
            patches.append(xp[:, i : i + stride * Ho : stride, j : j + stride * Wo : stride, :])
    cols = jnp.concatenate(patches, axis=-1)  # (N, Ho, Wo, kh*kw*C)
    return cols.reshape(N * Ho * Wo, kh * kw * C), (N, Ho, Wo)


def conv_bn(x, w_hwio, kh, kw, stride, pad, scale, bias, relu=False):
    """Conv + folded BN/bias (+relu) using the fused tiled Pallas matmul."""
    cout = w_hwio.shape[-1]
    if kh == 1 and kw == 1 and stride == 1 and pad == 0:
        # 1x1 conv: no im2col, direct matmul on the NHWC layout.
        N, H, W, C = x.shape
        out = fused_matmul(x.reshape(N * H * W, C), w_hwio.reshape(C, cout),
                           scale, bias, relu=relu)
        return out.reshape(N, H, W, cout)
    cols, (N, Ho, Wo) = im2col(x, kh, kw, stride, pad)
    w2 = w_hwio.reshape(kh * kw * w_hwio.shape[2], cout)
    out = fused_matmul(cols, w2, scale, bias, relu=relu)
    return out.reshape(N, Ho, Wo, cout)


def bn_fold(gamma, beta, mean, var, conv_bias=None, eps=1e-5):
    scale = gamma / jnp.sqrt(var + eps)
    bias = beta - mean * scale
    if conv_bias is not None:
        bias = bias + conv_bias * scale
    return scale, bias


def bottleneck(x, p):
    """Bottleneck(inplanes, planes, downsample=Conv1x1 with bias)."""
    s1, b1 = bn_fold(p["bn1_g"], p["bn1_b"], p["bn1_m"], p["bn1_v"])
    h = conv_bn(x, p["c1_w"], 1, 1, 1, 0, s1, b1, relu=True)

    s2, b2 = bn_fold(p["bn2_g"], p["bn2_b"], p["bn2_m"], p["bn2_v"])
    h = conv_bn(h, p["c2_w"], 3, 3, 1, 1, s2, b2, relu=True)

    # Fused conv3 (1x1, no bias) + downsample Conv1x1 (bias) + residual add + relu:
    #   out = relu( [h | x] @ [W3 ; Wds] + ds_b )   -- residual never hits HBM.
    N, H, W, cin = x.shape
    planes = p["c2_w"].shape[-1]
    cout = p["c3_w"].shape[-1]
    hx = jnp.concatenate(
        [h.reshape(N * H * W, planes), x.reshape(N * H * W, cin)], axis=-1
    )
    w_cat = jnp.concatenate(
        [p["c3_w"].reshape(planes, cout), p["ds_w"].reshape(cin, cout)], axis=0
    )
    out = fused_matmul(hx, w_cat, jnp.ones((cout,), jnp.float32), p["ds_b"], relu=True)
    return out.reshape(N, H, W, cout)


def resnet_forward(x_nchw, params, temperature=1.0):
    x = jnp.transpose(x_nchw, (0, 2, 3, 1))  # NCHW -> NHWC

    # stem: Conv7x7 s2 p3 (bias) + BN + ReLU
    s, b = bn_fold(
        params["bn1_g"], params["bn1_b"], params["bn1_m"], params["bn1_v"],
        conv_bias=params["conv1_b"],
    )
    x = conv_bn(x, params["conv1_w"], 7, 7, 2, 3, s, b, relu=True)

    x = bottleneck(x, params["block1"])   # 64 -> 128 channels
    x = bottleneck(x, params["block2"])   # 128 -> 256 channels

    # GAP + FC + BN1d + softmax/T (single fused kernel, HW-tiled reduction)
    N, H, W, C = x.shape
    x_flat = x.reshape(N, H * W, C)
    fc_scale, fc_bias = bn_fold(
        params["fcbn_g"], params["fcbn_b"], params["fcbn_m"], params["fcbn_v"],
        conv_bias=params["fc_b"],
    )
    return head(x_flat, params["fc_w"], fc_scale, fc_bias, temperature)


# ----------------------------------------------------------------------------
# Deterministic parameter construction (HWIO conv weights)
# ----------------------------------------------------------------------------
def init_params(key, in_channel=3, num_classes=10):
    keys = list(jax.random.split(key, 40))
    kit = iter(keys)

    def conv_w(kh, kw, cin, cout):
        fan_in = kh * kw * cin
        return jax.random.normal(next(kit), (kh, kw, cin, cout), jnp.float32) / jnp.sqrt(fan_in)

    def bn(c):
        return dict(
            g=jnp.ones((c,), jnp.float32),
            b=jnp.zeros((c,), jnp.float32),
            m=0.1 * jax.random.normal(next(kit), (c,), jnp.float32),
            v=jnp.ones((c,), jnp.float32) + 0.05 * jax.random.uniform(next(kit), (c,), jnp.float32),
        )

    def block(inplanes, planes):
        bn1, bn2 = bn(planes), bn(planes)
        return dict(
            c1_w=conv_w(1, 1, inplanes, planes),
            bn1_g=bn1["g"], bn1_b=bn1["b"], bn1_m=bn1["m"], bn1_v=bn1["v"],
            c2_w=conv_w(3, 3, planes, planes),
            bn2_g=bn2["g"], bn2_b=bn2["b"], bn2_m=bn2["m"], bn2_v=bn2["v"],
            c3_w=conv_w(1, 1, planes, planes * 4),
            ds_w=conv_w(1, 1, inplanes, planes * 4),
            ds_b=0.05 * jax.random.normal(next(kit), (planes * 4,), jnp.float32),
        )

    bn1 = bn(64)
    bnfc = bn(num_classes)
    return dict(
        conv1_w=conv_w(7, 7, in_channel, 64),
        conv1_b=0.05 * jax.random.normal(next(kit), (64,), jnp.float32),
        bn1_g=bn1["g"], bn1_b=bn1["b"], bn1_m=bn1["m"], bn1_v=bn1["v"],
        block1=block(64, 32),
        block2=block(128, 64),
        fc_w=jax.random.normal(next(kit), (256, num_classes), jnp.float32) / jnp.sqrt(256.0),
        fc_b=0.05 * jax.random.normal(next(kit), (num_classes,), jnp.float32),
        fcbn_g=bnfc["g"], fcbn_b=bnfc["b"], fcbn_m=bnfc["m"], fcbn_v=bnfc["v"],
    )


# ----------------------------------------------------------------------------
if __name__ == "__main__":
    key = jax.random.PRNGKey(0)
    pkey, xkey = jax.random.split(key)

    params = init_params(pkey, in_channel=3, num_classes=10)
    # PyTorch-convention input: NCHW, small test shape
    x = jax.random.normal(xkey, (2, 3, 16, 16), jnp.float32)

    fwd = jax.jit(functools.partial(resnet_forward, temperature=1.0))
    out = jax.block_until_ready(fwd(x, params))

    assert out.shape == (2, 10), out.shape
    row_sums = jnp.sum(out, axis=1)
    assert bool(jnp.all(jnp.abs(row_sums - 1.0) < 1e-4)), row_sums
    assert bool(jnp.all(jnp.isfinite(out)))
    print("KERNEL_OK")
</pallas_src>

<mosaic_0001>
module attributes {stable_mosaic.version = 11 : i64} {
  func.func @_fused_matmul_kernel(%arg0: i32, %arg1: i32, %arg2: i32, %arg3: memref<128x256xbf16, #tpu.memory_space<vmem>>, %arg4: memref<256x128xbf16, #tpu.memory_space<vmem>>, %arg5: memref<1x128xf32, #tpu.memory_space<vmem>>, %arg6: memref<1x128xf32, #tpu.memory_space<vmem>>, %arg7: memref<128x128xbf16, #tpu.memory_space<vmem>>, %arg8: memref<128x128xf32, #tpu.memory_space<vmem>>) attributes {dimension_semantics = [#tpu.dimension_semantics<parallel>, #tpu.dimension_semantics<parallel>, #tpu.dimension_semantics<arbitrary>], iteration_bounds = array<i64: 1, 1, 1>, scalar_prefetch = 0 : i64, scratch_operands = 1 : i64, tpu.core_type = #tpu.core_type<tc>, window_params = [{transform_indices = @transform_0, window_bounds = array<i64: 128, 256>}, {transform_indices = @transform_1, window_bounds = array<i64: 256, 128>}, {transform_indices = @transform_2, window_bounds = array<i64: 1, 128>}, {transform_indices = @transform_3, window_bounds = array<i64: 1, 128>}, {transform_indices = @transform_4, window_bounds = array<i64: 128, 128>}]} {
    %c0_i32 = arith.constant 0 : i32
    %0 = arith.cmpi eq, %arg2, %c0_i32 : i32
    %1 = arith.extui %0 : i1 to i32
    %c0_i32_0 = arith.constant 0 : i32
    %2 = arith.cmpi ne, %1, %c0_i32_0 : i32
    scf.if %2 {
      %cst_10 = arith.constant 0.000000e+00 : f32
      %12 = vector.broadcast %cst_10 : f32 to vector<128x128xf32>
      %c0_11 = arith.constant 0 : index
      %c0_12 = arith.constant 0 : index
      %13 = vector.load %arg8[%c0_11, %c0_12] : memref<128x128xf32, #tpu.memory_space<vmem>>, vector<128x128xf32>
      tpu.vector_store %arg8[%c0_11, %c0_12], %12 {strides = array<i32>} : memref<128x128xf32, #tpu.memory_space<vmem>>, vector<128x128xf32>,
    } else {
    }
    %c0 = arith.constant 0 : index
    %c0_1 = arith.constant 0 : index
    %3 = vector.load %arg8[%c0, %c0_1] : memref<128x128xf32, #tpu.memory_space<vmem>>, vector<128x128xf32>
    %c0_2 = arith.constant 0 : index
    %c0_3 = arith.constant 0 : index
    %4 = vector.load %arg3[%c0_2, %c0_3] : memref<128x256xbf16, #tpu.memory_space<vmem>>, vector<128x256xbf16>
    %c0_4 = arith.constant 0 : index
    %c0_5 = arith.constant 0 : index
    %5 = vector.load %arg4[%c0_4, %c0_5] : memref<256x128xbf16, #tpu.memory_space<vmem>>, vector<256x128xbf16>
    %cst = arith.constant dense<0.000000e+00> : vector<128x128xf32>
    %6 = tpu.matmul %4, %5, %cst {dimension_numbers = #tpu.dot_dimension_numbers<[1], [0], [0], [1], [0, 0, 1, 1], [], []>} : vector<128x256xbf16>, vector<256x128xbf16>, vector<128x128xf32> -> vector<128x128xf32>
    %7 = arith.addf %3, %6 : vector<128x128xf32>
    %c0_6 = arith.constant 0 : index
    %c0_7 = arith.constant 0 : index
    %8 = vector.load %arg8[%c0_6, %c0_7] : memref<128x128xf32, #tpu.memory_space<vmem>>, vector<128x128xf32>
    tpu.vector_store %arg8[%c0_6, %c0_7], %7 {strides = array<i32>} : memref<128x128xf32, #tpu.memory_space<vmem>>, vector<128x128xf32>,
    %c0_i32_8 = arith.constant 0 : i32
    %9 = arith.cmpi eq, %arg2, %c0_i32_8 : i32
    %10 = arith.extui %9 : i1 to i32
    %c0_i32_9 = arith.constant 0 : i32
    %11 = arith.cmpi ne, %10, %c0_i32_9 : i32
    scf.if %11 {
      %c0_10 = arith.constant 0 : index
      %c0_11 = arith.constant 0 : index
      %12 = vector.load %arg8[%c0_10, %c0_11] : memref<128x128xf32, #tpu.memory_space<vmem>>, vector<128x128xf32>
      %c0_12 = arith.constant 0 : index
      %c0_13 = arith.constant 0 : index
      %13 = vector.load %arg5[%c0_12, %c0_13] : memref<1x128xf32, #tpu.memory_space<vmem>>, vector<1x128xf32>
      %14 = vector.broadcast %13 : vector<1x128xf32> to vector<128x128xf32>
      %15 = arith.mulf %12, %14 : vector<128x128xf32>
      %c0_14 = arith.constant 0 : index
      %c0_15 = arith.constant 0 : index
      %16 = vector.load %arg6[%c0_14, %c0_15] : memref<1x128xf32, #tpu.memory_space<vmem>>, vector<1x128xf32>
      %17 = vector.broadcast %16 : vector<1x128xf32> to vector<128x128xf32>
      %18 = arith.addf %15, %17 : vector<128x128xf32>
      %cst_16 = arith.constant 0.000000e+00 : f32
      %19 = vector.broadcast %cst_16 : f32 to vector<128x128xf32>
      %20 = arith.maximumf %18, %19 : vector<128x128xf32>
      %21 = arith.truncf %20 : vector<128x128xf32> to vector<128x128xbf16>
      %c0_17 = arith.constant 0 : index
      %c0_18 = arith.constant 0 : index
      %22 = vector.load %arg7[%c0_17, %c0_18] : memref<128x128xbf16, #tpu.memory_space<vmem>>, vector<128x128xbf16>
      tpu.vector_store %arg7[%c0_17, %c0_18], %21 {strides = array<i32>} : memref<128x128xbf16, #tpu.memory_space<vmem>>, vector<128x128xbf16>,
    } else {
    }
    return
  }
  func.func @transform_0(%arg0: i32, %arg1: i32, %arg2: i32) -> (i32, i32) {
    %c0_i32 = arith.constant 0 : i32
    return %arg0, %arg2 : i32, i32
  }
  func.func @transform_1(%arg0: i32, %arg1: i32, %arg2: i32) -> (i32, i32) {
    %c0_i32 = arith.constant 0 : i32
    return %arg2, %arg1 : i32, i32
  }
  func.func @transform_2(%arg0: i32, %arg1: i32, %arg2: i32) -> (i32, i32) {
    %c0_i32 = arith.constant 0 : i32
    %c0_i32_0 = arith.constant 0 : i32
    return %c0_i32, %arg1 : i32, i32
  }
  func.func @transform_3(%arg0: i32, %arg1: i32, %arg2: i32) -> (i32, i32) {
    %c0_i32 = arith.constant 0 : i32
    %c0_i32_0 = arith.constant 0 : i32
    return %c0_i32, %arg1 : i32, i32
  }
  func.func @transform_4(%arg0: i32, %arg1: i32, %arg2: i32) -> (i32, i32) {
    %c0_i32 = arith.constant 0 : i32
    return %arg0, %arg1 : i32, i32
  }
}

module attributes {stable_mosaic.version = 11 : i64} {
  func.func @_fused_matmul_kernel(%arg0: i32, %arg1: i32, %arg2: i32, %arg3: memref<128x128xbf16, #tpu.memory_space<vmem>>, %arg4: memref<128x128xbf16, #tpu.memory_space<vmem>>, %arg5: memref<1x128xf32, #tpu.memory_space<vmem>>, %arg6: memref<1x128xf32, #tpu.memory_space<vmem>>, %arg7: memref<128x128xbf16, #tpu.memory_space<vmem>>, %arg8: memref<128x128xf32, #tpu.memory_space<vmem>>) attributes {dimension_semantics = [#tpu.dimension_semantics<parallel>, #tpu.dimension_semantics<parallel>, #tpu.dimension_semantics<arbitrary>], iteration_bounds = array<i64: 1, 1, 1>, scalar_prefetch = 0 : i64, scratch_operands = 1 : i64, tpu.core_type = #tpu.core_type<tc>, window_params = [{transform_indices = @transform_0, window_bounds = array<i64: 128, 128>}, {transform_indices = @transform_1, window_bounds = array<i64: 128, 128>}, {transform_indices = @transform_2, window_bounds = array<i64: 1, 128>}, {transform_indices = @transform_3, window_bounds = array<i64: 1, 128>}, {transform_indices = @transform_4, window_bounds = array<i64: 128, 128>}]} {
    %c0_i32 = arith.constant 0 : i32
    %0 = arith.cmpi eq, %arg2, %c0_i32 : i32
    %1 = arith.extui %0 : i1 to i32
    %c0_i32_0 = arith.constant 0 : i32
    %2 = arith.cmpi ne, %1, %c0_i32_0 : i32
    scf.if %2 {
      %cst_10 = arith.constant 0.000000e+00 : f32
      %12 = vector.broadcast %cst_10 : f32 to vector<128x128xf32>
      %c0_11 = arith.constant 0 : index
      %c0_12 = arith.constant 0 : index
      %13 = vector.load %arg8[%c0_11, %c0_12] : memref<128x128xf32, #tpu.memory_space<vmem>>, vector<128x128xf32>
      tpu.vector_store %arg8[%c0_11, %c0_12], %12 {strides = array<i32>} : memref<128x128xf32, #tpu.memory_space<vmem>>, vector<128x128xf32>,
    } else {
    }
    %c0 = arith.constant 0 : index
    %c0_1 = arith.constant 0 : index
    %3 = vector.load %arg8[%c0, %c0_1] : memref<128x128xf32, #tpu.memory_space<vmem>>, vector<128x128xf32>
    %c0_2 = arith.constant 0 : index
    %c0_3 = arith.constant 0 : index
    %4 = vector.load %arg3[%c0_2, %c0_3] : memref<128x128xbf16, #tpu.memory_space<vmem>>, vector<128x128xbf16>
    %c0_4 = arith.constant 0 : index
    %c0_5 = arith.constant 0 : index
    %5 = vector.load %arg4[%c0_4, %c0_5] : memref<128x128xbf16, #tpu.memory_space<vmem>>, vector<128x128xbf16>
    %cst = arith.constant dense<0.000000e+00> : vector<128x128xf32>
    %6 = tpu.matmul %4, %5, %cst {dimension_numbers = #tpu.dot_dimension_numbers<[1], [0], [0], [1], [0, 0, 1, 1], [], []>} : vector<128x128xbf16>, vector<128x128xbf16>, vector<128x128xf32> -> vector<128x128xf32>
    %7 = arith.addf %3, %6 : vector<128x128xf32>
    %c0_6 = arith.constant 0 : index
    %c0_7 = arith.constant 0 : index
    %8 = vector.load %arg8[%c0_6, %c0_7] : memref<128x128xf32, #tpu.memory_space<vmem>>, vector<128x128xf32>
    tpu.vector_store %arg8[%c0_6, %c0_7], %7 {strides = array<i32>} : memref<128x128xf32, #tpu.memory_space<vmem>>, vector<128x128xf32>,
    %c0_i32_8 = arith.constant 0 : i32
    %9 = arith.cmpi eq, %arg2, %c0_i32_8 : i32
    %10 = arith.extui %9 : i1 to i32
    %c0_i32_9 = arith.constant 0 : i32
    %11 = arith.cmpi ne, %10, %c0_i32_9 : i32
    scf.if %11 {
      %c0_10 = arith.constant 0 : index
      %c0_11 = arith.constant 0 : index
      %12 = vector.load %arg8[%c0_10, %c0_11] : memref<128x128xf32, #tpu.memory_space<vmem>>, vector<128x128xf32>
      %c0_12 = arith.constant 0 : index
      %c0_13 = arith.constant 0 : index
      %13 = vector.load %arg5[%c0_12, %c0_13] : memref<1x128xf32, #tpu.memory_space<vmem>>, vector<1x128xf32>
      %14 = vector.broadcast %13 : vector<1x128xf32> to vector<128x128xf32>
      %15 = arith.mulf %12, %14 : vector<128x128xf32>
      %c0_14 = arith.constant 0 : index
      %c0_15 = arith.constant 0 : index
      %16 = vector.load %arg6[%c0_14, %c0_15] : memref<1x128xf32, #tpu.memory_space<vmem>>, vector<1x128xf32>
      %17 = vector.broadcast %16 : vector<1x128xf32> to vector<128x128xf32>
      %18 = arith.addf %15, %17 : vector<128x128xf32>
      %cst_16 = arith.constant 0.000000e+00 : f32
      %19 = vector.broadcast %cst_16 : f32 to vector<128x128xf32>
      %20 = arith.maximumf %18, %19 : vector<128x128xf32>
      %21 = arith.truncf %20 : vector<128x128xf32> to vector<128x128xbf16>
      %c0_17 = arith.constant 0 : index
      %c0_18 = arith.constant 0 : index
      %22 = vector.load %arg7[%c0_17, %c0_18] : memref<128x128xbf16, #tpu.memory_space<vmem>>, vector<128x128xbf16>
      tpu.vector_store %arg7[%c0_17, %c0_18], %21 {strides = array<i32>} : memref<128x128xbf16, #tpu.memory_space<vmem>>, vector<128x128xbf16>,
    } else {
    }
    return
  }
  func.func @transform_0(%arg0: i32, %arg1: i32, %arg2: i32) -> (i32, i32) {
    %c0_i32 = arith.constant 0 : i32
    return %arg0, %arg2 : i32, i32
  }
  func.func @transform_1(%arg0: i32, %arg1: i32, %arg2: i32) -> (i32, i32) {
    %c0_i32 = arith.constant 0 : i32
    return %arg2, %arg1 : i32, i32
  }
  func.func @transform_2(%arg0: i32, %arg1: i32, %arg2: i32) -> (i32, i32) {
    %c0_i32 = arith.constant 0 : i32
    %c0_i32_0 = arith.constant 0 : i32
    return %c0_i32, %arg1 : i32, i32
  }
  func.func @transform_3(%arg0: i32, %arg1: i32, %arg2: i32) -> (i32, i32) {
    %c0_i32 = arith.constant 0 : i32
    %c0_i32_0 = arith.constant 0 : i32
    return %c0_i32, %arg1 : i32, i32
  }
  func.func @transform_4(%arg0: i32, %arg1: i32, %arg2: i32) -> (i32, i32) {
    %c0_i32 = arith.constant 0 : i32
    return %arg0, %arg1 : i32, i32
  }
}

module attributes {stable_mosaic.version = 11 : i64} {
  func.func @_fused_matmul_kernel(%arg0: i32, %arg1: i32, %arg2: i32, %arg3: memref<128x384xbf16, #tpu.memory_space<vmem>>, %arg4: memref<384x128xbf16, #tpu.memory_space<vmem>>, %arg5: memref<1x128xf32, #tpu.memory_space<vmem>>, %arg6: memref<1x128xf32, #tpu.memory_space<vmem>>, %arg7: memref<128x128xbf16, #tpu.memory_space<vmem>>, %arg8: memref<128x128xf32, #tpu.memory_space<vmem>>) attributes {dimension_semantics = [#tpu.dimension_semantics<parallel>, #tpu.dimension_semantics<parallel>, #tpu.dimension_semantics<arbitrary>], iteration_bounds = array<i64: 1, 1, 1>, scalar_prefetch = 0 : i64, scratch_operands = 1 : i64, tpu.core_type = #tpu.core_type<tc>, window_params = [{transform_indices = @transform_0, window_bounds = array<i64: 128, 384>}, {transform_indices = @transform_1, window_bounds = array<i64: 384, 128>}, {transform_indices = @transform_2, window_bounds = array<i64: 1, 128>}, {transform_indices = @transform_3, window_bounds = array<i64: 1, 128>}, {transform_indices = @transform_4, window_bounds = array<i64: 128, 128>}]} {
    %c0_i32 = arith.constant 0 : i32
    %0 = arith.cmpi eq, %arg2, %c0_i32 : i32
    %1 = arith.extui %0 : i1 to i32
    %c0_i32_0 = arith.constant 0 : i32
    %2 = arith.cmpi ne, %1, %c0_i32_0 : i32
    scf.if %2 {
      %cst_10 = arith.constant 0.000000e+00 : f32
      %12 = vector.broadcast %cst_10 : f32 to vector<128x128xf32>
      %c0_11 = arith.constant 0 : index
      %c0_12 = arith.constant 0 : index
      %13 = vector.load %arg8[%c0_11, %c0_12] : memref<128x128xf32, #tpu.memory_space<vmem>>, vector<128x128xf32>
      tpu.vector_store %arg8[%c0_11, %c0_12], %12 {strides = array<i32>} : memref<128x128xf32, #tpu.memory_space<vmem>>, vector<128x128xf32>,
    } else {
    }
    %c0 = arith.constant 0 : index
    %c0_1 = arith.constant 0 : index
    %3 = vector.load %arg8[%c0, %c0_1] : memref<128x128xf32, #tpu.memory_space<vmem>>, vector<128x128xf32>
    %c0_2 = arith.constant 0 : index
    %c0_3 = arith.constant 0 : index
    %4 = vector.load %arg3[%c0_2, %c0_3] : memref<128x384xbf16, #tpu.memory_space<vmem>>, vector<128x384xbf16>
    %c0_4 = arith.constant 0 : index
    %c0_5 = arith.constant 0 : index
    %5 = vector.load %arg4[%c0_4, %c0_5] : memref<384x128xbf16, #tpu.memory_space<vmem>>, vector<384x128xbf16>
    %cst = arith.constant dense<0.000000e+00> : vector<128x128xf32>
    %6 = tpu.matmul %4, %5, %cst {dimension_numbers = #tpu.dot_dimension_numbers<[1], [0], [0], [1], [0, 0, 1, 1], [], []>} : vector<128x384xbf16>, vector<384x128xbf16>, vector<128x128xf32> -> vector<128x128xf32>
    %7 = arith.addf %3, %6 : vector<128x128xf32>
    %c0_6 = arith.constant 0 : index
    %c0_7 = arith.constant 0 : index
    %8 = vector.load %arg8[%c0_6, %c0_7] : memref<128x128xf32, #tpu.memory_space<vmem>>, vector<128x128xf32>
    tpu.vector_store %arg8[%c0_6, %c0_7], %7 {strides = array<i32>} : memref<128x128xf32, #tpu.memory_space<vmem>>, vector<128x128xf32>,
    %c0_i32_8 = arith.constant 0 : i32
    %9 = arith.cmpi eq, %arg2, %c0_i32_8 : i32
    %10 = arith.extui %9 : i1 to i32
    %c0_i32_9 = arith.constant 0 : i32
    %11 = arith.cmpi ne, %10, %c0_i32_9 : i32
    scf.if %11 {
      %c0_10 = arith.constant 0 : index
      %c0_11 = arith.constant 0 : index
      %12 = vector.load %arg8[%c0_10, %c0_11] : memref<128x128xf32, #tpu.memory_space<vmem>>, vector<128x128xf32>
      %c0_12 = arith.constant 0 : index
      %c0_13 = arith.constant 0 : index
      %13 = vector.load %arg5[%c0_12, %c0_13] : memref<1x128xf32, #tpu.memory_space<vmem>>, vector<1x128xf32>
      %14 = vector.broadcast %13 : vector<1x128xf32> to vector<128x128xf32>
      %15 = arith.mulf %12, %14 : vector<128x128xf32>
      %c0_14 = arith.constant 0 : index
      %c0_15 = arith.constant 0 : index
      %16 = vector.load %arg6[%c0_14, %c0_15] : memref<1x128xf32, #tpu.memory_space<vmem>>, vector<1x128xf32>
      %17 = vector.broadcast %16 : vector<1x128xf32> to vector<128x128xf32>
      %18 = arith.addf %15, %17 : vector<128x128xf32>
      %cst_16 = arith.constant 0.000000e+00 : f32
      %19 = vector.broadcast %cst_16 : f32 to vector<128x128xf32>
      %20 = arith.maximumf %18, %19 : vector<128x128xf32>
      %21 = arith.truncf %20 : vector<128x128xf32> to vector<128x128xbf16>
      %c0_17 = arith.constant 0 : index
      %c0_18 = arith.constant 0 : index
      %22 = vector.load %arg7[%c0_17, %c0_18] : memref<128x128xbf16, #tpu.memory_space<vmem>>, vector<128x128xbf16>
      tpu.vector_store %arg7[%c0_17, %c0_18], %21 {strides = array<i32>} : memref<128x128xbf16, #tpu.memory_space<vmem>>, vector<128x128xbf16>,
    } else {
    }
    return
  }
  func.func @transform_0(%arg0: i32, %arg1: i32, %arg2: i32) -> (i32, i32) {
    %c0_i32 = arith.constant 0 : i32
    return %arg0, %arg2 : i32, i32
  }
  func.func @transform_1(%arg0: i32, %arg1: i32, %arg2: i32) -> (i32, i32) {
    %c0_i32 = arith.constant 0 : i32
    return %arg2, %arg1 : i32, i32
  }
  func.func @transform_2(%arg0: i32, %arg1: i32, %arg2: i32) -> (i32, i32) {
    %c0_i32 = arith.constant 0 : i32
    %c0_i32_0 = arith.constant 0 : i32
    return %c0_i32, %arg1 : i32, i32
  }
  func.func @transform_3(%arg0: i32, %arg1: i32, %arg2: i32) -> (i32, i32) {
    %c0_i32 = arith.constant 0 : i32
    %c0_i32_0 = arith.constant 0 : i32
    return %c0_i32, %arg1 : i32, i32
  }
  func.func @transform_4(%arg0: i32, %arg1: i32, %arg2: i32) -> (i32, i32) {
    %c0_i32 = arith.constant 0 : i32
    return %arg0, %arg1 : i32, i32
  }
}

module attributes {stable_mosaic.version = 11 : i64} {
  func.func @_fused_matmul_kernel(%arg0: i32, %arg1: i32, %arg2: i32, %arg3: memref<128x640xbf16, #tpu.memory_space<vmem>>, %arg4: memref<640x128xbf16, #tpu.memory_space<vmem>>, %arg5: memref<1x128xf32, #tpu.memory_space<vmem>>, %arg6: memref<1x128xf32, #tpu.memory_space<vmem>>, %arg7: memref<128x128xbf16, #tpu.memory_space<vmem>>, %arg8: memref<128x128xf32, #tpu.memory_space<vmem>>) attributes {dimension_semantics = [#tpu.dimension_semantics<parallel>, #tpu.dimension_semantics<parallel>, #tpu.dimension_semantics<arbitrary>], iteration_bounds = array<i64: 1, 1, 1>, scalar_prefetch = 0 : i64, scratch_operands = 1 : i64, tpu.core_type = #tpu.core_type<tc>, window_params = [{transform_indices = @transform_0, window_bounds = array<i64: 128, 640>}, {transform_indices = @transform_1, window_bounds = array<i64: 640, 128>}, {transform_indices = @transform_2, window_bounds = array<i64: 1, 128>}, {transform_indices = @transform_3, window_bounds = array<i64: 1, 128>}, {transform_indices = @transform_4, window_bounds = array<i64: 128, 128>}]} {
    %c0_i32 = arith.constant 0 : i32
    %0 = arith.cmpi eq, %arg2, %c0_i32 : i32
    %1 = arith.extui %0 : i1 to i32
    %c0_i32_0 = arith.constant 0 : i32
    %2 = arith.cmpi ne, %1, %c0_i32_0 : i32
    scf.if %2 {
      %cst_10 = arith.constant 0.000000e+00 : f32
      %12 = vector.broadcast %cst_10 : f32 to vector<128x128xf32>
      %c0_11 = arith.constant 0 : index
      %c0_12 = arith.constant 0 : index
      %13 = vector.load %arg8[%c0_11, %c0_12] : memref<128x128xf32, #tpu.memory_space<vmem>>, vector<128x128xf32>
      tpu.vector_store %arg8[%c0_11, %c0_12], %12 {strides = array<i32>} : memref<128x128xf32, #tpu.memory_space<vmem>>, vector<128x128xf32>,
    } else {
    }
    %c0 = arith.constant 0 : index
    %c0_1 = arith.constant 0 : index
    %3 = vector.load %arg8[%c0, %c0_1] : memref<128x128xf32, #tpu.memory_space<vmem>>, vector<128x128xf32>
    %c0_2 = arith.constant 0 : index
    %c0_3 = arith.constant 0 : index
    %4 = vector.load %arg3[%c0_2, %c0_3] : memref<128x640xbf16, #tpu.memory_space<vmem>>, vector<128x640xbf16>
    %c0_4 = arith.constant 0 : index
    %c0_5 = arith.constant 0 : index
    %5 = vector.load %arg4[%c0_4, %c0_5] : memref<640x128xbf16, #tpu.memory_space<vmem>>, vector<640x128xbf16>
    %cst = arith.constant dense<0.000000e+00> : vector<128x128xf32>
    %6 = tpu.matmul %4, %5, %cst {dimension_numbers = #tpu.dot_dimension_numbers<[1], [0], [0], [1], [0, 0, 1, 1], [], []>} : vector<128x640xbf16>, vector<640x128xbf16>, vector<128x128xf32> -> vector<128x128xf32>
    %7 = arith.addf %3, %6 : vector<128x128xf32>
    %c0_6 = arith.constant 0 : index
    %c0_7 = arith.constant 0 : index
    %8 = vector.load %arg8[%c0_6, %c0_7] : memref<128x128xf32, #tpu.memory_space<vmem>>, vector<128x128xf32>
    tpu.vector_store %arg8[%c0_6, %c0_7], %7 {strides = array<i32>} : memref<128x128xf32, #tpu.memory_space<vmem>>, vector<128x128xf32>,
    %c0_i32_8 = arith.constant 0 : i32
    %9 = arith.cmpi eq, %arg2, %c0_i32_8 : i32
    %10 = arith.extui %9 : i1 to i32
    %c0_i32_9 = arith.constant 0 : i32
    %11 = arith.cmpi ne, %10, %c0_i32_9 : i32
    scf.if %11 {
      %c0_10 = arith.constant 0 : index
      %c0_11 = arith.constant 0 : index
      %12 = vector.load %arg8[%c0_10, %c0_11] : memref<128x128xf32, #tpu.memory_space<vmem>>, vector<128x128xf32>
      %c0_12 = arith.constant 0 : index
      %c0_13 = arith.constant 0 : index
      %13 = vector.load %arg5[%c0_12, %c0_13] : memref<1x128xf32, #tpu.memory_space<vmem>>, vector<1x128xf32>
      %14 = vector.broadcast %13 : vector<1x128xf32> to vector<128x128xf32>
      %15 = arith.mulf %12, %14 : vector<128x128xf32>
      %c0_14 = arith.constant 0 : index
      %c0_15 = arith.constant 0 : index
      %16 = vector.load %arg6[%c0_14, %c0_15] : memref<1x128xf32, #tpu.memory_space<vmem>>, vector<1x128xf32>
      %17 = vector.broadcast %16 : vector<1x128xf32> to vector<128x128xf32>
      %18 = arith.addf %15, %17 : vector<128x128xf32>
      %cst_16 = arith.constant 0.000000e+00 : f32
      %19 = vector.broadcast %cst_16 : f32 to vector<128x128xf32>
      %20 = arith.maximumf %18, %19 : vector<128x128xf32>
      %21 = arith.truncf %20 : vector<128x128xf32> to vector<128x128xbf16>
      %c0_17 = arith.constant 0 : index
      %c0_18 = arith.constant 0 : index
      %22 = vector.load %arg7[%c0_17, %c0_18] : memref<128x128xbf16, #tpu.memory_space<vmem>>, vector<128x128xbf16>
      tpu.vector_store %arg7[%c0_17, %c0_18], %21 {strides = array<i32>} : memref<128x128xbf16, #tpu.memory_space<vmem>>, vector<128x128xbf16>,
    } else {
    }
    return
  }
  func.func @transform_0(%arg0: i32, %arg1: i32, %arg2: i32) -> (i32, i32) {
    %c0_i32 = arith.constant 0 : i32
    return %arg0, %arg2 : i32, i32
  }
  func.func @transform_1(%arg0: i32, %arg1: i32, %arg2: i32) -> (i32, i32) {
    %c0_i32 = arith.constant 0 : i32
    return %arg2, %arg1 : i32, i32
  }
  func.func @transform_2(%arg0: i32, %arg1: i32, %arg2: i32) -> (i32, i32) {
    %c0_i32 = arith.constant 0 : i32
    %c0_i32_0 = arith.constant 0 : i32
    return %c0_i32, %arg1 : i32, i32
  }
  func.func @transform_3(%arg0: i32, %arg1: i32, %arg2: i32) -> (i32, i32) {
    %c0_i32 = arith.constant 0 : i32
    %c0_i32_0 = arith.constant 0 : i32
    return %c0_i32, %arg1 : i32, i32
  }
  func.func @transform_4(%arg0: i32, %arg1: i32, %arg2: i32) -> (i32, i32) {
    %c0_i32 = arith.constant 0 : i32
    return %arg0, %arg1 : i32, i32
  }
}

module attributes {stable_mosaic.version = 11 : i64} {
  func.func @_head_kernel(%arg0: i32, %arg1: memref<2x64x256xbf16, #tpu.memory_space<vmem>>, %arg2: memref<256x10xf32, #tpu.memory_space<vmem>>, %arg3: memref<1x10xf32, #tpu.memory_space<vmem>>, %arg4: memref<1x10xf32, #tpu.memory_space<vmem>>, %arg5: memref<2x10xf32, #tpu.memory_space<vmem>>, %arg6: memref<2x256xf32, #tpu.memory_space<vmem>>) attributes {dimension_semantics = [#tpu.dimension_semantics<arbitrary>], iteration_bounds = array<i64: 1>, scalar_prefetch = 0 : i64, scratch_operands = 1 : i64, tpu.core_type = #tpu.core_type<tc>, window_params = [{transform_indices = @transform_0, window_bounds = array<i64: 2, 64, 256>}, {pipeline_mode = #tpu.pipeline_mode<synchronous>, transform_indices = @transform_1, window_bounds = array<i64: 256, 10>}, {pipeline_mode = #tpu.pipeline_mode<synchronous>, transform_indices = @transform_2, window_bounds = array<i64: 1, 10>}, {pipeline_mode = #tpu.pipeline_mode<synchronous>, transform_indices = @transform_3, window_bounds = array<i64: 1, 10>}, {pipeline_mode = #tpu.pipeline_mode<synchronous>, transform_indices = @transform_4, window_bounds = array<i64: 2, 10>}]} {
    %c0_i32 = arith.constant 0 : i32
    %0 = arith.cmpi eq, %arg0, %c0_i32 : i32
    %1 = arith.extui %0 : i1 to i32
    %c0_i32_0 = arith.constant 0 : i32
    %2 = arith.cmpi ne, %1, %c0_i32_0 : i32
    scf.if %2 {
      %cst_9 = arith.constant 0.000000e+00 : f32
      %12 = vector.broadcast %cst_9 : f32 to vector<2x256xf32>
      %c0_10 = arith.constant 0 : index
      %c0_11 = arith.constant 0 : index
      %13 = vector.load %arg6[%c0_10, %c0_11] : memref<2x256xf32, #tpu.memory_space<vmem>>, vector<2x256xf32>
      tpu.vector_store %arg6[%c0_10, %c0_11], %12 {strides = array<i32>} : memref<2x256xf32, #tpu.memory_space<vmem>>, vector<2x256xf32>,
    } else {
    }
    %c0 = arith.constant 0 : index
    %c0_1 = arith.constant 0 : index
    %3 = vector.load %arg6[%c0, %c0_1] : memref<2x256xf32, #tpu.memory_space<vmem>>, vector<2x256xf32>
    %c0_2 = arith.constant 0 : index
    %c0_3 = arith.constant 0 : index
    %c0_4 = arith.constant 0 : index
    %4 = vector.load %arg1[%c0_2, %c0_3, %c0_4] : memref<2x64x256xbf16, #tpu.memory_space<vmem>>, vector<2x64x256xbf16>
    %5 = arith.extf %4 : vector<2x64x256xbf16> to vector<2x64x256xf32>
    %cst = arith.constant dense<0.000000e+00> : vector<2x256xf32>
    %6 = vector.multi_reduction <add>, %5, %cst [1] : vector<2x64x256xf32> to vector<2x256xf32>
    %7 = arith.addf %3, %6 : vector<2x256xf32>
    %c0_5 = arith.constant 0 : index
    %c0_6 = arith.constant 0 : index
    %8 = vector.load %arg6[%c0_5, %c0_6] : memref<2x256xf32, #tpu.memory_space<vmem>>, vector<2x256xf32>
    tpu.vector_store %arg6[%c0_5, %c0_6], %7 {strides = array<i32>} : memref<2x256xf32, #tpu.memory_space<vmem>>, vector<2x256xf32>,
    %c0_i32_7 = arith.constant 0 : i32
    %9 = arith.cmpi eq, %arg0, %c0_i32_7 : i32
    %10 = arith.extui %9 : i1 to i32
    %c0_i32_8 = arith.constant 0 : i32
    %11 = arith.cmpi ne, %10, %c0_i32_8 : i32
    scf.if %11 {
      %c0_9 = arith.constant 0 : index
      %c0_10 = arith.constant 0 : index
      %12 = vector.load %arg6[%c0_9, %c0_10] : memref<2x256xf32, #tpu.memory_space<vmem>>, vector<2x256xf32>
      %cst_11 = arith.constant 1.562500e-02 : f32
      %13 = vector.broadcast %cst_11 : f32 to vector<2x256xf32>
      %14 = arith.mulf %12, %13 : vector<2x256xf32>
      %c0_12 = arith.constant 0 : index
      %c0_13 = arith.constant 0 : index
      %15 = vector.load %arg2[%c0_12, %c0_13] : memref<256x10xf32, #tpu.memory_space<vmem>>, vector<256x10xf32>
      %cst_14 = arith.constant dense<0.000000e+00> : vector<2x10xf32>
      %16 = tpu.matmul %14, %15, %cst_14 {dimension_numbers = #tpu.dot_dimension_numbers<[1], [0], [0], [1], [0, 0, 1, 1], [], []>} : vector<2x256xf32>, vector<256x10xf32>, vector<2x10xf32> -> vector<2x10xf32>
      %c0_15 = arith.constant 0 : index
      %c0_16 = arith.constant 0 : index
      %17 = vector.load %arg3[%c0_15, %c0_16] : memref<1x10xf32, #tpu.memory_space<vmem>>, vector<1x10xf32>
      %18 = vector.broadcast %17 : vector<1x10xf32> to vector<2x10xf32>
      %19 = arith.mulf %16, %18 : vector<2x10xf32>
      %c0_17 = arith.constant 0 : index
      %c0_18 = arith.constant 0 : index
      %20 = vector.load %arg4[%c0_17, %c0_18] : memref<1x10xf32, #tpu.memory_space<vmem>>, vector<1x10xf32>
      %21 = vector.broadcast %20 : vector<1x10xf32> to vector<2x10xf32>
      %22 = arith.addf %19, %21 : vector<2x10xf32>
      %cst_19 = arith.constant 1.000000e+00 : f32
      %23 = vector.broadcast %cst_19 : f32 to vector<2x10xf32>
      %24 = arith.mulf %22, %23 : vector<2x10xf32>
      %cst_20 = arith.constant dense<0xFF800000> : vector<2xf32>
      %25 = vector.multi_reduction <maximumf>, %24, %cst_20 [1] : vector<2x10xf32> to vector<2xf32>
      %26 = vector.shape_cast %25 : vector<2xf32> to vector<2x1xf32>
      %27 = vector.broadcast %26 : vector<2x1xf32> to vector<2x10xf32>
      %28 = arith.subf %24, %27 : vector<2x10xf32>
      %29 = math.exp %28 : vector<2x10xf32>
      %cst_21 = arith.constant dense<0.000000e+00> : vector<2xf32>
      %30 = vector.multi_reduction <add>, %29, %cst_21 [1] : vector<2x10xf32> to vector<2xf32>
      %31 = vector.shape_cast %30 : vector<2xf32> to vector<2x1xf32>
      %32 = vector.broadcast %31 : vector<2x1xf32> to vector<2x10xf32>
      %33 = arith.divf %29, %32 : vector<2x10xf32>
      %c0_22 = arith.constant 0 : index
      %c0_23 = arith.constant 0 : index
      %34 = vector.load %arg5[%c0_22, %c0_23] : memref<2x10xf32, #tpu.memory_space<vmem>>, vector<2x10xf32>
      tpu.vector_store %arg5[%c0_22, %c0_23], %33 {strides = array<i32>} : memref<2x10xf32, #tpu.memory_space<vmem>>, vector<2x10xf32>,
    } else {
    }
    return
  }
  func.func @transform_0(%arg0: i32) -> (i32, i32, i32) {
    %c0_i32 = arith.constant 0 : i32
    %c0_i32_0 = arith.constant 0 : i32
    %c0_i32_1 = arith.constant 0 : i32
    return %c0_i32, %arg0, %c0_i32_0 : i32, i32, i32
  }
  func.func @transform_1(%arg0: i32) -> (i32, i32) {
    %c0_i32 = arith.constant 0 : i32
    %c0_i32_0 = arith.constant 0 : i32
    %c0_i32_1 = arith.constant 0 : i32
    return %c0_i32, %c0_i32_0 : i32, i32
  }
  func.func @transform_2(%arg0: i32) -> (i32, i32) {
    %c0_i32 = arith.constant 0 : i32
    %c0_i32_0 = arith.constant 0 : i32
    %c0_i32_1 = arith.constant 0 : i32
    return %c0_i32, %c0_i32_0 : i32, i32
  }
  func.func @transform_3(%arg0: i32) -> (i32, i32) {
    %c0_i32 = arith.constant 0 : i32
    %c0_i32_0 = arith.constant 0 : i32
    %c0_i32_1 = arith.constant 0 : i32
    return %c0_i32, %c0_i32_0 : i32, i32
  }
  func.func @transform_4(%arg0: i32) -> (i32, i32) {
    %c0_i32 = arith.constant 0 : i32
    %c0_i32_0 = arith.constant 0 : i32
    %c0_i32_1 = arith.constant 0 : i32
    return %c0_i32, %c0_i32_0 : i32, i32
  }
}

module attributes {stable_mosaic.version = 11 : i64} {
  func.func @_fused_matmul_kernel(%arg0: i32, %arg1: i32, %arg2: i32, %arg3: memref<128x256xbf16, #tpu.memory_space<vmem>>, %arg4: memref<256x256xbf16, #tpu.memory_space<vmem>>, %arg5: memref<1x256xf32, #tpu.memory_space<vmem>>, %arg6: memref<1x256xf32, #tpu.memory_space<vmem>>, %arg7: memref<128x256xbf16, #tpu.memory_space<vmem>>, %arg8: memref<128x256xf32, #tpu.memory_space<vmem>>) attributes {dimension_semantics = [#tpu.dimension_semantics<parallel>, #tpu.dimension_semantics<parallel>, #tpu.dimension_semantics<arbitrary>], iteration_bounds = array<i64: 1, 1, 1>, scalar_prefetch = 0 : i64, scratch_operands = 1 : i64, tpu.core_type = #tpu.core_type<tc>, window_params = [{transform_indices = @transform_0, window_bounds = array<i64: 128, 256>}, {transform_indices = @transform_1, window_bounds = array<i64: 256, 256>}, {transform_indices = @transform_2, window_bounds = array<i64: 1, 256>}, {transform_indices = @transform_3, window_bounds = array<i64: 1, 256>}, {transform_indices = @transform_4, window_bounds = array<i64: 128, 256>}]} {
    %c0_i32 = arith.constant 0 : i32
    %0 = arith.cmpi eq, %arg2, %c0_i32 : i32
    %1 = arith.extui %0 : i1 to i32
    %c0_i32_0 = arith.constant 0 : i32
    %2 = arith.cmpi ne, %1, %c0_i32_0 : i32
    scf.if %2 {
      %cst_10 = arith.constant 0.000000e+00 : f32
      %12 = vector.broadcast %cst_10 : f32 to vector<128x256xf32>
      %c0_11 = arith.constant 0 : index
      %c0_12 = arith.constant 0 : index
      %13 = vector.load %arg8[%c0_11, %c0_12] : memref<128x256xf32, #tpu.memory_space<vmem>>, vector<128x256xf32>
      tpu.vector_store %arg8[%c0_11, %c0_12], %12 {strides = array<i32>} : memref<128x256xf32, #tpu.memory_space<vmem>>, vector<128x256xf32>,
    } else {
    }
    %c0 = arith.constant 0 : index
    %c0_1 = arith.constant 0 : index
    %3 = vector.load %arg8[%c0, %c0_1] : memref<128x256xf32, #tpu.memory_space<vmem>>, vector<128x256xf32>
    %c0_2 = arith.constant 0 : index
    %c0_3 = arith.constant 0 : index
    %4 = vector.load %arg3[%c0_2, %c0_3] : memref<128x256xbf16, #tpu.memory_space<vmem>>, vector<128x256xbf16>
    %c0_4 = arith.constant 0 : index
    %c0_5 = arith.constant 0 : index
    %5 = vector.load %arg4[%c0_4, %c0_5] : memref<256x256xbf16, #tpu.memory_space<vmem>>, vector<256x256xbf16>
    %cst = arith.constant dense<0.000000e+00> : vector<128x256xf32>
    %6 = tpu.matmul %4, %5, %cst {dimension_numbers = #tpu.dot_dimension_numbers<[1], [0], [0], [1], [0, 0, 1, 1], [], []>} : vector<128x256xbf16>, vector<256x256xbf16>, vector<128x256xf32> -> vector<128x256xf32>
    %7 = arith.addf %3, %6 : vector<128x256xf32>
    %c0_6 = arith.constant 0 : index
    %c0_7 = arith.constant 0 : index
    %8 = vector.load %arg8[%c0_6, %c0_7] : memref<128x256xf32, #tpu.memory_space<vmem>>, vector<128x256xf32>
    tpu.vector_store %arg8[%c0_6, %c0_7], %7 {strides = array<i32>} : memref<128x256xf32, #tpu.memory_space<vmem>>, vector<128x256xf32>,
    %c0_i32_8 = arith.constant 0 : i32
    %9 = arith.cmpi eq, %arg2, %c0_i32_8 : i32
    %10 = arith.extui %9 : i1 to i32
    %c0_i32_9 = arith.constant 0 : i32
    %11 = arith.cmpi ne, %10, %c0_i32_9 : i32
    scf.if %11 {
      %c0_10 = arith.constant 0 : index
      %c0_11 = arith.constant 0 : index
      %12 = vector.load %arg8[%c0_10, %c0_11] : memref<128x256xf32, #tpu.memory_space<vmem>>, vector<128x256xf32>
      %c0_12 = arith.constant 0 : index
      %c0_13 = arith.constant 0 : index
      %13 = vector.load %arg5[%c0_12, %c0_13] : memref<1x256xf32, #tpu.memory_space<vmem>>, vector<1x256xf32>
      %14 = vector.broadcast %13 : vector<1x256xf32> to vector<128x256xf32>
      %15 = arith.mulf %12, %14 : vector<128x256xf32>
      %c0_14 = arith.constant 0 : index
      %c0_15 = arith.constant 0 : index
      %16 = vector.load %arg6[%c0_14, %c0_15] : memref<1x256xf32, #tpu.memory_space<vmem>>, vector<1x256xf32>
      %17 = vector.broadcast %16 : vector<1x256xf32> to vector<128x256xf32>
      %18 = arith.addf %15, %17 : vector<128x256xf32>
      %cst_16 = arith.constant 0.000000e+00 : f32
      %19 = vector.broadcast %cst_16 : f32 to vector<128x256xf32>
      %20 = arith.maximumf %18, %19 : vector<128x256xf32>
      %21 = arith.truncf %20 : vector<128x256xf32> to vector<128x256xbf16>
      %c0_17 = arith.constant 0 : index
      %c0_18 = arith.constant 0 : index
      %22 = vector.load %arg7[%c0_17, %c0_18] : memref<128x256xbf16, #tpu.memory_space<vmem>>, vector<128x256xbf16>
      tpu.vector_store %arg7[%c0_17, %c0_18], %21 {strides = array<i32>} : memref<128x256xbf16, #tpu.memory_space<vmem>>, vector<128x256xbf16>,
    } else {
    }
    return
  }
  func.func @transform_0(%arg0: i32, %arg1: i32, %arg2: i32) -> (i32, i32) {
    %c0_i32 = arith.constant 0 : i32
    return %arg0, %arg2 : i32, i32
  }
  func.func @transform_1(%arg0: i32, %arg1: i32, %arg2: i32) -> (i32, i32) {
    %c0_i32 = arith.constant 0 : i32
    return %arg2, %arg1 : i32, i32
  }
  func.func @transform_2(%arg0: i32, %arg1: i32, %arg2: i32) -> (i32, i32) {
    %c0_i32 = arith.constant 0 : i32
    %c0_i32_0 = arith.constant 0 : i32
    return %c0_i32, %arg1 : i32, i32
  }
  func.func @transform_3(%arg0: i32, %arg1: i32, %arg2: i32) -> (i32, i32) {
    %c0_i32 = arith.constant 0 : i32
    %c0_i32_0 = arith.constant 0 : i32
    return %c0_i32, %arg1 : i32, i32
  }
  func.func @transform_4(%arg0: i32, %arg1: i32, %arg2: i32) -> (i32, i32) {
    %c0_i32 = arith.constant 0 : i32
    return %arg0, %arg1 : i32, i32
  }
}

</mosaic_0001>

<llo_original>
// kernel: resnet_forward.9
$region0: #{resnet_forward.9}
  #allocation0 [shape = 'u32[]', space=smem, size = 0x4, offset = 0x4, fixed_abs, tag = 'smem constant byte address 0x4 - core index']
  #allocation1 [shape = 'u32[144,128]{1,0:T(1,128)}', space=vmem, size = 0x12000, scoped, tag = 'internal scratch']
  #allocation2 [shape = 'f32[128,128]{1,0:T(8,128)}', space=vmem, size = 0x10000, scoped, tag = 'scratch operand']
  %s0 = inlined_call_operand.vmem [shape: bf16[128,128], index: 0, kind: input, shape index: {}]
  %s1 = inlined_call_operand.vmem [shape: bf16[128,128], index: 1, kind: input, shape index: {}]
  %s2 = inlined_call_operand.vmem [shape: f32[1,128], index: 2, kind: input, shape index: {}]
  %s3 = inlined_call_operand.vmem [shape: f32[1,128], index: 3, kind: input, shape index: {}]
  %s4 = inlined_call_operand.vmem [shape: bf16[128,128], index: 4, kind: output, shape index: {}]
  %s5 = sld [smem:[#allocation0]]
  $region34: #{resnet_forward.9} parent=0
    _
  %s7 = ssub.s32 1, %s5
  %s8 = scalar_select 0, %s7, %s5
  // Predicated region
  $region2: #{resnet_forward.9} parent=0 // pred_check
    _
  $region3: #{resnet_forward.9} parent=0 // pred_check_branch
    %10 = sbr.rel (0) target = $region5
  $region4: #{resnet_forward.9} parent=0 // pred_region
    _
  $region5: #{resnet_forward.9} parent=0 // pred_fallthru
    _
  // Predicated region
  $region6: #{resnet_forward.9} parent=0 // pred_check
    _
  $region7: #{resnet_forward.9} parent=0 // pred_check_branch
    %12 = sbr.rel (0) target = $region9
  $region8: #{resnet_forward.9} parent=0 // pred_region
    _
  $region9: #{resnet_forward.9} parent=0 // pred_fallthru
    _
  // Predicated region
  $region10: #{resnet_forward.9} parent=0 // pred_check
    _
  $region11: #{resnet_forward.9} parent=0 // pred_check_branch
    %14 = sbr.rel (0) target = $region13
  $region12: #{resnet_forward.9} parent=0 // pred_region
    _
  $region13: #{resnet_forward.9} parent=0 // pred_fallthru
    _
  // Predicated region
  $region14: #{resnet_forward.9} parent=0 // pred_check
    _
  $region15: #{resnet_forward.9} parent=0 // pred_check_branch
    %16 = sbr.rel (0) target = $region17
  $region16: #{resnet_forward.9} parent=0 // pred_region
    _
  $region17: #{resnet_forward.9} parent=0 // pred_fallthru
    _
  %p18 = scmp.eq.s32.totalorder 0, 0
  // Predicated region
  $region18: #{resnet_forward.9} parent=0 // pred_check
    %p19 = pneg %p18
  $region19: #{resnet_forward.9} parent=0 // pred_check_branch
    %21 = sbr.rel (%p19) target = $region21
  $region20: #{resnet_forward.9} parent=0 // pred_region
    %22 = vst [vmem:[#allocation2] sm:$0xff] 0.0
    %23 = vst [vmem:[#allocation2 + $0x8] sm:$0xff] 0.0
    %24 = vst [vmem:[#allocation2 + $0x10] sm:$0xff] 0.0
    %25 = vst [vmem:[#allocation2 + $0x18] sm:$0xff] 0.0
    %26 = vst [vmem:[#allocation2 + $0x20] sm:$0xff] 0.0
    %27 = vst [vmem:[#allocation2 + $0x28] sm:$0xff] 0.0
    %28 = vst [vmem:[#allocation2 + $0x30] sm:$0xff] 0.0
    %29 = vst [vmem:[#allocation2 + $0x38] sm:$0xff] 0.0
    %30 = vst [vmem:[#allocation2 + $0x40] sm:$0xff] 0.0
    %31 = vst [vmem:[#allocation2 + $0x48] sm:$0xff] 0.0
    %32 = vst [vmem:[#allocation2 + $0x50] sm:$0xff] 0.0
    %33 = vst [vmem:[#allocation2 + $0x58] sm:$0xff] 0.0
    %34 = vst [vmem:[#allocation2 + $0x60] sm:$0xff] 0.0
    %35 = vst [vmem:[#allocation2 + $0x68] sm:$0xff] 0.0
    %36 = vst [vmem:[#allocation2 + $0x70] sm:$0xff] 0.0
    %37 = vst [vmem:[#allocation2 + $0x78] sm:$0xff] 0.0
  $region21: #{resnet_forward.9} parent=0 // pred_fallthru
    _
  %v38 = vld [vmem:[#allocation2] sm:$0xff]
  %v39 = vld [vmem:[#allocation2 + $0x8] sm:$0xff]
  %v40 = vld [vmem:[#allocation2 + $0x10] sm:$0xff]
  %v41 = vld [vmem:[#allocation2 + $0x18] sm:$0xff]
  %v42 = vld [vmem:[#allocation2 + $0x20] sm:$0xff]
  %v43 = vld [vmem:[#allocation2 + $0x28] sm:$0xff]
  %v44 = vld [vmem:[#allocation2 + $0x30] sm:$0xff]
  %v45 = vld [vmem:[#allocation2 + $0x38] sm:$0xff]
  %v46 = vld [vmem:[#allocation2 + $0x40] sm:$0xff]
  %v47 = vld [vmem:[#allocation2 + $0x48] sm:$0xff]
  %v48 = vld [vmem:[#allocation2 + $0x50] sm:$0xff]
  %v49 = vld [vmem:[#allocation2 + $0x58] sm:$0xff]
  %v50 = vld [vmem:[#allocation2 + $0x60] sm:$0xff]
  %v51 = vld [vmem:[#allocation2 + $0x68] sm:$0xff]
  %v52 = vld [vmem:[#allocation2 + $0x70] sm:$0xff]
  %v53 = vld [vmem:[#allocation2 + $0x78] sm:$0xff]
  %v54 = vld [vmem:[%s0] sm:$0xf]
  %v55 = vld [vmem:[%s0 + $0x4] sm:$0xf]
  %v56 = vld [vmem:[%s0 + $0x8] sm:$0xf]
  %v57 = vld [vmem:[%s0 + $0xc] sm:$0xf]
  %v58 = vld [vmem:[%s0 + $0x10] sm:$0xf]
  %v59 = vld [vmem:[%s0 + $0x14] sm:$0xf]
  %v60 = vld [vmem:[%s0 + $0x18] sm:$0xf]
  %v61 = vld [vmem:[%s0 + $0x1c] sm:$0xf]
  %v62 = vld [vmem:[%s0 + $0x20] sm:$0xf]
  %v63 = vld [vmem:[%s0 + $0x24] sm:$0xf]
  %v64 = vld [vmem:[%s0 + $0x28] sm:$0xf]
  %v65 = vld [vmem:[%s0 + $0x2c] sm:$0xf]
  %v66 = vld [vmem:[%s0 + $0x30] sm:$0xf]
  %v67 = vld [vmem:[%s0 + $0x34] sm:$0xf]
  %v68 = vld [vmem:[%s0 + $0x38] sm:$0xf]
  %v69 = vld [vmem:[%s0 + $0x3c] sm:$0xf]
  %v70 = vld [vmem:[%s1] sm:$0xf]
  %v71 = vld [vmem:[%s1 + $0x4] sm:$0xf]
  %v72 = vld [vmem:[%s1 + $0x8] sm:$0xf]
  %v73 = vld [vmem:[%s1 + $0xc] sm:$0xf]
  %v74 = vld [vmem:[%s1 + $0x10] sm:$0xf]
  %v75 = vld [vmem:[%s1 + $0x14] sm:$0xf]
  %v76 = vld [vmem:[%s1 + $0x18] sm:$0xf]
  %v77 = vld [vmem:[%s1 + $0x1c] sm:$0xf]
  %v78 = vld [vmem:[%s1 + $0x20] sm:$0xf]
  %v79 = vld [vmem:[%s1 + $0x24] sm:$0xf]
  %v80 = vld [vmem:[%s1 + $0x28] sm:$0xf]
  %v81 = vld [vmem:[%s1 + $0x2c] sm:$0xf]
  %v82 = vld [vmem:[%s1 + $0x30] sm:$0xf]
  %v83 = vld [vmem:[%s1 + $0x34] sm:$0xf]
  %v84 = vld [vmem:[%s1 + $0x38] sm:$0xf]
  %v85 = vld [vmem:[%s1 + $0x3c] sm:$0xf]
  %v102 = vunpack.c.l.b16 %v54
  %v103 = vunpack.c.l.b16 %v55
  %v104 = vunpack.c.l.b16 %v56
  %v105 = vunpack.c.l.b16 %v57
  %v106 = vunpack.c.l.b16 %v58
  %v107 = vunpack.c.l.b16 %v59
  %v108 = vunpack.c.l.b16 %v60
  %v109 = vunpack.c.l.b16 %v61
  %v110 = vunpack.c.l.b16 %v62
  %v111 = vunpack.c.l.b16 %v63
  %v112 = vunpack.c.l.b16 %v64
  %v113 = vunpack.c.l.b16 %v65
  %v114 = vunpack.c.l.b16 %v66
  %v115 = vunpack.c.l.b16 %v67
  %v116 = vunpack.c.l.b16 %v68
  %v117 = vunpack.c.l.b16 %v69
  %v118 = vpack.c.b16 %v103, %v102
  %v119 = vpack.c.b16 %v105, %v104
  %v120 = vpack.c.b16 %v107, %v106
  %v121 = vpack.c.b16 %v109, %v108
  %v122 = vpack.c.b16 %v111, %v110
  %v123 = vpack.c.b16 %v113, %v112
  %v124 = vpack.c.b16 %v115, %v114
  %v125 = vpack.c.b16 %v117, %v116
  %v150 = vunpack.c.l.b16 %v70
  %v151 = vunpack.c.l.b16 %v71
  %v152 = vunpack.c.l.b16 %v72
  %v153 = vunpack.c.l.b16 %v73
  %v154 = vunpack.c.l.b16 %v74
  %v155 = vunpack.c.l.b16 %v75
  %v156 = vunpack.c.l.b16 %v76
  %v157 = vunpack.c.l.b16 %v77
  %v158 = vunpack.c.l.b16 %v78
  %v159 = vunpack.c.l.b16 %v79
  %v160 = vunpack.c.l.b16 %v80
  %v161 = vunpack.c.l.b16 %v81
  %v162 = vunpack.c.l.b16 %v82
  %v163 = vunpack.c.l.b16 %v83
  %v164 = vunpack.c.l.b16 %v84
  %v165 = vunpack.c.l.b16 %v85
  %v166 = vpack.c.b16 %v151, %v150
  %v167 = vpack.c.b16 %v153, %v152
  %v168 = vpack.c.b16 %v155, %v154
  %v169 = vpack.c.b16 %v157, %v156
  %v170 = vpack.c.b16 %v159, %v158
  %v171 = vpack.c.b16 %v161, %v160
  %v172 = vpack.c.b16 %v163, %v162
  %v173 = vpack.c.b16 %v165, %v164
  %182 = vmatprep.subr.bf16.mxu0 0
  %183 = vmatpush1.bf16.msra.mxu0 %v173
  %184 = vmatprep.subr.bf16.mxu0 0
  %185 = vmatpush1.bf16.msra.mxu0 %v172
  %186 = vmatprep.subr.bf16.mxu0 0
  %187 = vmatpush1.bf16.msra.mxu0 %v171
  %188 = vmatprep.subr.bf16.mxu0 0
  %189 = vmatpush1.bf16.msra.mxu0 %v170
  %190 = vmatprep.subr.bf16.mxu0 0
  %191 = vmatpush1.bf16.msra.mxu0 %v169
  %192 = vmatprep.subr.bf16.mxu0 0
  %193 = vmatpush1.bf16.msra.mxu0 %v168
  %194 = vmatprep.subr.bf16.mxu0 0
  %195 = vmatpush1.bf16.msra.mxu0 %v167
  %196 = vmatprep.subr.bf16.mxu0 0
  %197 = vmatpush1.bf16.msra.mxu0 %v166
  %198 = vmatprep.subr.bf16.mxu0 0
  %199 = vmatpush2.bf16.msra.mxu0 0
  %200 = vmatprep.subr.bf16.mxu0 0
  %201 = vmatpush2.bf16.msra.mxu0 0
  %202 = vmatprep.subr.bf16.mxu0 0
  %203 = vmatpush2.bf16.msra.mxu0 0
  %204 = vmatprep.subr.bf16.mxu0 0
  %205 = vmatpush2.bf16.msra.mxu0 0
  %206 = vmatprep.subr.bf16.mxu0 0
  %207 = vmatpush2.bf16.msra.mxu0 0
  %208 = vmatprep.subr.bf16.mxu0 0
  %209 = vmatpush2.bf16.msra.mxu0 0
  %210 = vmatprep.subr.bf16.mxu0 0
  %211 = vmatpush2.bf16.msra.mxu0 0
  %212 = vmatprep.subr.bf16.mxu0 0
  %213 = vmatpush2.bf16.msra.mxu0 0
  %214 = vmatprep.mubr.bf16.mxu0 0
  %215 = vmatmul.mubr.bf16.gmra.mxu0 %v118
  %v216 = vpop.f32.mrf.mxu0
  %v217 = vadd.f32 0.0, %v216
  %v218 = vpop.f32.mrf.mxu0
  %v219 = vpop.f32.mrf.mxu0
  %v220 = vadd.f32 0.0, %v219
  %v221 = vpop.f32.mrf.mxu0
  %222 = vmatprep.mubr.bf16.mxu0 0
  %223 = vmatmul.mubr.bf16.gmra.mxu0 %v119
  %v224 = vpop.f32.mrf.mxu0
  %v225 = vadd.f32 0.0, %v224
  %v226 = vpop.f32.mrf.mxu0
  %v227 = vpop.f32.mrf.mxu0
  %v228 = vadd.f32 0.0, %v227
  %v229 = vpop.f32.mrf.mxu0
  %230 = vmatprep.mubr.bf16.mxu0 0
  %231 = vmatmul.mubr.bf16.gmra.mxu0 %v120
  %v232 = vpop.f32.mrf.mxu0
  %v233 = vadd.f32 0.0, %v232
  %v234 = vpop.f32.mrf.mxu0
  %v235 = vpop.f32.mrf.mxu0
  %v236 = vadd.f32 0.0, %v235
  %v237 = vpop.f32.mrf.mxu0
  %238 = vmatprep.mubr.bf16.mxu0 0
  %239 = vmatmul.mubr.bf16.gmra.mxu0 %v121
  %v240 = vpop.f32.mrf.mxu0
  %v241 = vadd.f32 0.0, %v240
  %v242 = vpop.f32.mrf.mxu0
  %v243 = vpop.f32.mrf.mxu0
  %v244 = vadd.f32 0.0, %v243
  %v245 = vpop.f32.mrf.mxu0
  %246 = vmatprep.mubr.bf16.mxu0 0
  %247 = vmatmul.mubr.bf16.gmra.mxu0 %v122
  %v248 = vpop.f32.mrf.mxu0
  %v249 = vadd.f32 0.0, %v248
  %v250 = vpop.f32.mrf.mxu0
  %v251 = vpop.f32.mrf.mxu0
  %v252 = vadd.f32 0.0, %v251
  %v253 = vpop.f32.mrf.mxu0
  %254 = vmatprep.mubr.bf16.mxu0 0
  %255 = vmatmul.mubr.bf16.gmra.mxu0 %v123
  %v256 = vpop.f32.mrf.mxu0
  %v257 = vadd.f32 0.0, %v256
  %v258 = vpop.f32.mrf.mxu0
  %v259 = vpop.f32.mrf.mxu0
  %v260 = vadd.f32 0.0, %v259
  %v261 = vpop.f32.mrf.mxu0
  %262 = vmatprep.mubr.bf16.mxu0 0
  %263 = vmatmul.mubr.bf16.gmra.mxu0 %v124
  %v264 = vpop.f32.mrf.mxu0
  %v265 = vadd.f32 0.0, %v264
  %v266 = vpop.f32.mrf.mxu0
  %v267 = vpop.f32.mrf.mxu0
  %v268 = vadd.f32 0.0, %v267
  %v269 = vpop.f32.mrf.mxu0
  %270 = vmatprep.mubr.bf16.mxu0 0
  %271 = vmatmul.mubr.bf16.gmra.mxu0 %v125
  %v272 = vpop.f32.mrf.mxu0
  %v273 = vadd.f32 0.0, %v272
  %v274 = vpop.f32.mrf.mxu0
  %v275 = vpop.f32.mrf.mxu0
  %v276 = vadd.f32 0.0, %v275
  %v277 = vpop.f32.mrf.mxu0
  %278 = vdwg.mxu0
  %v279 = vadd.f32 %v38, %v217
  %v280 = vadd.f32 %v39, %v220
  %v281 = vadd.f32 %v40, %v225
  %v282 = vadd.f32 %v41, %v228
  %v283 = vadd.f32 %v42, %v233
  %v284 = vadd.f32 %v43, %v236
  %v285 = vadd.f32 %v44, %v241
  %v286 = vadd.f32 %v45, %v244
  %v287 = vadd.f32 %v46, %v249
  %v288 = vadd.f32 %v47, %v252
  %v289 = vadd.f32 %v48, %v257
  %v290 = vadd.f32 %v49, %v260
  %v291 = vadd.f32 %v50, %v265
  %v292 = vadd.f32 %v51, %v268
  %v293 = vadd.f32 %v52, %v273
  %v294 = vadd.f32 %v53, %v276
  %295 = vst [vmem:[#allocation2] sm:$0xff] %v279
  %296 = vst [vmem:[#allocation2 + $0x8] sm:$0xff] %v280
  %297 = vst [vmem:[#allocation2 + $0x10] sm:$0xff] %v281
  %298 = vst [vmem:[#allocation2 + $0x18] sm:$0xff] %v282
  %299 = vst [vmem:[#allocation2 + $0x20] sm:$0xff] %v283
  %300 = vst [vmem:[#allocation2 + $0x28] sm:$0xff] %v284
  %301 = vst [vmem:[#allocation2 + $0x30] sm:$0xff] %v285
  %302 = vst [vmem:[#allocation2 + $0x38] sm:$0xff] %v286
  %303 = vst [vmem:[#allocation2 + $0x40] sm:$0xff] %v287
  %304 = vst [vmem:[#allocation2 + $0x48] sm:$0xff] %v288
  %305 = vst [vmem:[#allocation2 + $0x50] sm:$0xff] %v289
  %306 = vst [vmem:[#allocation2 + $0x58] sm:$0xff] %v290
  %307 = vst [vmem:[#allocation2 + $0x60] sm:$0xff] %v291
  %308 = vst [vmem:[#allocation2 + $0x68] sm:$0xff] %v292
  %309 = vst [vmem:[#allocation2 + $0x70] sm:$0xff] %v293
  %310 = vst [vmem:[#allocation2 + $0x78] sm:$0xff] %v294
  // Predicated region
  $region22: #{resnet_forward.9} parent=0 // pred_check
    %p311 = pneg %p18
  $region23: #{resnet_forward.9} parent=0 // pred_check_branch
    %313 = sbr.rel (%p311) target = $region25
  $region24: #{resnet_forward.9} parent=0 // pred_region
    %v314 = vld [vmem:[#allocation2] sm:$0xff]
    %v315 = vld [vmem:[#allocation2 + $0x8] sm:$0xff]
    %v316 = vld [vmem:[#allocation2 + $0x10] sm:$0xff]
    %v317 = vld [vmem:[#allocation2 + $0x18] sm:$0xff]
    %v318 = vld [vmem:[#allocation2 + $0x20] sm:$0xff]
    %v319 = vld [vmem:[#allocation2 + $0x28] sm:$0xff]
    %v320 = vld [vmem:[#allocation2 + $0x30] sm:$0xff]
    %v321 = vld [vmem:[#allocation2 + $0x38] sm:$0xff]
    %v322 = vld [vmem:[#allocation2 + $0x40] sm:$0xff]
    %v323 = vld [vmem:[#allocation2 + $0x48] sm:$0xff]
    %v324 = vld [vmem:[#allocation2 + $0x50] sm:$0xff]
    %v325 = vld [vmem:[#allocation2 + $0x58] sm:$0xff]
    %v326 = vld [vmem:[#allocation2 + $0x60] sm:$0xff]
    %v327 = vld [vmem:[#allocation2 + $0x68] sm:$0xff]
    %v328 = vld [vmem:[#allocation2 + $0x70] sm:$0xff]
    %v329 = vld [vmem:[#allocation2 + $0x78] sm:$0xff]
    %v330 = vld [vmem:[%s2] sm:$0x1]
    %v332 = vlaneseq
    %v333 = vshrl.u32 %v332, 7
    %v334 = vsub.s32 0, %v333
    %v335 = vrot.slane %v330, %v334
    %v337 = vmul.f32 %v314, %v335
    %v338 = vmul.f32 %v315, %v335
    %v339 = vmul.f32 %v316, %v335
    %v340 = vmul.f32 %v317, %v335
    %v341 = vmul.f32 %v318, %v335
    %v342 = vmul.f32 %v319, %v335
    %v343 = vmul.f32 %v320, %v335
    %v344 = vmul.f32 %v321, %v335
    %v345 = vmul.f32 %v322, %v335
    %v346 = vmul.f32 %v323, %v335
    %v347 = vmul.f32 %v324, %v335
    %v348 = vmul.f32 %v325, %v335
    %v349 = vmul.f32 %v326, %v335
    %v350 = vmul.f32 %v327, %v335
    %v351 = vmul.f32 %v328, %v335
    %v352 = vmul.f32 %v329, %v335
    %v353 = vld [vmem:[%s3] sm:$0x1]
    %v355 = vlaneseq
    %v356 = vshrl.u32 %v355, 7
    %v357 = vsub.s32 0, %v356
    %v358 = vrot.slane %v353, %v357
    %v360 = vadd.f32 %v337, %v358
    %v361 = vadd.f32 %v338, %v358
    %v362 = vadd.f32 %v339, %v358
    %v363 = vadd.f32 %v340, %v358
    %v364 = vadd.f32 %v341, %v358
    %v365 = vadd.f32 %v342, %v358
    %v366 = vadd.f32 %v343, %v358
    %v367 = vadd.f32 %v344, %v358
    %v368 = vadd.f32 %v345, %v358
    %v369 = vadd.f32 %v346, %v358
    %v370 = vadd.f32 %v347, %v358
    %v371 = vadd.f32 %v348, %v358
    %v372 = vadd.f32 %v349, %v358
    %v373 = vadd.f32 %v350, %v358
    %v374 = vadd.f32 %v351, %v358
    %v375 = vadd.f32 %v352, %v358
    %v376 = vmax.f32 %v360, 0.0
    %v377 = vmax.f32 %v361, 0.0
    %v378 = vmax.f32 %v362, 0.0
    %v379 = vmax.f32 %v363, 0.0
    %v380 = vmax.f32 %v364, 0.0
    %v381 = vmax.f32 %v365, 0.0
    %v382 = vmax.f32 %v366, 0.0
    %v383 = vmax.f32 %v367, 0.0
    %v384 = vmax.f32 %v368, 0.0
    %v385 = vmax.f32 %v369, 0.0
    %v386 = vmax.f32 %v370, 0.0
    %v387 = vmax.f32 %v371, 0.0
    %v388 = vmax.f32 %v372, 0.0
    %v389 = vmax.f32 %v373, 0.0
    %v390 = vmax.f32 %v374, 0.0
    %v391 = vmax.f32 %v375, 0.0
    %v392 = vpack.c.bf16 %v377, %v376
    %v393 = vpack.c.bf16 %v379, %v378
    %v394 = vpack.c.bf16 %v381, %v380
    %v395 = vpack.c.bf16 %v383, %v382
    %v396 = vpack.c.bf16 %v385, %v384
    %v397 = vpack.c.bf16 %v387, %v386
    %v398 = vpack.c.bf16 %v389, %v388
    %v399 = vpack.c.bf16 %v391, %v390
    %v408 = vunpack.c.l.b16 %v392
    %v409 = vunpack.c.h.b16 %v392
    %v410 = vunpack.c.l.b16 %v393
    %v411 = vunpack.c.h.b16 %v393
    %v412 = vunpack.c.l.b16 %v394
    %v413 = vunpack.c.h.b16 %v394
    %v414 = vunpack.c.l.b16 %v395
    %v415 = vunpack.c.h.b16 %v395
    %v416 = vunpack.c.l.b16 %v396
    %v417 = vunpack.c.h.b16 %v396
    %v418 = vunpack.c.l.b16 %v397
    %v419 = vunpack.c.h.b16 %v397
    %v420 = vunpack.c.l.b16 %v398
    %v421 = vunpack.c.h.b16 %v398
    %v422 = vunpack.c.l.b16 %v399
    %v423 = vunpack.c.h.b16 %v399
    %v424 = vpack.c.b16 %v408, %v408
    %v425 = vpack.c.b16 %v409, %v409
    %v426 = vpack.c.b16 %v410, %v410
    %v427 = vpack.c.b16 %v411, %v411
    %v428 = vpack.c.b16 %v412, %v412
    %v429 = vpack.c.b16 %v413, %v413
    %v430 = vpack.c.b16 %v414, %v414
    %v431 = vpack.c.b16 %v415, %v415
    %v432 = vpack.c.b16 %v416, %v416
    %v433 = vpack.c.b16 %v417, %v417
    %v434 = vpack.c.b16 %v418, %v418
    %v435 = vpack.c.b16 %v419, %v419
    %v436 = vpack.c.b16 %v420, %v420
    %v437 = vpack.c.b16 %v421, %v421
    %v438 = vpack.c.b16 %v422, %v422
    %v439 = vpack.c.b16 %v423, %v423
    %456 = vst [vmem:[%s4] sm:$0xf] %v424
    %457 = vst [vmem:[%s4 + $0x4] sm:$0xf] %v425
    %458 = vst [vmem:[%s4 + $0x8] sm:$0xf] %v426
    %459 = vst [vmem:[%s4 + $0xc] sm:$0xf] %v427
    %460 = vst [vmem:[%s4 + $0x10] sm:$0xf] %v428
    %461 = vst [vmem:[%s4 + $0x14] sm:$0xf] %v429
    %462 = vst [vmem:[%s4 + $0x18] sm:$0xf] %v430
    %463 = vst [vmem:[%s4 + $0x1c] sm:$0xf] %v431
    %464 = vst [vmem:[%s4 + $0x20] sm:$0xf] %v432
    %465 = vst [vmem:[%s4 + $0x24] sm:$0xf] %v433
    %466 = vst [vmem:[%s4 + $0x28] sm:$0xf] %v434
    %467 = vst [vmem:[%s4 + $0x2c] sm:$0xf] %v435
    %468 = vst [vmem:[%s4 + $0x30] sm:$0xf] %v436
    %469 = vst [vmem:[%s4 + $0x34] sm:$0xf] %v437
    %470 = vst [vmem:[%s4 + $0x38] sm:$0xf] %v438
    %471 = vst [vmem:[%s4 + $0x3c] sm:$0xf] %v439
  $region25: #{resnet_forward.9} parent=0 // pred_fallthru
    _
  // Predicated region
  $region26: #{resnet_forward.9} parent=0 // pred_check
    _
  $region27: #{resnet_forward.9} parent=0 // pred_check_branch
    %473 = sbr.rel (0) target = $region29
  $region28: #{resnet_forward.9} parent=0 // pred_region
    _
  $region29: #{resnet_forward.9} parent=0 // pred_fallthru
    _
  // Predicated region
  $region30: #{resnet_forward.9} parent=0 // pred_check
    _
  $region31: #{resnet_forward.9} parent=0 // pred_check_branch
    %475 = sbr.rel (0) target = $region33
  $region32: #{resnet_forward.9} parent=0 // pred_region
    _
  $region33: #{resnet_forward.9} parent=0 // pred_fallthru
    _

// kernel: resnet_forward.8
$region0: #{resnet_forward.8}
  #allocation0 [shape = 'u32[]', space=smem, size = 0x4, offset = 0x4, fixed_abs, tag = 'smem constant byte address 0x4 - core index']
  #allocation1 [shape = 'u32[144,128]{1,0:T(1,128)}', space=vmem, size = 0x12000, scoped, tag = 'internal scratch']
  #allocation2 [shape = 'f32[128,128]{1,0:T(8,128)}', space=vmem, size = 0x10000, scoped, tag = 'scratch operand']
  %s0 = inlined_call_operand.vmem [shape: bf16[128,256], index: 0, kind: input, shape index: {}]
  %s1 = inlined_call_operand.vmem [shape: bf16[256,128], index: 1, kind: input, shape index: {}]
  %s2 = inlined_call_operand.vmem [shape: f32[1,128], index: 2, kind: input, shape index: {}]
  %s3 = inlined_call_operand.vmem [shape: f32[1,128], index: 3, kind: input, shape index: {}]
  %s4 = inlined_call_operand.vmem [shape: bf16[128,128], index: 4, kind: output, shape index: {}]
  %s5 = sld [smem:[#allocation0]]
  $region34: #{resnet_forward.8} parent=0
    _
  %s7 = ssub.s32 1, %s5
  %s8 = scalar_select 0, %s7, %s5
  // Predicated region
  $region2: #{resnet_forward.8} parent=0 // pred_check
    _
  $region3: #{resnet_forward.8} parent=0 // pred_check_branch
    %10 = sbr.rel (0) target = $region5
  $region4: #{resnet_forward.8} parent=0 // pred_region
    _
  $region5: #{resnet_forward.8} parent=0 // pred_fallthru
    _
  // Predicated region
  $region6: #{resnet_forward.8} parent=0 // pred_check
    _
  $region7: #{resnet_forward.8} parent=0 // pred_check_branch
    %12 = sbr.rel (0) target = $region9
  $region8: #{resnet_forward.8} parent=0 // pred_region
    _
  $region9: #{resnet_forward.8} parent=0 // pred_fallthru
    _
  // Predicated region
  $region10: #{resnet_forward.8} parent=0 // pred_check
    _
  $region11: #{resnet_forward.8} parent=0 // pred_check_branch
    %14 = sbr.rel (0) target = $region13
  $region12: #{resnet_forward.8} parent=0 // pred_region
    _
  $region13: #{resnet_forward.8} parent=0 // pred_fallthru
    _
  // Predicated region
  $region14: #{resnet_forward.8} parent=0 // pred_check
    _
  $region15: #{resnet_forward.8} parent=0 // pred_check_branch
    %16 = sbr.rel (0) target = $region17
  $region16: #{resnet_forward.8} parent=0 // pred_region
    _
  $region17: #{resnet_forward.8} parent=0 // pred_fallthru
    _
  %p18 = scmp.eq.s32.totalorder 0, 0
  // Predicated region
  $region18: #{resnet_forward.8} parent=0 // pred_check
    %p19 = pneg %p18
  $region19: #{resnet_forward.8} parent=0 // pred_check_branch
    %21 = sbr.rel (%p19) target = $region21
  $region20: #{resnet_forward.8} parent=0 // pred_region
    %22 = vst [vmem:[#allocation2] sm:$0xff] 0.0
    %23 = vst [vmem:[#allocation2 + $0x8] sm:$0xff] 0.0
    %24 = vst [vmem:[#allocation2 + $0x10] sm:$0xff] 0.0
    %25 = vst [vmem:[#allocation2 + $0x18] sm:$0xff] 0.0
    %26 = vst [vmem:[#allocation2 + $0x20] sm:$0xff] 0.0
    %27 = vst [vmem:[#allocation2 + $0x28] sm:$0xff] 0.0
    %28 = vst [vmem:[#allocation2 + $0x30] sm:$0xff] 0.0
    %29 = vst [vmem:[#allocation2 + $0x38] sm:$0xff] 0.0
    %30 = vst [vmem:[#allocation2 + $0x40] sm:$0xff] 0.0
    %31 = vst [vmem:[#allocation2 + $0x48] sm:$0xff] 0.0
    %32 = vst [vmem:[#allocation2 + $0x50] sm:$0xff] 0.0
    %33 = vst [vmem:[#allocation2 + $0x58] sm:$0xff] 0.0
    %34 = vst [vmem:[#allocation2 + $0x60] sm:$0xff] 0.0
    %35 = vst [vmem:[#allocation2 + $0x68] sm:$0xff] 0.0
    %36 = vst [vmem:[#allocation2 + $0x70] sm:$0xff] 0.0
    %37 = vst [vmem:[#allocation2 + $0x78] sm:$0xff] 0.0
  $region21: #{resnet_forward.8} parent=0 // pred_fallthru
    _
  %v38 = vld [vmem:[#allocation2] sm:$0xff]
  %v39 = vld [vmem:[#allocation2 + $0x8] sm:$0xff]
  %v40 = vld [vmem:[#allocation2 + $0x10] sm:$0xff]
  %v41 = vld [vmem:[#allocation2 + $0x18] sm:$0xff]
  %v42 = vld [vmem:[#allocation2 + $0x20] sm:$0xff]
  %v43 = vld [vmem:[#allocation2 + $0x28] sm:$0xff]
  %v44 = vld [vmem:[#allocation2 + $0x30] sm:$0xff]
  %v45 = vld [vmem:[#allocation2 + $0x38] sm:$0xff]
  %v46 = vld [vmem:[#allocation2 + $0x40] sm:$0xff]
  %v47 = vld [vmem:[#allocation2 + $0x48] sm:$0xff]
  %v48 = vld [vmem:[#allocation2 + $0x50] sm:$0xff]
  %v49 = vld [vmem:[#allocation2 + $0x58] sm:$0xff]
  %v50 = vld [vmem:[#allocation2 + $0x60] sm:$0xff]
  %v51 = vld [vmem:[#allocation2 + $0x68] sm:$0xff]
  %v52 = vld [vmem:[#allocation2 + $0x70] sm:$0xff]
  %v53 = vld [vmem:[#allocation2 + $0x78] sm:$0xff]
  %v54 = vld [vmem:[%s0] sm:$0xff]
  %v55 = vld [vmem:[%s0 + $0x8] sm:$0xff]
  %v56 = vld [vmem:[%s0 + $0x10] sm:$0xff]
  %v57 = vld [vmem:[%s0 + $0x18] sm:$0xff]
  %v58 = vld [vmem:[%s0 + $0x20] sm:$0xff]
  %v59 = vld [vmem:[%s0 + $0x28] sm:$0xff]
  %v60 = vld [vmem:[%s0 + $0x30] sm:$0xff]
  %v61 = vld [vmem:[%s0 + $0x38] sm:$0xff]
  %v62 = vld [vmem:[%s0 + $0x40] sm:$0xff]
  %v63 = vld [vmem:[%s0 + $0x48] sm:$0xff]
  %v64 = vld [vmem:[%s0 + $0x50] sm:$0xff]
  %v65 = vld [vmem:[%s0 + $0x58] sm:$0xff]
  %v66 = vld [vmem:[%s0 + $0x60] sm:$0xff]
  %v67 = vld [vmem:[%s0 + $0x68] sm:$0xff]
  %v68 = vld [vmem:[%s0 + $0x70] sm:$0xff]
  %v69 = vld [vmem:[%s0 + $0x78] sm:$0xff]
  %v70 = vld [vmem:[%s1] sm:$0xf]
  %v71 = vld [vmem:[%s1 + $0x4] sm:$0xf]
  %v72 = vld [vmem:[%s1 + $0x8] sm:$0xf]
  %v73 = vld [vmem:[%s1 + $0xc] sm:$0xf]
  %v74 = vld [vmem:[%s1 + $0x10] sm:$0xf]
  %v75 = vld [vmem:[%s1 + $0x14] sm:$0xf]
  %v76 = vld [vmem:[%s1 + $0x18] sm:$0xf]
  %v77 = vld [vmem:[%s1 + $0x1c] sm:$0xf]
  %v78 = vld [vmem:[%s1 + $0x20] sm:$0xf]
  %v79 = vld [vmem:[%s1 + $0x24] sm:$0xf]
  %v80 = vld [vmem:[%s1 + $0x28] sm:$0xf]
  %v81 = vld [vmem:[%s1 + $0x2c] sm:$0xf]
  %v82 = vld [vmem:[%s1 + $0x30] sm:$0xf]
  %v83 = vld [vmem:[%s1 + $0x34] sm:$0xf]
  %v84 = vld [vmem:[%s1 + $0x38] sm:$0xf]
  %v85 = vld [vmem:[%s1 + $0x3c] sm:$0xf]
  %v86 = vld [vmem:[%s1 + $0x40] sm:$0xf]
  %v87 = vld [vmem:[%s1 + $0x44] sm:$0xf]
  %v88 = vld [vmem:[%s1 + $0x48] sm:$0xf]
  %v89 = vld [vmem:[%s1 + $0x4c] sm:$0xf]
  %v90 = vld [vmem:[%s1 + $0x50] sm:$0xf]
  %v91 = vld [vmem:[%s1 + $0x54] sm:$0xf]
  %v92 = vld [vmem:[%s1 + $0x58] sm:$0xf]
  %v93 = vld [vmem:[%s1 + $0x5c] sm:$0xf]
  %v94 = vld [vmem:[%s1 + $0x60] sm:$0xf]
  %v95 = vld [vmem:[%s1 + $0x64] sm:$0xf]
  %v96 = vld [vmem:[%s1 + $0x68] sm:$0xf]
  %v97 = vld [vmem:[%s1 + $0x6c] sm:$0xf]
  %v98 = vld [vmem:[%s1 + $0x70] sm:$0xf]
  %v99 = vld [vmem:[%s1 + $0x74] sm:$0xf]
  %v100 = vld [vmem:[%s1 + $0x78] sm:$0xf]
  %v101 = vld [vmem:[%s1 + $0x7c] sm:$0xf]
  %v118 = vunpack.c.l.b16 %v54
  %v119 = vunpack.c.h.b16 %v54
  %v120 = vunpack.c.l.b16 %v55
  %v121 = vunpack.c.h.b16 %v55
  %v122 = vunpack.c.l.b16 %v56
  %v123 = vunpack.c.h.b16 %v56
  %v124 = vunpack.c.l.b16 %v57
  %v125 = vunpack.c.h.b16 %v57
  %v126 = vunpack.c.l.b16 %v58
  %v127 = vunpack.c.h.b16 %v58
  %v128 = vunpack.c.l.b16 %v59
  %v129 = vunpack.c.h.b16 %v59
  %v130 = vunpack.c.l.b16 %v60
  %v131 = vunpack.c.h.b16 %v60
  %v132 = vunpack.c.l.b16 %v61
  %v133 = vunpack.c.h.b16 %v61
  %v134 = vunpack.c.l.b16 %v62
  %v135 = vunpack.c.h.b16 %v62
  %v136 = vunpack.c.l.b16 %v63
  %v137 = vunpack.c.h.b16 %v63
  %v138 = vunpack.c.l.b16 %v64
  %v139 = vunpack.c.h.b16 %v64
  %v140 = vunpack.c.l.b16 %v65
  %v141 = vunpack.c.h.b16 %v65
  %v142 = vunpack.c.l.b16 %v66
  %v143 = vunpack.c.h.b16 %v66
  %v144 = vunpack.c.l.b16 %v67
  %v145 = vunpack.c.h.b16 %v67
  %v146 = vunpack.c.l.b16 %v68
  %v147 = vunpack.c.h.b16 %v68
  %v148 = vunpack.c.l.b16 %v69
  %v149 = vunpack.c.h.b16 %v69
  %v150 = vpack.c.b16 %v120, %v118
  %v151 = vpack.c.b16 %v121, %v119
  %v152 = vpack.c.b16 %v124, %v122
  %v153 = vpack.c.b16 %v125, %v123
  %v154 = vpack.c.b16 %v128, %v126
  %v155 = vpack.c.b16 %v129, %v127
  %v156 = vpack.c.b16 %v132, %v130
  %v157 = vpack.c.b16 %v133, %v131
  %v158 = vpack.c.b16 %v136, %v134
  %v159 = vpack.c.b16 %v137, %v135
  %v160 = vpack.c.b16 %v140, %v138
  %v161 = vpack.c.b16 %v141, %v139
  %v162 = vpack.c.b16 %v144, %v142
  %v163 = vpack.c.b16 %v145, %v143
  %v164 = vpack.c.b16 %v148, %v146
  %v165 = vpack.c.b16 %v149, %v147
  %v214 = vunpack.c.l.b16 %v70
  %v215 = vunpack.c.l.b16 %v71
  %v216 = vunpack.c.l.b16 %v72
  %v217 = vunpack.c.l.b16 %v73
  %v218 = vunpack.c.l.b16 %v74
  %v219 = vunpack.c.l.b16 %v75
  %v220 = vunpack.c.l.b16 %v76
  %v221 = vunpack.c.l.b16 %v77
  %v222 = vunpack.c.l.b16 %v78
  %v223 = vunpack.c.l.b16 %v79
  %v224 = vunpack.c.l.b16 %v80
  %v225 = vunpack.c.l.b16 %v81
  %v226 = vunpack.c.l.b16 %v82
  %v227 = vunpack.c.l.b16 %v83
  %v228 = vunpack.c.l.b16 %v84
  %v229 = vunpack.c.l.b16 %v85
  %v230 = vunpack.c.l.b16 %v86
  %v231 = vunpack.c.l.b16 %v87
  %v232 = vunpack.c.l.b16 %v88
  %v233 = vunpack.c.l.b16 %v89
  %v234 = vunpack.c.l.b16 %v90
  %v235 = vunpack.c.l.b16 %v91
  %v236 = vunpack.c.l.b16 %v92
  %v237 = vunpack.c.l.b16 %v93
  %v238 = vunpack.c.l.b16 %v94
  %v239 = vunpack.c.l.b16 %v95
  %v240 = vunpack.c.l.b16 %v96
  %v241 = vunpack.c.l.b16 %v97
  %v242 = vunpack.c.l.b16 %v98
  %v243 = vunpack.c.l.b16 %v99
  %v244 = vunpack.c.l.b16 %v100
  %v245 = vunpack.c.l.b16 %v101
  %v246 = vpack.c.b16 %v215, %v214
  %v247 = vpack.c.b16 %v217, %v216
  %v248 = vpack.c.b16 %v219, %v218
  %v249 = vpack.c.b16 %v221, %v220
  %v250 = vpack.c.b16 %v223, %v222
  %v251 = vpack.c.b16 %v225, %v224
  %v252 = vpack.c.b16 %v227, %v226
  %v253 = vpack.c.b16 %v229, %v228
  %v254 = vpack.c.b16 %v231, %v230
  %v255 = vpack.c.b16 %v233, %v232
  %v256 = vpack.c.b16 %v235, %v234
  %v257 = vpack.c.b16 %v237, %v236
  %v258 = vpack.c.b16 %v239, %v238
  %v259 = vpack.c.b16 %v241, %v240
  %v260 = vpack.c.b16 %v243, %v242
  %v261 = vpack.c.b16 %v245, %v244
  %278 = vmatprep.subr.bf16.mxu0 0
  %279 = vmatpush1.bf16.msra.mxu0 %v253
  %280 = vmatprep.subr.bf16.mxu0 0
  %281 = vmatpush1.bf16.msra.mxu0 %v252
  %282 = vmatprep.subr.bf16.mxu0 0
  %283 = vmatpush1.bf16.msra.mxu0 %v251
  %284 = vmatprep.subr.bf16.mxu0 0
  %285 = vmatpush1.bf16.msra.mxu0 %v250
  %286 = vmatprep.subr.bf16.mxu0 0
  %287 = vmatpush1.bf16.msra.mxu0 %v249
  %288 = vmatprep.subr.bf16.mxu0 0
  %289 = vmatpush1.bf16.msra.mxu0 %v248
  %290 = vmatprep.subr.bf16.mxu0 0
  %291 = vmatpush1.bf16.msra.mxu0 %v247
  %292 = vmatprep.subr.bf16.mxu0 0
  %293 = vmatpush1.bf16.msra.mxu0 %v246
  %294 = vmatprep.subr.bf16.mxu0 0
  %295 = vmatpush2.bf16.msra.mxu0 %v261
  %296 = vmatprep.subr.bf16.mxu0 0
  %297 = vmatpush2.bf16.msra.mxu0 %v260
  %298 = vmatprep.subr.bf16.mxu0 0
  %299 = vmatpush2.bf16.msra.mxu0 %v259
  %300 = vmatprep.subr.bf16.mxu0 0
  %301 = vmatpush2.bf16.msra.mxu0 %v258
  %302 = vmatprep.subr.bf16.mxu0 0
  %303 = vmatpush2.bf16.msra.mxu0 %v257
  %304 = vmatprep.subr.bf16.mxu0 0
  %305 = vmatpush2.bf16.msra.mxu0 %v256
  %306 = vmatprep.subr.bf16.mxu0 0
  %307 = vmatpush2.bf16.msra.mxu0 %v255
  %308 = vmatprep.subr.bf16.mxu0 0
  %309 = vmatpush2.bf16.msra.mxu0 %v254
  %310 = vmatprep.mubr.bf16.mxu0 %v151
  %311 = vmatmul.mubr.bf16.gmra.mxu0 %v150
  %v312 = vpop.f32.mrf.mxu0
  %v313 = vadd.f32 0.0, %v312
  %v314 = vpop.f32.mrf.mxu0
  %v315 = vpop.f32.mrf.mxu0
  %v316 = vadd.f32 0.0, %v315
  %v317 = vpop.f32.mrf.mxu0
  %318 = vmatprep.mubr.bf16.mxu0 %v153
  %319 = vmatmul.mubr.bf16.gmra.mxu0 %v152
  %v320 = vpop.f32.mrf.mxu0
  %v321 = vadd.f32 0.0, %v320
  %v322 = vpop.f32.mrf.mxu0
  %v323 = vpop.f32.mrf.mxu0
  %v324 = vadd.f32 0.0, %v323
  %v325 = vpop.f32.mrf.mxu0
  %326 = vmatprep.mubr.bf16.mxu0 %v155
  %327 = vmatmul.mubr.bf16.gmra.mxu0 %v154
  %v328 = vpop.f32.mrf.mxu0
  %v329 = vadd.f32 0.0, %v328
  %v330 = vpop.f32.mrf.mxu0
  %v331 = vpop.f32.mrf.mxu0
  %v332 = vadd.f32 0.0, %v331
  %v333 = vpop.f32.mrf.mxu0
  %334 = vmatprep.mubr.bf16.mxu0 %v157
  %335 = vmatmul.mubr.bf16.gmra.mxu0 %v156
  %v336 = vpop.f32.mrf.mxu0
  %v337 = vadd.f32 0.0, %v336
  %v338 = vpop.f32.mrf.mxu0
  %v339 = vpop.f32.mrf.mxu0
  %v340 = vadd.f32 0.0, %v339
  %v341 = vpop.f32.mrf.mxu0
  %342 = vmatprep.mubr.bf16.mxu0 %v159
  %343 = vmatmul.mubr.bf16.gmra.mxu0 %v158
  %v344 = vpop.f32.mrf.mxu0
  %v345 = vadd.f32 0.0, %v344
  %v346 = vpop.f32.mrf.mxu0
  %v347 = vpop.f32.mrf.mxu0
  %v348 = vadd.f32 0.0, %v347
  %v349 = vpop.f32.mrf.mxu0
  %350 = vmatprep.mubr.bf16.mxu0 %v161
  %351 = vmatmul.mubr.bf16.gmra.mxu0 %v160
  %v352 = vpop.f32.mrf.mxu0
  %v353 = vadd.f32 0.0, %v352
  %v354 = vpop.f32.mrf.mxu0
  %v355 = vpop.f32.mrf.mxu0
  %v356 = vadd.f32 0.0, %v355
  %v357 = vpop.f32.mrf.mxu0
  %358 = vmatprep.mubr.bf16.mxu0 %v163
  %359 = vmatmul.mubr.bf16.gmra.mxu0 %v162
  %v360 = vpop.f32.mrf.mxu0
  %v361 = vadd.f32 0.0, %v360
  %v362 = vpop.f32.mrf.mxu0
  %v363 = vpop.f32.mrf.mxu0
  %v364 = vadd.f32 0.0, %v363
  %v365 = vpop.f32.mrf.mxu0
  %366 = vmatprep.mubr.bf16.mxu0 %v165
  %367 = vmatmul.mubr.bf16.gmra.mxu0 %v164
  %v368 = vpop.f32.mrf.mxu0
  %v369 = vadd.f32 0.0, %v368
  %v370 = vpop.f32.mrf.mxu0
  %v371 = vpop.f32.mrf.mxu0
  %v372 = vadd.f32 0.0, %v371
  %v373 = vpop.f32.mrf.mxu0
  %374 = vdwg.mxu0
  %v375 = vadd.f32 %v38, %v313
  %v376 = vadd.f32 %v39, %v316
  %v377 = vadd.f32 %v40, %v321
  %v378 = vadd.f32 %v41, %v324
  %v379 = vadd.f32 %v42, %v329
  %v380 = vadd.f32 %v43, %v332
  %v381 = vadd.f32 %v44, %v337
  %v382 = vadd.f32 %v45, %v340
  %v383 = vadd.f32 %v46, %v345
  %v384 = vadd.f32 %v47, %v348
  %v385 = vadd.f32 %v48, %v353
  %v386 = vadd.f32 %v49, %v356
  %v387 = vadd.f32 %v50, %v361
  %v388 = vadd.f32 %v51, %v364
  %v389 = vadd.f32 %v52, %v369
  %v390 = vadd.f32 %v53, %v372
  %391 = vst [vmem:[#allocation2] sm:$0xff] %v375
  %392 = vst [vmem:[#allocation2 + $0x8] sm:$0xff] %v376
  %393 = vst [vmem:[#allocation2 + $0x10] sm:$0xff] %v377
  %394 = vst [vmem:[#allocation2 + $0x18] sm:$0xff] %v378
  %395 = vst [vmem:[#allocation2 + $0x20] sm:$0xff] %v379
  %396 = vst [vmem:[#allocation2 + $0x28] sm:$0xff] %v380
  %397 = vst [vmem:[#allocation2 + $0x30] sm:$0xff] %v381
  %398 = vst [vmem:[#allocation2 + $0x38] sm:$0xff] %v382
  %399 = vst [vmem:[#allocation2 + $0x40] sm:$0xff] %v383
  %400 = vst [vmem:[#allocation2 + $0x48] sm:$0xff] %v384
  %401 = vst [vmem:[#allocation2 + $0x50] sm:$0xff] %v385
  %402 = vst [vmem:[#allocation2 + $0x58] sm:$0xff] %v386
  %403 = vst [vmem:[#allocation2 + $0x60] sm:$0xff] %v387
  %404 = vst [vmem:[#allocation2 + $0x68] sm:$0xff] %v388
  %405 = vst [vmem:[#allocation2 + $0x70] sm:$0xff] %v389
  %406 = vst [vmem:[#allocation2 + $0x78] sm:$0xff] %v390
  // Predicated region
  $region22: #{resnet_forward.8} parent=0 // pred_check
    %p407 = pneg %p18
  $region23: #{resnet_forward.8} parent=0 // pred_check_branch
    %409 = sbr.rel (%p407) target = $region25
  $region24: #{resnet_forward.8} parent=0 // pred_region
    %v410 = vld [vmem:[#allocation2] sm:$0xff]
    %v411 = vld [vmem:[#allocation2 + $0x8] sm:$0xff]
    %v412 = vld [vmem:[#allocation2 + $0x10] sm:$0xff]
    %v413 = vld [vmem:[#allocation2 + $0x18] sm:$0xff]
    %v414 = vld [vmem:[#allocation2 + $0x20] sm:$0xff]
    %v415 = vld [vmem:[#allocation2 + $0x28] sm:$0xff]
    %v416 = vld [vmem:[#allocation2 + $0x30] sm:$0xff]
    %v417 = vld [vmem:[#allocation2 + $0x38] sm:$0xff]
    %v418 = vld [vmem:[#allocation2 + $0x40] sm:$0xff]
    %v419 = vld [vmem:[#allocation2 + $0x48] sm:$0xff]
    %v420 = vld [vmem:[#allocation2 + $0x50] sm:$0xff]
    %v421 = vld [vmem:[#allocation2 + $0x58] sm:$0xff]
    %v422 = vld [vmem:[#allocation2 + $0x60] sm:$0xff]
    %v423 = vld [vmem:[#allocation2 + $0x68] sm:$0xff]
    %v424 = vld [vmem:[#allocation2 + $0x70] sm:$0xff]
    %v425 = vld [vmem:[#allocation2 + $0x78] sm:$0xff]
    %v426 = vld [vmem:[%s2] sm:$0x1]
    %v428 = vlaneseq
    %v429 = vshrl.u32 %v428, 7
    %v430 = vsub.s32 0, %v429
    %v431 = vrot.slane %v426, %v430
    %v433 = vmul.f32 %v410, %v431
    %v434 = vmul.f32 %v411, %v431
    %v435 = vmul.f32 %v412, %v431
    %v436 = vmul.f32 %v413, %v431
    %v437 = vmul.f32 %v414, %v431
    %v438 = vmul.f32 %v415, %v431
    %v439 = vmul.f32 %v416, %v431
    %v440 = vmul.f32 %v417, %v431
    %v441 = vmul.f32 %v418, %v431
    %v442 = vmul.f32 %v419, %v431
    %v443 = vmul.f32 %v420, %v431
    %v444 = vmul.f32 %v421, %v431
    %v445 = vmul.f32 %v422, %v431
    %v446 = vmul.f32 %v423, %v431
    %v447 = vmul.f32 %v424, %v431
    %v448 = vmul.f32 %v425, %v431
    %v449 = vld [vmem:[%s3] sm:$0x1]
    %v451 = vlaneseq
    %v452 = vshrl.u32 %v451, 7
    %v453 = vsub.s32 0, %v452
    %v454 = vrot.slane %v449, %v453
    %v456 = vadd.f32 %v433, %v454
    %v457 = vadd.f32 %v434, %v454
    %v458 = vadd.f32 %v435, %v454
    %v459 = vadd.f32 %v436, %v454
    %v460 = vadd.f32 %v437, %v454
    %v461 = vadd.f32 %v438, %v454
    %v462 = vadd.f32 %v439, %v454
    %v463 = vadd.f32 %v440, %v454
    %v464 = vadd.f32 %v441, %v454
    %v465 = vadd.f32 %v442, %v454
    %v466 = vadd.f32 %v443, %v454
    %v467 = vadd.f32 %v444, %v454
    %v468 = vadd.f32 %v445, %v454
    %v469 = vadd.f32 %v446, %v454
    %v470 = vadd.f32 %v447, %v454
    %v471 = vadd.f32 %v448, %v454
    %v472 = vmax.f32 %v456, 0.0
    %v473 = vmax.f32 %v457, 0.0
    %v474 = vmax.f32 %v458, 0.0
    %v475 = vmax.f32 %v459, 0.0
    %v476 = vmax.f32 %v460, 0.0
    %v477 = vmax.f32 %v461, 0.0
    %v478 = vmax.f32 %v462, 0.0
    %v479 = vmax.f32 %v463, 0.0
    %v480 = vmax.f32 %v464, 0.0
    %v481 = vmax.f32 %v465, 0.0
    %v482 = vmax.f32 %v466, 0.0
    %v483 = vmax.f32 %v467, 0.0
    %v484 = vmax.f32 %v468, 0.0
    %v485 = vmax.f32 %v469, 0.0
    %v486 = vmax.f32 %v470, 0.0
    %v487 = vmax.f32 %v471, 0.0
    %v488 = vpack.c.bf16 %v473, %v472
    %v489 = vpack.c.bf16 %v475, %v474
    %v490 = vpack.c.bf16 %v477, %v476
    %v491 = vpack.c.bf16 %v479, %v478
    %v492 = vpack.c.bf16 %v481, %v480
    %v493 = vpack.c.bf16 %v483, %v482
    %v494 = vpack.c.bf16 %v485, %v484
    %v495 = vpack.c.bf16 %v487, %v486
    %v504 = vunpack.c.l.b16 %v488
    %v505 = vunpack.c.h.b16 %v488
    %v506 = vunpack.c.l.b16 %v489
    %v507 = vunpack.c.h.b16 %v489
    %v508 = vunpack.c.l.b16 %v490
    %v509 = vunpack.c.h.b16 %v490
    %v510 = vunpack.c.l.b16 %v491
    %v511 = vunpack.c.h.b16 %v491
    %v512 = vunpack.c.l.b16 %v492
    %v513 = vunpack.c.h.b16 %v492
    %v514 = vunpack.c.l.b16 %v493
    %v515 = vunpack.c.h.b16 %v493
    %v516 = vunpack.c.l.b16 %v494
    %v517 = vunpack.c.h.b16 %v494
    %v518 = vunpack.c.l.b16 %v495
    %v519 = vunpack.c.h.b16 %v495
    %v520 = vpack.c.b16 %v504, %v504
    %v521 = vpack.c.b16 %v505, %v505
    %v522 = vpack.c.b16 %v506, %v506
    %v523 = vpack.c.b16 %v507, %v507
    %v524 = vpack.c.b16 %v508, %v508
    %v525 = vpack.c.b16 %v509, %v509
    %v526 = vpack.c.b16 %v510, %v510
    %v527 = vpack.c.b16 %v511, %v511
    %v528 = vpack.c.b16 %v512, %v512
    %v529 = vpack.c.b16 %v513, %v513
    %v530 = vpack.c.b16 %v514, %v514
    %v531 = vpack.c.b16 %v515, %v515
    %v532 = vpack.c.b16 %v516, %v516
    %v533 = vpack.c.b16 %v517, %v517
    %v534 = vpack.c.b16 %v518, %v518
    %v535 = vpack.c.b16 %v519, %v519
    %552 = vst [vmem:[%s4] sm:$0xf] %v520
    %553 = vst [vmem:[%s4 + $0x4] sm:$0xf] %v521
    %554 = vst [vmem:[%s4 + $0x8] sm:$0xf] %v522
    %555 = vst [vmem:[%s4 + $0xc] sm:$0xf] %v523
    %556 = vst [vmem:[%s4 + $0x10] sm:$0xf] %v524
    %557 = vst [vmem:[%s4 + $0x14] sm:$0xf] %v525
    %558 = vst [vmem:[%s4 + $0x18] sm:$0xf] %v526
    %559 = vst [vmem:[%s4 + $0x1c] sm:$0xf] %v527
    %560 = vst [vmem:[%s4 + $0x20] sm:$0xf] %v528
    %561 = vst [vmem:[%s4 + $0x24] sm:$0xf] %v529
    %562 = vst [vmem:[%s4 + $0x28] sm:$0xf] %v530
    %563 = vst [vmem:[%s4 + $0x2c] sm:$0xf] %v531
    %564 = vst [vmem:[%s4 + $0x30] sm:$0xf] %v532
    %565 = vst [vmem:[%s4 + $0x34] sm:$0xf] %v533
    %566 = vst [vmem:[%s4 + $0x38] sm:$0xf] %v534
    %567 = vst [vmem:[%s4 + $0x3c] sm:$0xf] %v535
  $region25: #{resnet_forward.8} parent=0 // pred_fallthru
    _
  // Predicated region
  $region26: #{resnet_forward.8} parent=0 // pred_check
    _
  $region27: #{resnet_forward.8} parent=0 // pred_check_branch
    %569 = sbr.rel (0) target = $region29
  $region28: #{resnet_forward.8} parent=0 // pred_region
    _
  $region29: #{resnet_forward.8} parent=0 // pred_fallthru
    _
  // Predicated region
  $region30: #{resnet_forward.8} parent=0 // pred_check
    _
  $region31: #{resnet_forward.8} parent=0 // pred_check_branch
    %571 = sbr.rel (0) target = $region33
  $region32: #{resnet_forward.8} parent=0 // pred_region
    _
  $region33: #{resnet_forward.8} parent=0 // pred_fallthru
    _

// kernel: resnet_forward.10
$region0: #{resnet_forward.10}
  #allocation0 [shape = 'u32[]', space=smem, size = 0x4, offset = 0x4, fixed_abs, tag = 'smem constant byte address 0x4 - core index']
  #allocation1 [shape = 'u32[144,128]{1,0:T(1,128)}', space=vmem, size = 0x12000, scoped, tag = 'internal scratch']
  #allocation2 [shape = 'f32[128,128]{1,0:T(8,128)}', space=vmem, size = 0x10000, scoped, tag = 'scratch operand']
  %s0 = inlined_call_operand.vmem [shape: bf16[128,384], index: 0, kind: input, shape index: {}]
  %s1 = inlined_call_operand.vmem [shape: bf16[384,128], index: 1, kind: input, shape index: {}]
  %s2 = inlined_call_operand.vmem [shape: f32[1,128], index: 2, kind: input, shape index: {}]
  %s3 = inlined_call_operand.vmem [shape: f32[1,128], index: 3, kind: input, shape index: {}]
  %s4 = inlined_call_operand.vmem [shape: bf16[128,128], index: 4, kind: output, shape index: {}]
  %s5 = sld [smem:[#allocation0]]
  $region34: #{resnet_forward.10} parent=0
    _
  %s7 = ssub.s32 1, %s5
  %s8 = scalar_select 0, %s7, %s5
  // Predicated region
  $region2: #{resnet_forward.10} parent=0 // pred_check
    _
  $region3: #{resnet_forward.10} parent=0 // pred_check_branch
    %10 = sbr.rel (0) target = $region5
  $region4: #{resnet_forward.10} parent=0 // pred_region
    _
  $region5: #{resnet_forward.10} parent=0 // pred_fallthru
    _
  // Predicated region
  $region6: #{resnet_forward.10} parent=0 // pred_check
    _
  $region7: #{resnet_forward.10} parent=0 // pred_check_branch
    %12 = sbr.rel (0) target = $region9
  $region8: #{resnet_forward.10} parent=0 // pred_region
    _
  $region9: #{resnet_forward.10} parent=0 // pred_fallthru
    _
  // Predicated region
  $region10: #{resnet_forward.10} parent=0 // pred_check
    _
  $region11: #{resnet_forward.10} parent=0 // pred_check_branch
    %14 = sbr.rel (0) target = $region13
  $region12: #{resnet_forward.10} parent=0 // pred_region
    _
  $region13: #{resnet_forward.10} parent=0 // pred_fallthru
    _
  // Predicated region
  $region14: #{resnet_forward.10} parent=0 // pred_check
    _
  $region15: #{resnet_forward.10} parent=0 // pred_check_branch
    %16 = sbr.rel (0) target = $region17
  $region16: #{resnet_forward.10} parent=0 // pred_region
    _
  $region17: #{resnet_forward.10} parent=0 // pred_fallthru
    _
  %p18 = scmp.eq.s32.totalorder 0, 0
  // Predicated region
  $region18: #{resnet_forward.10} parent=0 // pred_check
    %p19 = pneg %p18
  $region19: #{resnet_forward.10} parent=0 // pred_check_branch
    %21 = sbr.rel (%p19) target = $region21
  $region20: #{resnet_forward.10} parent=0 // pred_region
    %22 = vst [vmem:[#allocation2] sm:$0xff] 0.0
    %23 = vst [vmem:[#allocation2 + $0x8] sm:$0xff] 0.0
    %24 = vst [vmem:[#allocation2 + $0x10] sm:$0xff] 0.0
    %25 = vst [vmem:[#allocation2 + $0x18] sm:$0xff] 0.0
    %26 = vst [vmem:[#allocation2 + $0x20] sm:$0xff] 0.0
    %27 = vst [vmem:[#allocation2 + $0x28] sm:$0xff] 0.0
    %28 = vst [vmem:[#allocation2 + $0x30] sm:$0xff] 0.0
    %29 = vst [vmem:[#allocation2 + $0x38] sm:$0xff] 0.0
    %30 = vst [vmem:[#allocation2 + $0x40] sm:$0xff] 0.0
    %31 = vst [vmem:[#allocation2 + $0x48] sm:$0xff] 0.0
    %32 = vst [vmem:[#allocation2 + $0x50] sm:$0xff] 0.0
    %33 = vst [vmem:[#allocation2 + $0x58] sm:$0xff] 0.0
    %34 = vst [vmem:[#allocation2 + $0x60] sm:$0xff] 0.0
    %35 = vst [vmem:[#allocation2 + $0x68] sm:$0xff] 0.0
    %36 = vst [vmem:[#allocation2 + $0x70] sm:$0xff] 0.0
    %37 = vst [vmem:[#allocation2 + $0x78] sm:$0xff] 0.0
  $region21: #{resnet_forward.10} parent=0 // pred_fallthru
    _
  %v38 = vld [vmem:[#allocation2] sm:$0xff]
  %v39 = vld [vmem:[#allocation2 + $0x8] sm:$0xff]
  %v40 = vld [vmem:[#allocation2 + $0x10] sm:$0xff]
  %v41 = vld [vmem:[#allocation2 + $0x18] sm:$0xff]
  %v42 = vld [vmem:[#allocation2 + $0x20] sm:$0xff]
  %v43 = vld [vmem:[#allocation2 + $0x28] sm:$0xff]
  %v44 = vld [vmem:[#allocation2 + $0x30] sm:$0xff]
  %v45 = vld [vmem:[#allocation2 + $0x38] sm:$0xff]
  %v46 = vld [vmem:[#allocation2 + $0x40] sm:$0xff]
  %v47 = vld [vmem:[#allocation2 + $0x48] sm:$0xff]
  %v48 = vld [vmem:[#allocation2 + $0x50] sm:$0xff]
  %v49 = vld [vmem:[#allocation2 + $0x58] sm:$0xff]
  %v50 = vld [vmem:[#allocation2 + $0x60] sm:$0xff]
  %v51 = vld [vmem:[#allocation2 + $0x68] sm:$0xff]
  %v52 = vld [vmem:[#allocation2 + $0x70] sm:$0xff]
  %v53 = vld [vmem:[#allocation2 + $0x78] sm:$0xff]
  %v54 = vld [vmem:[%s0] sm:$0xff]
  %v55 = vld [vmem:[%s0 + $0x8] sm:$0xf]
  %v56 = vld [vmem:[%s0 + $0xc] sm:$0xff]
  %v57 = vld [vmem:[%s0 + $0x14] sm:$0xf]
  %v58 = vld [vmem:[%s0 + $0x18] sm:$0xff]
  %v59 = vld [vmem:[%s0 + $0x20] sm:$0xf]
  %v60 = vld [vmem:[%s0 + $0x24] sm:$0xff]
  %v61 = vld [vmem:[%s0 + $0x2c] sm:$0xf]
  %v62 = vld [vmem:[%s0 + $0x30] sm:$0xff]
  %v63 = vld [vmem:[%s0 + $0x38] sm:$0xf]
  %v64 = vld [vmem:[%s0 + $0x3c] sm:$0xff]
  %v65 = vld [vmem:[%s0 + $0x44] sm:$0xf]
  %v66 = vld [vmem:[%s0 + $0x48] sm:$0xff]
  %v67 = vld [vmem:[%s0 + $0x50] sm:$0xf]
  %v68 = vld [vmem:[%s0 + $0x54] sm:$0xff]
  %v69 = vld [vmem:[%s0 + $0x5c] sm:$0xf]
  %v70 = vld [vmem:[%s0 + $0x60] sm:$0xff]
  %v71 = vld [vmem:[%s0 + $0x68] sm:$0xf]
  %v72 = vld [vmem:[%s0 + $0x6c] sm:$0xff]
  %v73 = vld [vmem:[%s0 + $0x74] sm:$0xf]
  %v74 = vld [vmem:[%s0 + $0x78] sm:$0xff]
  %v75 = vld [vmem:[%s0 + $0x80] sm:$0xf]
  %v76 = vld [vmem:[%s0 + $0x84] sm:$0xff]
  %v77 = vld [vmem:[%s0 + $0x8c] sm:$0xf]
  %v78 = vld [vmem:[%s0 + $0x90] sm:$0xff]
  %v79 = vld [vmem:[%s0 + $0x98] sm:$0xf]
  %v80 = vld [vmem:[%s0 + $0x9c] sm:$0xff]
  %v81 = vld [vmem:[%s0 + $0xa4] sm:$0xf]
  %v82 = vld [vmem:[%s0 + $0xa8] sm:$0xff]
  %v83 = vld [vmem:[%s0 + $0xb0] sm:$0xf]
  %v84 = vld [vmem:[%s0 + $0xb4] sm:$0xff]
  %v85 = vld [vmem:[%s0 + $0xbc] sm:$0xf]
  %v86 = vld [vmem:[%s1] sm:$0xf]
  %v87 = vld [vmem:[%s1 + $0x4] sm:$0xf]
  %v88 = vld [vmem:[%s1 + $0x8] sm:$0xf]
  %v89 = vld [vmem:[%s1 + $0xc] sm:$0xf]
  %v90 = vld [vmem:[%s1 + $0x10] sm:$0xf]
  %v91 = vld [vmem:[%s1 + $0x14] sm:$0xf]
  %v92 = vld [vmem:[%s1 + $0x18] sm:$0xf]
  %v93 = vld [vmem:[%s1 + $0x1c] sm:$0xf]
  %v94 = vld [vmem:[%s1 + $0x20] sm:$0xf]
  %v95 = vld [vmem:[%s1 + $0x24] sm:$0xf]
  %v96 = vld [vmem:[%s1 + $0x28] sm:$0xf]
  %v97 = vld [vmem:[%s1 + $0x2c] sm:$0xf]
  %v98 = vld [vmem:[%s1 + $0x30] sm:$0xf]
  %v99 = vld [vmem:[%s1 + $0x34] sm:$0xf]
  %v100 = vld [vmem:[%s1 + $0x38] sm:$0xf]
  %v101 = vld [vmem:[%s1 + $0x3c] sm:$0xf]
  %v102 = vld [vmem:[%s1 + $0x40] sm:$0xf]
  %v103 = vld [vmem:[%s1 + $0x44] sm:$0xf]
  %v104 = vld [vmem:[%s1 + $0x48] sm:$0xf]
  %v105 = vld [vmem:[%s1 + $0x4c] sm:$0xf]
  %v106 = vld [vmem:[%s1 + $0x50] sm:$0xf]
  %v107 = vld [vmem:[%s1 + $0x54] sm:$0xf]
  %v108 = vld [vmem:[%s1 + $0x58] sm:$0xf]
  %v109 = vld [vmem:[%s1 + $0x5c] sm:$0xf]
  %v110 = vld [vmem:[%s1 + $0x60] sm:$0xf]
  %v111 = vld [vmem:[%s1 + $0x64] sm:$0xf]
  %v112 = vld [vmem:[%s1 + $0x68] sm:$0xf]
  %v113 = vld [vmem:[%s1 + $0x6c] sm:$0xf]
  %v114 = vld [vmem:[%s1 + $0x70] sm:$0xf]
  %v115 = vld [vmem:[%s1 + $0x74] sm:$0xf]
  %v116 = vld [vmem:[%s1 + $0x78] sm:$0xf]
  %v117 = vld [vmem:[%s1 + $0x7c] sm:$0xf]
  %v118 = vld [vmem:[%s1 + $0x80] sm:$0xf]
  %v119 = vld [vmem:[%s1 + $0x84] sm:$0xf]
  %v120 = vld [vmem:[%s1 + $0x88] sm:$0xf]
  %v121 = vld [vmem:[%s1 + $0x8c] sm:$0xf]
  %v122 = vld [vmem:[%s1 + $0x90] sm:$0xf]
  %v123 = vld [vmem:[%s1 + $0x94] sm:$0xf]
  %v124 = vld [vmem:[%s1 + $0x98] sm:$0xf]
  %v125 = vld [vmem:[%s1 + $0x9c] sm:$0xf]
  %v126 = vld [vmem:[%s1 + $0xa0] sm:$0xf]
  %v127 = vld [vmem:[%s1 + $0xa4] sm:$0xf]
  %v128 = vld [vmem:[%s1 + $0xa8] sm:$0xf]
  %v129 = vld [vmem:[%s1 + $0xac] sm:$0xf]
  %v130 = vld [vmem:[%s1 + $0xb0] sm:$0xf]
  %v131 = vld [vmem:[%s1 + $0xb4] sm:$0xf]
  %v132 = vld [vmem:[%s1 + $0xb8] sm:$0xf]
  %v133 = vld [vmem:[%s1 + $0xbc] sm:$0xf]
  %v166 = vunpack.c.l.b16 %v54
  %v167 = vunpack.c.h.b16 %v54
  %v168 = vunpack.c.l.b16 %v55
  %v169 = vunpack.c.l.b16 %v56
  %v170 = vunpack.c.h.b16 %v56
  %v171 = vunpack.c.l.b16 %v57
  %v172 = vunpack.c.l.b16 %v58
  %v173 = vunpack.c.h.b16 %v58
  %v174 = vunpack.c.l.b16 %v59
  %v175 = vunpack.c.l.b16 %v60
  %v176 = vunpack.c.h.b16 %v60
  %v177 = vunpack.c.l.b16 %v61
  %v178 = vunpack.c.l.b16 %v62
  %v179 = vunpack.c.h.b16 %v62
  %v180 = vunpack.c.l.b16 %v63
  %v181 = vunpack.c.l.b16 %v64
  %v182 = vunpack.c.h.b16 %v64
  %v183 = vunpack.c.l.b16 %v65
  %v184 = vunpack.c.l.b16 %v66
  %v185 = vunpack.c.h.b16 %v66
  %v186 = vunpack.c.l.b16 %v67
  %v187 = vunpack.c.l.b16 %v68
  %v188 = vunpack.c.h.b16 %v68
  %v189 = vunpack.c.l.b16 %v69
  %v190 = vunpack.c.l.b16 %v70
  %v191 = vunpack.c.h.b16 %v70
  %v192 = vunpack.c.l.b16 %v71
  %v193 = vunpack.c.l.b16 %v72
  %v194 = vunpack.c.h.b16 %v72
  %v195 = vunpack.c.l.b16 %v73
  %v196 = vunpack.c.l.b16 %v74
  %v197 = vunpack.c.h.b16 %v74
  %v198 = vunpack.c.l.b16 %v75
  %v199 = vunpack.c.l.b16 %v76
  %v200 = vunpack.c.h.b16 %v76
  %v201 = vunpack.c.l.b16 %v77
  %v202 = vunpack.c.l.b16 %v78
  %v203 = vunpack.c.h.b16 %v78
  %v204 = vunpack.c.l.b16 %v79
  %v205 = vunpack.c.l.b16 %v80
  %v206 = vunpack.c.h.b16 %v80
  %v207 = vunpack.c.l.b16 %v81
  %v208 = vunpack.c.l.b16 %v82
  %v209 = vunpack.c.h.b16 %v82
  %v210 = vunpack.c.l.b16 %v83
  %v211 = vunpack.c.l.b16 %v84
  %v212 = vunpack.c.h.b16 %v84
  %v213 = vunpack.c.l.b16 %v85
  %v214 = vpack.c.b16 %v169, %v166
  %v215 = vpack.c.b16 %v170, %v167
  %v216 = vpack.c.b16 %v171, %v168
  %v217 = vpack.c.b16 %v175, %v172
  %v218 = vpack.c.b16 %v176, %v173
  %v219 = vpack.c.b16 %v177, %v174
  %v220 = vpack.c.b16 %v181, %v178
  %v221 = vpack.c.b16 %v182, %v179
  %v222 = vpack.c.b16 %v183, %v180
  %v223 = vpack.c.b16 %v187, %v184
  %v224 = vpack.c.b16 %v188, %v185
  %v225 = vpack.c.b16 %v189, %v186
  %v226 = vpack.c.b16 %v193, %v190
  %v227 = vpack.c.b16 %v194, %v191
  %v228 = vpack.c.b16 %v195, %v192
  %v229 = vpack.c.b16 %v199, %v196
  %v230 = vpack.c.b16 %v200, %v197
  %v231 = vpack.c.b16 %v201, %v198
  %v232 = vpack.c.b16 %v205, %v202
  %v233 = vpack.c.b16 %v206, %v203
  %v234 = vpack.c.b16 %v207, %v204
  %v235 = vpack.c.b16 %v211, %v208
  %v236 = vpack.c.b16 %v212, %v209
  %v237 = vpack.c.b16 %v213, %v210
  %v310 = vunpack.c.l.b16 %v86
  %v311 = vunpack.c.l.b16 %v87
  %v312 = vunpack.c.l.b16 %v88
  %v313 = vunpack.c.l.b16 %v89
  %v314 = vunpack.c.l.b16 %v90
  %v315 = vunpack.c.l.b16 %v91
  %v316 = vunpack.c.l.b16 %v92
  %v317 = vunpack.c.l.b16 %v93
  %v318 = vunpack.c.l.b16 %v94
  %v319 = vunpack.c.l.b16 %v95
  %v320 = vunpack.c.l.b16 %v96
  %v321 = vunpack.c.l.b16 %v97
  %v322 = vunpack.c.l.b16 %v98
  %v323 = vunpack.c.l.b16 %v99
  %v324 = vunpack.c.l.b16 %v100
  %v325 = vunpack.c.l.b16 %v101
  %v326 = vunpack.c.l.b16 %v102
  %v327 = vunpack.c.l.b16 %v103
  %v328 = vunpack.c.l.b16 %v104
  %v329 = vunpack.c.l.b16 %v105
  %v330 = vunpack.c.l.b16 %v106
  %v331 = vunpack.c.l.b16 %v107
  %v332 = vunpack.c.l.b16 %v108
  %v333 = vunpack.c.l.b16 %v109
  %v334 = vunpack.c.l.b16 %v110
  %v335 = vunpack.c.l.b16 %v111
  %v336 = vunpack.c.l.b16 %v112
  %v337 = vunpack.c.l.b16 %v113
  %v338 = vunpack.c.l.b16 %v114
  %v339 = vunpack.c.l.b16 %v115
  %v340 = vunpack.c.l.b16 %v116
  %v341 = vunpack.c.l.b16 %v117
  %v342 = vunpack.c.l.b16 %v118
  %v343 = vunpack.c.l.b16 %v119
  %v344 = vunpack.c.l.b16 %v120
  %v345 = vunpack.c.l.b16 %v121
  %v346 = vunpack.c.l.b16 %v122
  %v347 = vunpack.c.l.b16 %v123
  %v348 = vunpack.c.l.b16 %v124
  %v349 = vunpack.c.l.b16 %v125
  %v350 = vunpack.c.l.b16 %v126
  %v351 = vunpack.c.l.b16 %v127
  %v352 = vunpack.c.l.b16 %v128
  %v353 = vunpack.c.l.b16 %v129
  %v354 = vunpack.c.l.b16 %v130
  %v355 = vunpack.c.l.b16 %v131
  %v356 = vunpack.c.l.b16 %v132
  %v357 = vunpack.c.l.b16 %v133
  %v358 = vpack.c.b16 %v311, %v310
  %v359 = vpack.c.b16 %v313, %v312
  %v360 = vpack.c.b16 %v315, %v314
  %v361 = vpack.c.b16 %v317, %v316
  %v362 = vpack.c.b16 %v319, %v318
  %v363 = vpack.c.b16 %v321, %v320
  %v364 = vpack.c.b16 %v323, %v322
  %v365 = vpack.c.b16 %v325, %v324
  %v366 = vpack.c.b16 %v327, %v326
  %v367 = vpack.c.b16 %v329, %v328
  %v368 = vpack.c.b16 %v331, %v330
  %v369 = vpack.c.b16 %v333, %v332
  %v370 = vpack.c.b16 %v335, %v334
  %v371 = vpack.c.b16 %v337, %v336
  %v372 = vpack.c.b16 %v339, %v338
  %v373 = vpack.c.b16 %v341, %v340
  %v374 = vpack.c.b16 %v343, %v342
  %v375 = vpack.c.b16 %v345, %v344
  %v376 = vpack.c.b16 %v347, %v346
  %v377 = vpack.c.b16 %v349, %v348
  %v378 = vpack.c.b16 %v351, %v350
  %v379 = vpack.c.b16 %v353, %v352
  %v380 = vpack.c.b16 %v355, %v354
  %v381 = vpack.c.b16 %v357, %v356
  %406 = vmatprep.subr.bf16.mxu0 0
  %407 = vmatpush1.bf16.msra.mxu0 %v365
  %408 = vmatprep.subr.bf16.mxu0 0
  %409 = vmatpush1.bf16.msra.mxu0 %v364
  %410 = vmatprep.subr.bf16.mxu0 0
  %411 = vmatpush1.bf16.msra.mxu0 %v363
  %412 = vmatprep.subr.bf16.mxu0 0
  %413 = vmatpush1.bf16.msra.mxu0 %v362
  %414 = vmatprep.subr.bf16.mxu0 0
  %415 = vmatpush1.bf16.msra.mxu0 %v361
  %416 = vmatprep.subr.bf16.mxu0 0
  %417 = vmatpush1.bf16.msra.mxu0 %v360
  %418 = vmatprep.subr.bf16.mxu0 0
  %419 = vmatpush1.bf16.msra.mxu0 %v359
  %420 = vmatprep.subr.bf16.mxu0 0
  %421 = vmatpush1.bf16.msra.mxu0 %v358
  %422 = vmatprep.subr.bf16.mxu0 0
  %423 = vmatpush2.bf16.msra.mxu0 %v373
  %424 = vmatprep.subr.bf16.mxu0 0
  %425 = vmatpush2.bf16.msra.mxu0 %v372
  %426 = vmatprep.subr.bf16.mxu0 0
  %427 = vmatpush2.bf16.msra.mxu0 %v371
  %428 = vmatprep.subr.bf16.mxu0 0
  %429 = vmatpush2.bf16.msra.mxu0 %v370
  %430 = vmatprep.subr.bf16.mxu0 0
  %431 = vmatpush2.bf16.msra.mxu0 %v369
  %432 = vmatprep.subr.bf16.mxu0 0
  %433 = vmatpush2.bf16.msra.mxu0 %v368
  %434 = vmatprep.subr.bf16.mxu0 0
  %435 = vmatpush2.bf16.msra.mxu0 %v367
  %436 = vmatprep.subr.bf16.mxu0 0
  %437 = vmatpush2.bf16.msra.mxu0 %v366
  %438 = vmatprep.mubr.bf16.mxu0 %v215
  %439 = vmatmul.mubr.bf16.gmra.mxu0 %v214
  %v440 = vpop.f32.mrf.mxu0
  %v441 = vadd.f32 0.0, %v440
  %v442 = vpop.f32.mrf.mxu0
  %v443 = vpop.f32.mrf.mxu0
  %v444 = vadd.f32 0.0, %v443
  %v445 = vpop.f32.mrf.mxu0
  %446 = vmatprep.mubr.bf16.mxu0 %v218
  %447 = vmatmul.mubr.bf16.gmra.mxu0 %v217
  %v448 = vpop.f32.mrf.mxu0
  %v449 = vadd.f32 0.0, %v448
  %v450 = vpop.f32.mrf.mxu0
  %v451 = vpop.f32.mrf.mxu0
  %v452 = vadd.f32 0.0, %v451
  %v453 = vpop.f32.mrf.mxu0
  %454 = vmatprep.mubr.bf16.mxu0 %v221
  %455 = vmatmul.mubr.bf16.gmra.mxu0 %v220
  %v456 = vpop.f32.mrf.mxu0
  %v457 = vadd.f32 0.0, %v456
  %v458 = vpop.f32.mrf.mxu0
  %v459 = vpop.f32.mrf.mxu0
  %v460 = vadd.f32 0.0, %v459
  %v461 = vpop.f32.mrf.mxu0
  %462 = vmatprep.mubr.bf16.mxu0 %v224
  %463 = vmatmul.mubr.bf16.gmra.mxu0 %v223
  %v464 = vpop.f32.mrf.mxu0
  %v465 = vadd.f32 0.0, %v464
  %v466 = vpop.f32.mrf.mxu0
  %v467 = vpop.f32.mrf.mxu0
  %v468 = vadd.f32 0.0, %v467
  %v469 = vpop.f32.mrf.mxu0
  %470 = vmatprep.mubr.bf16.mxu0 %v227
  %471 = vmatmul.mubr.bf16.gmra.mxu0 %v226
  %v472 = vpop.f32.mrf.mxu0
  %v473 = vadd.f32 0.0, %v472
  %v474 = vpop.f32.mrf.mxu0
  %v475 = vpop.f32.mrf.mxu0
  %v476 = vadd.f32 0.0, %v475
  %v477 = vpop.f32.mrf.mxu0
  %478 = vmatprep.mubr.bf16.mxu0 %v230
  %479 = vmatmul.mubr.bf16.gmra.mxu0 %v229
  %v480 = vpop.f32.mrf.mxu0
  %v481 = vadd.f32 0.0, %v480
  %v482 = vpop.f32.mrf.mxu0
  %v483 = vpop.f32.mrf.mxu0
  %v484 = vadd.f32 0.0, %v483
  %v485 = vpop.f32.mrf.mxu0
  %486 = vmatprep.mubr.bf16.mxu0 %v233
  %487 = vmatmul.mubr.bf16.gmra.mxu0 %v232
  %v488 = vpop.f32.mrf.mxu0
  %v489 = vadd.f32 0.0, %v488
  %v490 = vpop.f32.mrf.mxu0
  %v491 = vpop.f32.mrf.mxu0
  %v492 = vadd.f32 0.0, %v491
  %v493 = vpop.f32.mrf.mxu0
  %494 = vmatprep.mubr.bf16.mxu0 %v236
  %495 = vmatmul.mubr.bf16.gmra.mxu0 %v235
  %v496 = vpop.f32.mrf.mxu0
  %v497 = vadd.f32 0.0, %v496
  %v498 = vpop.f32.mrf.mxu0
  %v499 = vpop.f32.mrf.mxu0
  %v500 = vadd.f32 0.0, %v499
  %v501 = vpop.f32.mrf.mxu0
  %502 = vdwg.mxu0
  %503 = vmatprep.subr.bf16.mxu0 0
  %504 = vmatpush1.bf16.msra.mxu0 %v381
  %505 = vmatprep.subr.bf16.mxu0 0
  %506 = vmatpush1.bf16.msra.mxu0 %v380
  %507 = vmatprep.subr.bf16.mxu0 0
  %508 = vmatpush1.bf16.msra.mxu0 %v379
  %509 = vmatprep.subr.bf16.mxu0 0
  %510 = vmatpush1.bf16.msra.mxu0 %v378
  %511 = vmatprep.subr.bf16.mxu0 0
  %512 = vmatpush1.bf16.msra.mxu0 %v377
  %513 = vmatprep.subr.bf16.mxu0 0
  %514 = vmatpush1.bf16.msra.mxu0 %v376
  %515 = vmatprep.subr.bf16.mxu0 0
  %516 = vmatpush1.bf16.msra.mxu0 %v375
  %517 = vmatprep.subr.bf16.mxu0 0
  %518 = vmatpush1.bf16.msra.mxu0 %v374
  %519 = vmatprep.subr.bf16.mxu0 0
  %520 = vmatpush2.bf16.msra.mxu0 0
  %521 = vmatprep.subr.bf16.mxu0 0
  %522 = vmatpush2.bf16.msra.mxu0 0
  %523 = vmatprep.subr.bf16.mxu0 0
  %524 = vmatpush2.bf16.msra.mxu0 0
  %525 = vmatprep.subr.bf16.mxu0 0
  %526 = vmatpush2.bf16.msra.mxu0 0
  %527 = vmatprep.subr.bf16.mxu0 0
  %528 = vmatpush2.bf16.msra.mxu0 0
  %529 = vmatprep.subr.bf16.mxu0 0
  %530 = vmatpush2.bf16.msra.mxu0 0
  %531 = vmatprep.subr.bf16.mxu0 0
  %532 = vmatpush2.bf16.msra.mxu0 0
  %533 = vmatprep.subr.bf16.mxu0 0
  %534 = vmatpush2.bf16.msra.mxu0 0
  %535 = vmatprep.mubr.bf16.mxu0 0
  %536 = vmatmul.mubr.bf16.gmra.mxu0 %v216
  %v537 = vpop.f32.mrf.mxu0
  %v538 = vadd.f32 %v441, %v537
  %v539 = vpop.f32.mrf.mxu0
  %v540 = vpop.f32.mrf.mxu0
  %v541 = vadd.f32 %v444, %v540
  %v542 = vpop.f32.mrf.mxu0
  %543 = vmatprep.mubr.bf16.mxu0 0
  %544 = vmatmul.mubr.bf16.gmra.mxu0 %v219
  %v545 = vpop.f32.mrf.mxu0
  %v546 = vadd.f32 %v449, %v545
  %v547 = vpop.f32.mrf.mxu0
  %v548 = vpop.f32.mrf.mxu0
  %v549 = vadd.f32 %v452, %v548
  %v550 = vpop.f32.mrf.mxu0
  %551 = vmatprep.mubr.bf16.mxu0 0
  %552 = vmatmul.mubr.bf16.gmra.mxu0 %v222
  %v553 = vpop.f32.mrf.mxu0
  %v554 = vadd.f32 %v457, %v553
  %v555 = vpop.f32.mrf.mxu0
  %v556 = vpop.f32.mrf.mxu0
  %v557 = vadd.f32 %v460, %v556
  %v558 = vpop.f32.mrf.mxu0
  %559 = vmatprep.mubr.bf16.mxu0 0
  %560 = vmatmul.mubr.bf16.gmra.mxu0 %v225
  %v561 = vpop.f32.mrf.mxu0
  %v562 = vadd.f32 %v465, %v561
  %v563 = vpop.f32.mrf.mxu0
  %v564 = vpop.f32.mrf.mxu0
  %v565 = vadd.f32 %v468, %v564
  %v566 = vpop.f32.mrf.mxu0
  %567 = vmatprep.mubr.bf16.mxu0 0
  %568 = vmatmul.mubr.bf16.gmra.mxu0 %v228
  %v569 = vpop.f32.mrf.mxu0
  %v570 = vadd.f32 %v473, %v569
  %v571 = vpop.f32.mrf.mxu0
  %v572 = vpop.f32.mrf.mxu0
  %v573 = vadd.f32 %v476, %v572
  %v574 = vpop.f32.mrf.mxu0
  %575 = vmatprep.mubr.bf16.mxu0 0
  %576 = vmatmul.mubr.bf16.gmra.mxu0 %v231
  %v577 = vpop.f32.mrf.mxu0
  %v578 = vadd.f32 %v481, %v577
  %v579 = vpop.f32.mrf.mxu0
  %v580 = vpop.f32.mrf.mxu0
  %v581 = vadd.f32 %v484, %v580
  %v582 = vpop.f32.mrf.mxu0
  %583 = vmatprep.mubr.bf16.mxu0 0
  %584 = vmatmul.mubr.bf16.gmra.mxu0 %v234
  %v585 = vpop.f32.mrf.mxu0
  %v586 = vadd.f32 %v489, %v585
  %v587 = vpop.f32.mrf.mxu0
  %v588 = vpop.f32.mrf.mxu0
  %v589 = vadd.f32 %v492, %v588
  %v590 = vpop.f32.mrf.mxu0
  %591 = vmatprep.mubr.bf16.mxu0 0
  %592 = vmatmul.mubr.bf16.gmra.mxu0 %v237
  %v593 = vpop.f32.mrf.mxu0
  %v594 = vadd.f32 %v497, %v593
  %v595 = vpop.f32.mrf.mxu0
  %v596 = vpop.f32.mrf.mxu0
  %v597 = vadd.f32 %v500, %v596
  %v598 = vpop.f32.mrf.mxu0
  %599 = vdwg.mxu0
  %v600 = vadd.f32 %v38, %v538
  %v601 = vadd.f32 %v39, %v541
  %v602 = vadd.f32 %v40, %v546
  %v603 = vadd.f32 %v41, %v549
  %v604 = vadd.f32 %v42, %v554
  %v605 = vadd.f32 %v43, %v557
  %v606 = vadd.f32 %v44, %v562
  %v607 = vadd.f32 %v45, %v565
  %v608 = vadd.f32 %v46, %v570
  %v609 = vadd.f32 %v47, %v573
  %v610 = vadd.f32 %v48, %v578
  %v611 = vadd.f32 %v49, %v581
  %v612 = vadd.f32 %v50, %v586
  %v613 = vadd.f32 %v51, %v589
  %v614 = vadd.f32 %v52, %v594
  %v615 = vadd.f32 %v53, %v597
  %616 = vst [vmem:[#allocation2] sm:$0xff] %v600
  %617 = vst [vmem:[#allocation2 + $0x8] sm:$0xff] %v601
  %618 = vst [vmem:[#allocation2 + $0x10] sm:$0xff] %v602
  %619 = vst [vmem:[#allocation2 + $0x18] sm:$0xff] %v603
  %620 = vst [vmem:[#allocation2 + $0x20] sm:$0xff] %v604
  %621 = vst [vmem:[#allocation2 + $0x28] sm:$0xff] %v605
  %622 = vst [vmem:[#allocation2 + $0x30] sm:$0xff] %v606
  %623 = vst [vmem:[#allocation2 + $0x38] sm:$0xff] %v607
  %624 = vst [vmem:[#allocation2 + $0x40] sm:$0xff] %v608
  %625 = vst [vmem:[#allocation2 + $0x48] sm:$0xff] %v609
  %626 = vst [vmem:[#allocation2 + $0x50] sm:$0xff] %v610
  %627 = vst [vmem:[#allocation2 + $0x58] sm:$0xff] %v611
  %628 = vst [vmem:[#allocation2 + $0x60] sm:$0xff] %v612
  %629 = vst [vmem:[#allocation2 + $0x68] sm:$0xff] %v613
  %630 = vst [vmem:[#allocation2 + $0x70] sm:$0xff] %v614
  %631 = vst [vmem:[#allocation2 + $0x78] sm:$0xff] %v615
  // Predicated region
  $region22: #{resnet_forward.10} parent=0 // pred_check
    %p632 = pneg %p18
  $region23: #{resnet_forward.10} parent=0 // pred_check_branch
    %634 = sbr.rel (%p632) target = $region25
  $region24: #{resnet_forward.10} parent=0 // pred_region
    %v635 = vld [vmem:[#allocation2] sm:$0xff]
    %v636 = vld [vmem:[#allocation2 + $0x8] sm:$0xff]
    %v637 = vld [vmem:[#allocation2 + $0x10] sm:$0xff]
    %v638 = vld [vmem:[#allocation2 + $0x18] sm:$0xff]
    %v639 = vld [vmem:[#allocation2 + $0x20] sm:$0xff]
    %v640 = vld [vmem:[#allocation2 + $0x28] sm:$0xff]
    %v641 = vld [vmem:[#allocation2 + $0x30] sm:$0xff]
    %v642 = vld [vmem:[#allocation2 + $0x38] sm:$0xff]
    %v643 = vld [vmem:[#allocation2 + $0x40] sm:$0xff]
    %v644 = vld [vmem:[#allocation2 + $0x48] sm:$0xff]
    %v645 = vld [vmem:[#allocation2 + $0x50] sm:$0xff]
    %v646 = vld [vmem:[#allocation2 + $0x58] sm:$0xff]
    %v647 = vld [vmem:[#allocation2 + $0x60] sm:$0xff]
    %v648 = vld [vmem:[#allocation2 + $0x68] sm:$0xff]
    %v649 = vld [vmem:[#allocation2 + $0x70] sm:$0xff]
    %v650 = vld [vmem:[#allocation2 + $0x78] sm:$0xff]
    %v651 = vld [vmem:[%s2] sm:$0x1]
    %v653 = vlaneseq
    %v654 = vshrl.u32 %v653, 7
    %v655 = vsub.s32 0, %v654
    %v656 = vrot.slane %v651, %v655
    %v658 = vmul.f32 %v635, %v656
    %v659 = vmul.f32 %v636, %v656
    %v660 = vmul.f32 %v637, %v656
    %v661 = vmul.f32 %v638, %v656
    %v662 = vmul.f32 %v639, %v656
    %v663 = vmul.f32 %v640, %v656
    %v664 = vmul.f32 %v641, %v656
    %v665 = vmul.f32 %v642, %v656
    %v666 = vmul.f32 %v643, %v656
    %v667 = vmul.f32 %v644, %v656
    %v668 = vmul.f32 %v645, %v656
    %v669 = vmul.f32 %v646, %v656
    %v670 = vmul.f32 %v647, %v656
    %v671 = vmul.f32 %v648, %v656
    %v672 = vmul.f32 %v649, %v656
    %v673 = vmul.f32 %v650, %v656
    %v674 = vld [vmem:[%s3] sm:$0x1]
    %v676 = vlaneseq
    %v677 = vshrl.u32 %v676, 7
    %v678 = vsub.s32 0, %v677
    %v679 = vrot.slane %v674, %v678
    %v681 = vadd.f32 %v658, %v679
    %v682 = vadd.f32 %v659, %v679
    %v683 = vadd.f32 %v660, %v679
    %v684 = vadd.f32 %v661, %v679
    %v685 = vadd.f32 %v662, %v679
    %v686 = vadd.f32 %v663, %v679
    %v687 = vadd.f32 %v664, %v679
    %v688 = vadd.f32 %v665, %v679
    %v689 = vadd.f32 %v666, %v679
    %v690 = vadd.f32 %v667, %v679
    %v691 = vadd.f32 %v668, %v679
    %v692 = vadd.f32 %v669, %v679
    %v693 = vadd.f32 %v670, %v679
    %v694 = vadd.f32 %v671, %v679
    %v695 = vadd.f32 %v672, %v679
    %v696 = vadd.f32 %v673, %v679
    %v697 = vmax.f32 %v681, 0.0
    %v698 = vmax.f32 %v682, 0.0
    %v699 = vmax.f32 %v683, 0.0
    %v700 = vmax.f32 %v684, 0.0
    %v701 = vmax.f32 %v685, 0.0
    %v702 = vmax.f32 %v686, 0.0
    %v703 = vmax.f32 %v687, 0.0
    %v704 = vmax.f32 %v688, 0.0
    %v705 = vmax.f32 %v689, 0.0
    %v706 = vmax.f32 %v690, 0.0
    %v707 = vmax.f32 %v691, 0.0
    %v708 = vmax.f32 %v692, 0.0
    %v709 = vmax.f32 %v693, 0.0
    %v710 = vmax.f32 %v694, 0.0
    %v711 = vmax.f32 %v695, 0.0
    %v712 = vmax.f32 %v696, 0.0
    %v713 = vpack.c.bf16 %v698, %v697
    %v714 = vpack.c.bf16 %v700, %v699
    %v715 = vpack.c.bf16 %v702, %v701
    %v716 = vpack.c.bf16 %v704, %v703
    %v717 = vpack.c.bf16 %v706, %v705
    %v718 = vpack.c.bf16 %v708, %v707
    %v719 = vpack.c.bf16 %v710, %v709
    %v720 = vpack.c.bf16 %v712, %v711
    %v729 = vunpack.c.l.b16 %v713
    %v730 = vunpack.c.h.b16 %v713
    %v731 = vunpack.c.l.b16 %v714
    %v732 = vunpack.c.h.b16 %v714
    %v733 = vunpack.c.l.b16 %v715
    %v734 = vunpack.c.h.b16 %v715
    %v735 = vunpack.c.l.b16 %v716
    %v736 = vunpack.c.h.b16 %v716
    %v737 = vunpack.c.l.b16 %v717
    %v738 = vunpack.c.h.b16 %v717
    %v739 = vunpack.c.l.b16 %v718
    %v740 = vunpack.c.h.b16 %v718
    %v741 = vunpack.c.l.b16 %v719
    %v742 = vunpack.c.h.b16 %v719
    %v743 = vunpack.c.l.b16 %v720
    %v744 = vunpack.c.h.b16 %v720
    %v745 = vpack.c.b16 %v729, %v729
    %v746 = vpack.c.b16 %v730, %v730
    %v747 = vpack.c.b16 %v731, %v731
    %v748 = vpack.c.b16 %v732, %v732
    %v749 = vpack.c.b16 %v733, %v733
    %v750 = vpack.c.b16 %v734, %v734
    %v751 = vpack.c.b16 %v735, %v735
    %v752 = vpack.c.b16 %v736, %v736
    %v753 = vpack.c.b16 %v737, %v737
    %v754 = vpack.c.b16 %v738, %v738
    %v755 = vpack.c.b16 %v739, %v739
    %v756 = vpack.c.b16 %v740, %v740
    %v757 = vpack.c.b16 %v741, %v741
    %v758 = vpack.c.b16 %v742, %v742
    %v759 = vpack.c.b16 %v743, %v743
    %v760 = vpack.c.b16 %v744, %v744
    %777 = vst [vmem:[%s4] sm:$0xf] %v745
    %778 = vst [vmem:[%s4 + $0x4] sm:$0xf] %v746
    %779 = vst [vmem:[%s4 + $0x8] sm:$0xf] %v747
    %780 = vst [vmem:[%s4 + $0xc] sm:$0xf] %v748
    %781 = vst [vmem:[%s4 + $0x10] sm:$0xf] %v749
    %782 = vst [vmem:[%s4 + $0x14] sm:$0xf] %v750
    %783 = vst [vmem:[%s4 + $0x18] sm:$0xf] %v751
    %784 = vst [vmem:[%s4 + $0x1c] sm:$0xf] %v752
    %785 = vst [vmem:[%s4 + $0x20] sm:$0xf] %v753
    %786 = vst [vmem:[%s4 + $0x24] sm:$0xf] %v754
    %787 = vst [vmem:[%s4 + $0x28] sm:$0xf] %v755
    %788 = vst [vmem:[%s4 + $0x2c] sm:$0xf] %v756
    %789 = vst [vmem:[%s4 + $0x30] sm:$0xf] %v757
    %790 = vst [vmem:[%s4 + $0x34] sm:$0xf] %v758
    %791 = vst [vmem:[%s4 + $0x38] sm:$0xf] %v759
    %792 = vst [vmem:[%s4 + $0x3c] sm:$0xf] %v760
  $region25: #{resnet_forward.10} parent=0 // pred_fallthru
    _
  // Predicated region
  $region26: #{resnet_forward.10} parent=0 // pred_check
    _
  $region27: #{resnet_forward.10} parent=0 // pred_check_branch
    %794 = sbr.rel (0) target = $region29
  $region28: #{resnet_forward.10} parent=0 // pred_region
    _
  $region29: #{resnet_forward.10} parent=0 // pred_fallthru
    _
  // Predicated region
  $region30: #{resnet_forward.10} parent=0 // pred_check
    _
  $region31: #{resnet_forward.10} parent=0 // pred_check_branch
    %796 = sbr.rel (0) target = $region33
  $region32: #{resnet_forward.10} parent=0 // pred_region
    _
  $region33: #{resnet_forward.10} parent=0 // pred_fallthru
    _

// kernel: resnet_forward.13
$region0: #{resnet_forward.13}
  #allocation0 [shape = 'u32[]', space=smem, size = 0x4, offset = 0x4, fixed_abs, tag = 'smem constant byte address 0x4 - core index']
  #allocation1 [shape = 'u32[144,128]{1,0:T(1,128)}', space=vmem, size = 0x12000, scoped, tag = 'internal scratch']
  #allocation2 [shape = 'f32[128,128]{1,0:T(8,128)}', space=vmem, size = 0x10000, scoped, tag = 'scratch operand']
  %s0 = inlined_call_operand.vmem [shape: bf16[128,640], index: 0, kind: input, shape index: {}]
  %s1 = inlined_call_operand.vmem [shape: bf16[640,128], index: 1, kind: input, shape index: {}]
  %s2 = inlined_call_operand.vmem [shape: f32[1,128], index: 2, kind: input, shape index: {}]
  %s3 = inlined_call_operand.vmem [shape: f32[1,128], index: 3, kind: input, shape index: {}]
  %s4 = inlined_call_operand.vmem [shape: bf16[128,128], index: 4, kind: output, shape index: {}]
  %s5 = sld [smem:[#allocation0]]
  $region34: #{resnet_forward.13} parent=0
    _
  %s7 = ssub.s32 1, %s5
  %s8 = scalar_select 0, %s7, %s5
  // Predicated region
  $region2: #{resnet_forward.13} parent=0 // pred_check
    _
  $region3: #{resnet_forward.13} parent=0 // pred_check_branch
    %10 = sbr.rel (0) target = $region5
  $region4: #{resnet_forward.13} parent=0 // pred_region
    _
  $region5: #{resnet_forward.13} parent=0 // pred_fallthru
    _
  // Predicated region
  $region6: #{resnet_forward.13} parent=0 // pred_check
    _
  $region7: #{resnet_forward.13} parent=0 // pred_check_branch
    %12 = sbr.rel (0) target = $region9
  $region8: #{resnet_forward.13} parent=0 // pred_region
    _
  $region9: #{resnet_forward.13} parent=0 // pred_fallthru
    _
  // Predicated region
  $region10: #{resnet_forward.13} parent=0 // pred_check
    _
  $region11: #{resnet_forward.13} parent=0 // pred_check_branch
    %14 = sbr.rel (0) target = $region13
  $region12: #{resnet_forward.13} parent=0 // pred_region
    _
  $region13: #{resnet_forward.13} parent=0 // pred_fallthru
    _
  // Predicated region
  $region14: #{resnet_forward.13} parent=0 // pred_check
    _
  $region15: #{resnet_forward.13} parent=0 // pred_check_branch
    %16 = sbr.rel (0) target = $region17
  $region16: #{resnet_forward.13} parent=0 // pred_region
    _
  $region17: #{resnet_forward.13} parent=0 // pred_fallthru
    _
  %p18 = scmp.eq.s32.totalorder 0, 0
  // Predicated region
  $region18: #{resnet_forward.13} parent=0 // pred_check
    %p19 = pneg %p18
  $region19: #{resnet_forward.13} parent=0 // pred_check_branch
    %21 = sbr.rel (%p19) target = $region21
  $region20: #{resnet_forward.13} parent=0 // pred_region
    %22 = vst [vmem:[#allocation2] sm:$0xff] 0.0
    %23 = vst [vmem:[#allocation2 + $0x8] sm:$0xff] 0.0
    %24 = vst [vmem:[#allocation2 + $0x10] sm:$0xff] 0.0
    %25 = vst [vmem:[#allocation2 + $0x18] sm:$0xff] 0.0
    %26 = vst [vmem:[#allocation2 + $0x20] sm:$0xff] 0.0
    %27 = vst [vmem:[#allocation2 + $0x28] sm:$0xff] 0.0
    %28 = vst [vmem:[#allocation2 + $0x30] sm:$0xff] 0.0
    %29 = vst [vmem:[#allocation2 + $0x38] sm:$0xff] 0.0
    %30 = vst [vmem:[#allocation2 + $0x40] sm:$0xff] 0.0
    %31 = vst [vmem:[#allocation2 + $0x48] sm:$0xff] 0.0
    %32 = vst [vmem:[#allocation2 + $0x50] sm:$0xff] 0.0
    %33 = vst [vmem:[#allocation2 + $0x58] sm:$0xff] 0.0
    %34 = vst [vmem:[#allocation2 + $0x60] sm:$0xff] 0.0
    %35 = vst [vmem:[#allocation2 + $0x68] sm:$0xff] 0.0
    %36 = vst [vmem:[#allocation2 + $0x70] sm:$0xff] 0.0
    %37 = vst [vmem:[#allocation2 + $0x78] sm:$0xff] 0.0
  $region21: #{resnet_forward.13} parent=0 // pred_fallthru
    _
  %v38 = vld [vmem:[#allocation2] sm:$0xff]
  %v39 = vld [vmem:[#allocation2 + $0x8] sm:$0xff]
  %v40 = vld [vmem:[#allocation2 + $0x10] sm:$0xff]
  %v41 = vld [vmem:[#allocation2 + $0x18] sm:$0xff]
  %v42 = vld [vmem:[#allocation2 + $0x20] sm:$0xff]
  %v43 = vld [vmem:[#allocation2 + $0x28] sm:$0xff]
  %v44 = vld [vmem:[#allocation2 + $0x30] sm:$0xff]
  %v45 = vld [vmem:[#allocation2 + $0x38] sm:$0xff]
  %v46 = vld [vmem:[#allocation2 + $0x40] sm:$0xff]
  %v47 = vld [vmem:[#allocation2 + $0x48] sm:$0xff]
  %v48 = vld [vmem:[#allocation2 + $0x50] sm:$0xff]
  %v49 = vld [vmem:[#allocation2 + $0x58] sm:$0xff]
  %v50 = vld [vmem:[#allocation2 + $0x60] sm:$0xff]
  %v51 = vld [vmem:[#allocation2 + $0x68] sm:$0xff]
  %v52 = vld [vmem:[#allocation2 + $0x70] sm:$0xff]
  %v53 = vld [vmem:[#allocation2 + $0x78] sm:$0xff]
  %v54 = vld [vmem:[%s0] sm:$0xff]
  %v55 = vld [vmem:[%s0 + $0x8] sm:$0xff]
  %v56 = vld [vmem:[%s0 + $0x10] sm:$0xf]
  %v57 = vld [vmem:[%s0 + $0x14] sm:$0xff]
  %v58 = vld [vmem:[%s0 + $0x1c] sm:$0xff]
  %v59 = vld [vmem:[%s0 + $0x24] sm:$0xf]
  %v60 = vld [vmem:[%s0 + $0x28] sm:$0xff]
  %v61 = vld [vmem:[%s0 + $0x30] sm:$0xff]
  %v62 = vld [vmem:[%s0 + $0x38] sm:$0xf]
  %v63 = vld [vmem:[%s0 + $0x3c] sm:$0xff]
  %v64 = vld [vmem:[%s0 + $0x44] sm:$0xff]
  %v65 = vld [vmem:[%s0 + $0x4c] sm:$0xf]
  %v66 = vld [vmem:[%s0 + $0x50] sm:$0xff]
  %v67 = vld [vmem:[%s0 + $0x58] sm:$0xff]
  %v68 = vld [vmem:[%s0 + $0x60] sm:$0xf]
  %v69 = vld [vmem:[%s0 + $0x64] sm:$0xff]
  %v70 = vld [vmem:[%s0 + $0x6c] sm:$0xff]
  %v71 = vld [vmem:[%s0 + $0x74] sm:$0xf]
  %v72 = vld [vmem:[%s0 + $0x78] sm:$0xff]
  %v73 = vld [vmem:[%s0 + $0x80] sm:$0xff]
  %v74 = vld [vmem:[%s0 + $0x88] sm:$0xf]
  %v75 = vld [vmem:[%s0 + $0x8c] sm:$0xff]
  %v76 = vld [vmem:[%s0 + $0x94] sm:$0xff]
  %v77 = vld [vmem:[%s0 + $0x9c] sm:$0xf]
  %v78 = vld [vmem:[%s0 + $0xa0] sm:$0xff]
  %v79 = vld [vmem:[%s0 + $0xa8] sm:$0xff]
  %v80 = vld [vmem:[%s0 + $0xb0] sm:$0xf]
  %v81 = vld [vmem:[%s0 + $0xb4] sm:$0xff]
  %v82 = vld [vmem:[%s0 + $0xbc] sm:$0xff]
  %v83 = vld [vmem:[%s0 + $0xc4] sm:$0xf]
  %v84 = vld [vmem:[%s0 + $0xc8] sm:$0xff]
  %v85 = vld [vmem:[%s0 + $0xd0] sm:$0xff]
  %v86 = vld [vmem:[%s0 + $0xd8] sm:$0xf]
  %v87 = vld [vmem:[%s0 + $0xdc] sm:$0xff]
  %v88 = vld [vmem:[%s0 + $0xe4] sm:$0xff]
  %v89 = vld [vmem:[%s0 + $0xec] sm:$0xf]
  %v90 = vld [vmem:[%s0 + $0xf0] sm:$0xff]
  %v91 = vld [vmem:[%s0 + $0xf8] sm:$0xff]
  %v92 = vld [vmem:[%s0 + $0x100] sm:$0xf]
  %v93 = vld [vmem:[%s0 + $0x104] sm:$0xff]
  %v94 = vld [vmem:[%s0 + $0x10c] sm:$0xff]
  %v95 = vld [vmem:[%s0 + $0x114] sm:$0xf]
  %v96 = vld [vmem:[%s0 + $0x118] sm:$0xff]
  %v97 = vld [vmem:[%s0 + $0x120] sm:$0xff]
  %v98 = vld [vmem:[%s0 + $0x128] sm:$0xf]
  %v99 = vld [vmem:[%s0 + $0x12c] sm:$0xff]
  %v100 = vld [vmem:[%s0 + $0x134] sm:$0xff]
  %v101 = vld [vmem:[%s0 + $0x13c] sm:$0xf]
  %v102 = vld [vmem:[%s1] sm:$0xf]
  %v103 = vld [vmem:[%s1 + $0x4] sm:$0xf]
  %v104 = vld [vmem:[%s1 + $0x8] sm:$0xf]
  %v105 = vld [vmem:[%s1 + $0xc] sm:$0xf]
  %v106 = vld [vmem:[%s1 + $0x10] sm:$0xf]
  %v107 = vld [vmem:[%s1 + $0x14] sm:$0xf]
  %v108 = vld [vmem:[%s1 + $0x18] sm:$0xf]
  %v109 = vld [vmem:[%s1 + $0x1c] sm:$0xf]
  %v110 = vld [vmem:[%s1 + $0x20] sm:$0xf]
  %v111 = vld [vmem:[%s1 + $0x24] sm:$0xf]
  %v112 = vld [vmem:[%s1 + $0x28] sm:$0xf]
  %v113 = vld [vmem:[%s1 + $0x2c] sm:$0xf]
  %v114 = vld [vmem:[%s1 + $0x30] sm:$0xf]
  %v115 = vld [vmem:[%s1 + $0x34] sm:$0xf]
  %v116 = vld [vmem:[%s1 + $0x38] sm:$0xf]
  %v117 = vld [vmem:[%s1 + $0x3c] sm:$0xf]
  %v118 = vld [vmem:[%s1 + $0x40] sm:$0xf]
  %v119 = vld [vmem:[%s1 + $0x44] sm:$0xf]
  %v120 = vld [vmem:[%s1 + $0x48] sm:$0xf]
  %v121 = vld [vmem:[%s1 + $0x4c] sm:$0xf]
  %v122 = vld [vmem:[%s1 + $0x50] sm:$0xf]
  %v123 = vld [vmem:[%s1 + $0x54] sm:$0xf]
  %v124 = vld [vmem:[%s1 + $0x58] sm:$0xf]
  %v125 = vld [vmem:[%s1 + $0x5c] sm:$0xf]
  %v126 = vld [vmem:[%s1 + $0x60] sm:$0xf]
  %v127 = vld [vmem:[%s1 + $0x64] sm:$0xf]
  %v128 = vld [vmem:[%s1 + $0x68] sm:$0xf]
  %v129 = vld [vmem:[%s1 + $0x6c] sm:$0xf]
  %v130 = vld [vmem:[%s1 + $0x70] sm:$0xf]
  %v131 = vld [vmem:[%s1 + $0x74] sm:$0xf]
  %v132 = vld [vmem:[%s1 + $0x78] sm:$0xf]
  %v133 = vld [vmem:[%s1 + $0x7c] sm:$0xf]
  %v134 = vld [vmem:[%s1 + $0x80] sm:$0xf]
  %v135 = vld [vmem:[%s1 + $0x84] sm:$0xf]
  %v136 = vld [vmem:[%s1 + $0x88] sm:$0xf]
  %v137 = vld [vmem:[%s1 + $0x8c] sm:$0xf]
  %v138 = vld [vmem:[%s1 + $0x90] sm:$0xf]
  %v139 = vld [vmem:[%s1 + $0x94] sm:$0xf]
  %v140 = vld [vmem:[%s1 + $0x98] sm:$0xf]
  %v141 = vld [vmem:[%s1 + $0x9c] sm:$0xf]
  %v142 = vld [vmem:[%s1 + $0xa0] sm:$0xf]
  %v143 = vld [vmem:[%s1 + $0xa4] sm:$0xf]
  %v144 = vld [vmem:[%s1 + $0xa8] sm:$0xf]
  %v145 = vld [vmem:[%s1 + $0xac] sm:$0xf]
  %v146 = vld [vmem:[%s1 + $0xb0] sm:$0xf]
  %v147 = vld [vmem:[%s1 + $0xb4] sm:$0xf]
  %v148 = vld [vmem:[%s1 + $0xb8] sm:$0xf]
  %v149 = vld [vmem:[%s1 + $0xbc] sm:$0xf]
  %v150 = vld [vmem:[%s1 + $0xc0] sm:$0xf]
  %v151 = vld [vmem:[%s1 + $0xc4] sm:$0xf]
  %v152 = vld [vmem:[%s1 + $0xc8] sm:$0xf]
  %v153 = vld [vmem:[%s1 + $0xcc] sm:$0xf]
  %v154 = vld [vmem:[%s1 + $0xd0] sm:$0xf]
  %v155 = vld [vmem:[%s1 + $0xd4] sm:$0xf]
  %v156 = vld [vmem:[%s1 + $0xd8] sm:$0xf]
  %v157 = vld [vmem:[%s1 + $0xdc] sm:$0xf]
  %v158 = vld [vmem:[%s1 + $0xe0] sm:$0xf]
  %v159 = vld [vmem:[%s1 + $0xe4] sm:$0xf]
  %v160 = vld [vmem:[%s1 + $0xe8] sm:$0xf]
  %v161 = vld [vmem:[%s1 + $0xec] sm:$0xf]
  %v162 = vld [vmem:[%s1 + $0xf0] sm:$0xf]
  %v163 = vld [vmem:[%s1 + $0xf4] sm:$0xf]
  %v164 = vld [vmem:[%s1 + $0xf8] sm:$0xf]
  %v165 = vld [vmem:[%s1 + $0xfc] sm:$0xf]
  %v166 = vld [vmem:[%s1 + $0x100] sm:$0xf]
  %v167 = vld [vmem:[%s1 + $0x104] sm:$0xf]
  %v168 = vld [vmem:[%s1 + $0x108] sm:$0xf]
  %v169 = vld [vmem:[%s1 + $0x10c] sm:$0xf]
  %v170 = vld [vmem:[%s1 + $0x110] sm:$0xf]
  %v171 = vld [vmem:[%s1 + $0x114] sm:$0xf]
  %v172 = vld [vmem:[%s1 + $0x118] sm:$0xf]
  %v173 = vld [vmem:[%s1 + $0x11c] sm:$0xf]
  %v174 = vld [vmem:[%s1 + $0x120] sm:$0xf]
  %v175 = vld [vmem:[%s1 + $0x124] sm:$0xf]
  %v176 = vld [vmem:[%s1 + $0x128] sm:$0xf]
  %v177 = vld [vmem:[%s1 + $0x12c] sm:$0xf]
  %v178 = vld [vmem:[%s1 + $0x130] sm:$0xf]
  %v179 = vld [vmem:[%s1 + $0x134] sm:$0xf]
  %v180 = vld [vmem:[%s1 + $0x138] sm:$0xf]
  %v181 = vld [vmem:[%s1 + $0x13c] sm:$0xf]
  %v230 = vunpack.c.l.b16 %v54
  %v231 = vunpack.c.h.b16 %v54
  %v232 = vunpack.c.l.b16 %v55
  %v233 = vunpack.c.h.b16 %v55
  %v234 = vunpack.c.l.b16 %v56
  %v235 = vunpack.c.l.b16 %v57
  %v236 = vunpack.c.h.b16 %v57
  %v237 = vunpack.c.l.b16 %v58
  %v238 = vunpack.c.h.b16 %v58
  %v239 = vunpack.c.l.b16 %v59
  %v240 = vunpack.c.l.b16 %v60
  %v241 = vunpack.c.h.b16 %v60
  %v242 = vunpack.c.l.b16 %v61
  %v243 = vunpack.c.h.b16 %v61
  %v244 = vunpack.c.l.b16 %v62
  %v245 = vunpack.c.l.b16 %v63
  %v246 = vunpack.c.h.b16 %v63
  %v247 = vunpack.c.l.b16 %v64
  %v248 = vunpack.c.h.b16 %v64
  %v249 = vunpack.c.l.b16 %v65
  %v250 = vunpack.c.l.b16 %v66
  %v251 = vunpack.c.h.b16 %v66
  %v252 = vunpack.c.l.b16 %v67
  %v253 = vunpack.c.h.b16 %v67
  %v254 = vunpack.c.l.b16 %v68
  %v255 = vunpack.c.l.b16 %v69
  %v256 = vunpack.c.h.b16 %v69
  %v257 = vunpack.c.l.b16 %v70
  %v258 = vunpack.c.h.b16 %v70
  %v259 = vunpack.c.l.b16 %v71
  %v260 = vunpack.c.l.b16 %v72
  %v261 = vunpack.c.h.b16 %v72
  %v262 = vunpack.c.l.b16 %v73
  %v263 = vunpack.c.h.b16 %v73
  %v264 = vunpack.c.l.b16 %v74
  %v265 = vunpack.c.l.b16 %v75
  %v266 = vunpack.c.h.b16 %v75
  %v267 = vunpack.c.l.b16 %v76
  %v268 = vunpack.c.h.b16 %v76
  %v269 = vunpack.c.l.b16 %v77
  %v270 = vunpack.c.l.b16 %v78
  %v271 = vunpack.c.h.b16 %v78
  %v272 = vunpack.c.l.b16 %v79
  %v273 = vunpack.c.h.b16 %v79
  %v274 = vunpack.c.l.b16 %v80
  %v275 = vunpack.c.l.b16 %v81
  %v276 = vunpack.c.h.b16 %v81
  %v277 = vunpack.c.l.b16 %v82
  %v278 = vunpack.c.h.b16 %v82
  %v279 = vunpack.c.l.b16 %v83
  %v280 = vunpack.c.l.b16 %v84
  %v281 = vunpack.c.h.b16 %v84
  %v282 = vunpack.c.l.b16 %v85
  %v283 = vunpack.c.h.b16 %v85
  %v284 = vunpack.c.l.b16 %v86
  %v285 = vunpack.c.l.b16 %v87
  %v286 = vunpack.c.h.b16 %v87
  %v287 = vunpack.c.l.b16 %v88
  %v288 = vunpack.c.h.b16 %v88
  %v289 = vunpack.c.l.b16 %v89
  %v290 = vunpack.c.l.b16 %v90
  %v291 = vunpack.c.h.b16 %v90
  %v292 = vunpack.c.l.b16 %v91
  %v293 = vunpack.c.h.b16 %v91
  %v294 = vunpack.c.l.b16 %v92
  %v295 = vunpack.c.l.b16 %v93
  %v296 = vunpack.c.h.b16 %v93
  %v297 = vunpack.c.l.b16 %v94
  %v298 = vunpack.c.h.b16 %v94
  %v299 = vunpack.c.l.b16 %v95
  %v300 = vunpack.c.l.b16 %v96
  %v301 = vunpack.c.h.b16 %v96
  %v302 = vunpack.c.l.b16 %v97
  %v303 = vunpack.c.h.b16 %v97
  %v304 = vunpack.c.l.b16 %v98
  %v305 = vunpack.c.l.b16 %v99
  %v306 = vunpack.c.h.b16 %v99
  %v307 = vunpack.c.l.b16 %v100
  %v308 = vunpack.c.h.b16 %v100
  %v309 = vunpack.c.l.b16 %v101
  %v310 = vpack.c.b16 %v235, %v230
  %v311 = vpack.c.b16 %v236, %v231
  %v312 = vpack.c.b16 %v237, %v232
  %v313 = vpack.c.b16 %v238, %v233
  %v314 = vpack.c.b16 %v239, %v234
  %v315 = vpack.c.b16 %v245, %v240
  %v316 = vpack.c.b16 %v246, %v241
  %v317 = vpack.c.b16 %v247, %v242
  %v318 = vpack.c.b16 %v248, %v243
  %v319 = vpack.c.b16 %v249, %v244
  %v320 = vpack.c.b16 %v255, %v250
  %v321 = vpack.c.b16 %v256, %v251
  %v322 = vpack.c.b16 %v257, %v252
  %v323 = vpack.c.b16 %v258, %v253
  %v324 = vpack.c.b16 %v259, %v254
  %v325 = vpack.c.b16 %v265, %v260
  %v326 = vpack.c.b16 %v266, %v261
  %v327 = vpack.c.b16 %v267, %v262
  %v328 = vpack.c.b16 %v268, %v263
  %v329 = vpack.c.b16 %v269, %v264
  %v330 = vpack.c.b16 %v275, %v270
  %v331 = vpack.c.b16 %v276, %v271
  %v332 = vpack.c.b16 %v277, %v272
  %v333 = vpack.c.b16 %v278, %v273
  %v334 = vpack.c.b16 %v279, %v274
  %v335 = vpack.c.b16 %v285, %v280
  %v336 = vpack.c.b16 %v286, %v281
  %v337 = vpack.c.b16 %v287, %v282
  %v338 = vpack.c.b16 %v288, %v283
  %v339 = vpack.c.b16 %v289, %v284
  %v340 = vpack.c.b16 %v295, %v290
  %v341 = vpack.c.b16 %v296, %v291
  %v342 = vpack.c.b16 %v297, %v292
  %v343 = vpack.c.b16 %v298, %v293
  %v344 = vpack.c.b16 %v299, %v294
  %v345 = vpack.c.b16 %v305, %v300
  %v346 = vpack.c.b16 %v306, %v301
  %v347 = vpack.c.b16 %v307, %v302
  %v348 = vpack.c.b16 %v308, %v303
  %v349 = vpack.c.b16 %v309, %v304
  %v470 = vunpack.c.l.b16 %v102
  %v471 = vunpack.c.l.b16 %v103
  %v472 = vunpack.c.l.b16 %v104
  %v473 = vunpack.c.l.b16 %v105
  %v474 = vunpack.c.l.b16 %v106
  %v475 = vunpack.c.l.b16 %v107
  %v476 = vunpack.c.l.b16 %v108
  %v477 = vunpack.c.l.b16 %v109
  %v478 = vunpack.c.l.b16 %v110
  %v479 = vunpack.c.l.b16 %v111
  %v480 = vunpack.c.l.b16 %v112
  %v481 = vunpack.c.l.b16 %v113
  %v482 = vunpack.c.l.b16 %v114
  %v483 = vunpack.c.l.b16 %v115
  %v484 = vunpack.c.l.b16 %v116
  %v485 = vunpack.c.l.b16 %v117
  %v486 = vunpack.c.l.b16 %v118
  %v487 = vunpack.c.l.b16 %v119
  %v488 = vunpack.c.l.b16 %v120
  %v489 = vunpack.c.l.b16 %v121
  %v490 = vunpack.c.l.b16 %v122
  %v491 = vunpack.c.l.b16 %v123
  %v492 = vunpack.c.l.b16 %v124
  %v493 = vunpack.c.l.b16 %v125
  %v494 = vunpack.c.l.b16 %v126
  %v495 = vunpack.c.l.b16 %v127
  %v496 = vunpack.c.l.b16 %v128
  %v497 = vunpack.c.l.b16 %v129
  %v498 = vunpack.c.l.b16 %v130
  %v499 = vunpack.c.l.b16 %v131
  %v500 = vunpack.c.l.b16 %v132
  %v501 = vunpack.c.l.b16 %v133
  %v502 = vunpack.c.l.b16 %v134
  %v503 = vunpack.c.l.b16 %v135
  %v504 = vunpack.c.l.b16 %v136
  %v505 = vunpack.c.l.b16 %v137
  %v506 = vunpack.c.l.b16 %v138
  %v507 = vunpack.c.l.b16 %v139
  %v508 = vunpack.c.l.b16 %v140
  %v509 = vunpack.c.l.b16 %v141
  %v510 = vunpack.c.l.b16 %v142
  %v511 = vunpack.c.l.b16 %v143
  %v512 = vunpack.c.l.b16 %v144
  %v513 = vunpack.c.l.b16 %v145
  %v514 = vunpack.c.l.b16 %v146
  %v515 = vunpack.c.l.b16 %v147
  %v516 = vunpack.c.l.b16 %v148
  %v517 = vunpack.c.l.b16 %v149
  %v518 = vunpack.c.l.b16 %v150
  %v519 = vunpack.c.l.b16 %v151
  %v520 = vunpack.c.l.b16 %v152
  %v521 = vunpack.c.l.b16 %v153
  %v522 = vunpack.c.l.b16 %v154
  %v523 = vunpack.c.l.b16 %v155
  %v524 = vunpack.c.l.b16 %v156
  %v525 = vunpack.c.l.b16 %v157
  %v526 = vunpack.c.l.b16 %v158
  %v527 = vunpack.c.l.b16 %v159
  %v528 = vunpack.c.l.b16 %v160
  %v529 = vunpack.c.l.b16 %v161
  %v530 = vunpack.c.l.b16 %v162
  %v531 = vunpack.c.l.b16 %v163
  %v532 = vunpack.c.l.b16 %v164
  %v533 = vunpack.c.l.b16 %v165
  %v534 = vunpack.c.l.b16 %v166
  %v535 = vunpack.c.l.b16 %v167
  %v536 = vunpack.c.l.b16 %v168
  %v537 = vunpack.c.l.b16 %v169
  %v538 = vunpack.c.l.b16 %v170
  %v539 = vunpack.c.l.b16 %v171
  %v540 = vunpack.c.l.b16 %v172
  %v541 = vunpack.c.l.b16 %v173
  %v542 = vunpack.c.l.b16 %v174
  %v543 = vunpack.c.l.b16 %v175
  %v544 = vunpack.c.l.b16 %v176
  %v545 = vunpack.c.l.b16 %v177
  %v546 = vunpack.c.l.b16 %v178
  %v547 = vunpack.c.l.b16 %v179
  %v548 = vunpack.c.l.b16 %v180
  %v549 = vunpack.c.l.b16 %v181
  %v550 = vpack.c.b16 %v471, %v470
  %v551 = vpack.c.b16 %v473, %v472
  %v552 = vpack.c.b16 %v475, %v474
  %v553 = vpack.c.b16 %v477, %v476
  %v554 = vpack.c.b16 %v479, %v478
  %v555 = vpack.c.b16 %v481, %v480
  %v556 = vpack.c.b16 %v483, %v482
  %v557 = vpack.c.b16 %v485, %v484
  %v558 = vpack.c.b16 %v487, %v486
  %v559 = vpack.c.b16 %v489, %v488
  %v560 = vpack.c.b16 %v491, %v490
  %v561 = vpack.c.b16 %v493, %v492
  %v562 = vpack.c.b16 %v495, %v494
  %v563 = vpack.c.b16 %v497, %v496
  %v564 = vpack.c.b16 %v499, %v498
  %v565 = vpack.c.b16 %v501, %v500
  %v566 = vpack.c.b16 %v503, %v502
  %v567 = vpack.c.b16 %v505, %v504
  %v568 = vpack.c.b16 %v507, %v506
  %v569 = vpack.c.b16 %v509, %v508
  %v570 = vpack.c.b16 %v511, %v510
  %v571 = vpack.c.b16 %v513, %v512
  %v572 = vpack.c.b16 %v515, %v514
  %v573 = vpack.c.b16 %v517, %v516
  %v574 = vpack.c.b16 %v519, %v518
  %v575 = vpack.c.b16 %v521, %v520
  %v576 = vpack.c.b16 %v523, %v522
  %v577 = vpack.c.b16 %v525, %v524
  %v578 = vpack.c.b16 %v527, %v526
  %v579 = vpack.c.b16 %v529, %v528
  %v580 = vpack.c.b16 %v531, %v530
  %v581 = vpack.c.b16 %v533, %v532
  %v582 = vpack.c.b16 %v535, %v534
  %v583 = vpack.c.b16 %v537, %v536
  %v584 = vpack.c.b16 %v539, %v538
  %v585 = vpack.c.b16 %v541, %v540
  %v586 = vpack.c.b16 %v543, %v542
  %v587 = vpack.c.b16 %v545, %v544
  %v588 = vpack.c.b16 %v547, %v546
  %v589 = vpack.c.b16 %v549, %v548
  %630 = vmatprep.subr.bf16.mxu0 0
  %631 = vmatpush1.bf16.msra.mxu0 %v557
  %632 = vmatprep.subr.bf16.mxu0 0
  %633 = vmatpush1.bf16.msra.mxu0 %v556
  %634 = vmatprep.subr.bf16.mxu0 0
  %635 = vmatpush1.bf16.msra.mxu0 %v555
  %636 = vmatprep.subr.bf16.mxu0 0
  %637 = vmatpush1.bf16.msra.mxu0 %v554
  %638 = vmatprep.subr.bf16.mxu0 0
  %639 = vmatpush1.bf16.msra.mxu0 %v553
  %640 = vmatprep.subr.bf16.mxu0 0
  %641 = vmatpush1.bf16.msra.mxu0 %v552
  %642 = vmatprep.subr.bf16.mxu0 0
  %643 = vmatpush1.bf16.msra.mxu0 %v551
  %644 = vmatprep.subr.bf16.mxu0 0
  %645 = vmatpush1.bf16.msra.mxu0 %v550
  %646 = vmatprep.subr.bf16.mxu0 0
  %647 = vmatpush2.bf16.msra.mxu0 %v565
  %648 = vmatprep.subr.bf16.mxu0 0
  %649 = vmatpush2.bf16.msra.mxu0 %v564
  %650 = vmatprep.subr.bf16.mxu0 0
  %651 = vmatpush2.bf16.msra.mxu0 %v563
  %652 = vmatprep.subr.bf16.mxu0 0
  %653 = vmatpush2.bf16.msra.mxu0 %v562
  %654 = vmatprep.subr.bf16.mxu0 0
  %655 = vmatpush2.bf16.msra.mxu0 %v561
  %656 = vmatprep.subr.bf16.mxu0 0
  %657 = vmatpush2.bf16.msra.mxu0 %v560
  %658 = vmatprep.subr.bf16.mxu0 0
  %659 = vmatpush2.bf16.msra.mxu0 %v559
  %660 = vmatprep.subr.bf16.mxu0 0
  %661 = vmatpush2.bf16.msra.mxu0 %v558
  %662 = vmatprep.mubr.bf16.mxu0 %v311
  %663 = vmatmul.mubr.bf16.gmra.mxu0 %v310
  %v664 = vpop.f32.mrf.mxu0
  %v665 = vadd.f32 0.0, %v664
  %v666 = vpop.f32.mrf.mxu0
  %v667 = vpop.f32.mrf.mxu0
  %v668 = vadd.f32 0.0, %v667
  %v669 = vpop.f32.mrf.mxu0
  %670 = vmatprep.mubr.bf16.mxu0 %v316
  %671 = vmatmul.mubr.bf16.gmra.mxu0 %v315
  %v672 = vpop.f32.mrf.mxu0
  %v673 = vadd.f32 0.0, %v672
  %v674 = vpop.f32.mrf.mxu0
  %v675 = vpop.f32.mrf.mxu0
  %v676 = vadd.f32 0.0, %v675
  %v677 = vpop.f32.mrf.mxu0
  %678 = vmatprep.mubr.bf16.mxu0 %v321
  %679 = vmatmul.mubr.bf16.gmra.mxu0 %v320
  %v680 = vpop.f32.mrf.mxu0
  %v681 = vadd.f32 0.0, %v680
  %v682 = vpop.f32.mrf.mxu0
  %v683 = vpop.f32.mrf.mxu0
  %v684 = vadd.f32 0.0, %v683
  %v685 = vpop.f32.mrf.mxu0
  %686 = vmatprep.mubr.bf16.mxu0 %v326
  %687 = vmatmul.mubr.bf16.gmra.mxu0 %v325
  %v688 = vpop.f32.mrf.mxu0
  %v689 = vadd.f32 0.0, %v688
  %v690 = vpop.f32.mrf.mxu0
  %v691 = vpop.f32.mrf.mxu0
  %v692 = vadd.f32 0.0, %v691
  %v693 = vpop.f32.mrf.mxu0
  %694 = vmatprep.mubr.bf16.mxu0 %v331
  %695 = vmatmul.mubr.bf16.gmra.mxu0 %v330
  %v696 = vpop.f32.mrf.mxu0
  %v697 = vadd.f32 0.0, %v696
  %v698 = vpop.f32.mrf.mxu0
  %v699 = vpop.f32.mrf.mxu0
  %v700 = vadd.f32 0.0, %v699
  %v701 = vpop.f32.mrf.mxu0
  %702 = vmatprep.mubr.bf16.mxu0 %v336
  %703 = vmatmul.mubr.bf16.gmra.mxu0 %v335
  %v704 = vpop.f32.mrf.mxu0
  %v705 = vadd.f32 0.0, %v704
  %v706 = vpop.f32.mrf.mxu0
  %v707 = vpop.f32.mrf.mxu0
  %v708 = vadd.f32 0.0, %v707
  %v709 = vpop.f32.mrf.mxu0
  %710 = vmatprep.mubr.bf16.mxu0 %v341
  %711 = vmatmul.mubr.bf16.gmra.mxu0 %v340
  %v712 = vpop.f32.mrf.mxu0
  %v713 = vadd.f32 0.0, %v712
  %v714 = vpop.f32.mrf.mxu0
  %v715 = vpop.f32.mrf.mxu0
  %v716 = vadd.f32 0.0, %v715
  %v717 = vpop.f32.mrf.mxu0
  %718 = vmatprep.mubr.bf16.mxu0 %v346
  %719 = vmatmul.mubr.bf16.gmra.mxu0 %v345
  %v720 = vpop.f32.mrf.mxu0
  %v721 = vadd.f32 0.0, %v720
  %v722 = vpop.f32.mrf.mxu0
  %v723 = vpop.f32.mrf.mxu0
  %v724 = vadd.f32 0.0, %v723
  %v725 = vpop.f32.mrf.mxu0
  %726 = vdwg.mxu0
  %727 = vmatprep.subr.bf16.mxu0 0
  %728 = vmatpush1.bf16.msra.mxu0 %v573
  %729 = vmatprep.subr.bf16.mxu0 0
  %730 = vmatpush1.bf16.msra.mxu0 %v572
  %731 = vmatprep.subr.bf16.mxu0 0
  %732 = vmatpush1.bf16.msra.mxu0 %v571
  %733 = vmatprep.subr.bf16.mxu0 0
  %734 = vmatpush1.bf16.msra.mxu0 %v570
  %735 = vmatprep.subr.bf16.mxu0 0
  %736 = vmatpush1.bf16.msra.mxu0 %v569
  %737 = vmatprep.subr.bf16.mxu0 0
  %738 = vmatpush1.bf16.msra.mxu0 %v568
  %739 = vmatprep.subr.bf16.mxu0 0
  %740 = vmatpush1.bf16.msra.mxu0 %v567
  %741 = vmatprep.subr.bf16.mxu0 0
  %742 = vmatpush1.bf16.msra.mxu0 %v566
  %743 = vmatprep.subr.bf16.mxu0 0
  %744 = vmatpush2.bf16.msra.mxu0 %v581
  %745 = vmatprep.subr.bf16.mxu0 0
  %746 = vmatpush2.bf16.msra.mxu0 %v580
  %747 = vmatprep.subr.bf16.mxu0 0
  %748 = vmatpush2.bf16.msra.mxu0 %v579
  %749 = vmatprep.subr.bf16.mxu0 0
  %750 = vmatpush2.bf16.msra.mxu0 %v578
  %751 = vmatprep.subr.bf16.mxu0 0
  %752 = vmatpush2.bf16.msra.mxu0 %v577
  %753 = vmatprep.subr.bf16.mxu0 0
  %754 = vmatpush2.bf16.msra.mxu0 %v576
  %755 = vmatprep.subr.bf16.mxu0 0
  %756 = vmatpush2.bf16.msra.mxu0 %v575
  %757 = vmatprep.subr.bf16.mxu0 0
  %758 = vmatpush2.bf16.msra.mxu0 %v574
  %759 = vmatprep.mubr.bf16.mxu0 %v313
  %760 = vmatmul.mubr.bf16.gmra.mxu0 %v312
  %v761 = vpop.f32.mrf.mxu0
  %v762 = vadd.f32 %v665, %v761
  %v763 = vpop.f32.mrf.mxu0
  %v764 = vpop.f32.mrf.mxu0
  %v765 = vadd.f32 %v668, %v764
  %v766 = vpop.f32.mrf.mxu0
  %767 = vmatprep.mubr.bf16.mxu0 %v318
  %768 = vmatmul.mubr.bf16.gmra.mxu0 %v317
  %v769 = vpop.f32.mrf.mxu0
  %v770 = vadd.f32 %v673, %v769
  %v771 = vpop.f32.mrf.mxu0
  %v772 = vpop.f32.mrf.mxu0
  %v773 = vadd.f32 %v676, %v772
  %v774 = vpop.f32.mrf.mxu0
  %775 = vmatprep.mubr.bf16.mxu0 %v323
  %776 = vmatmul.mubr.bf16.gmra.mxu0 %v322
  %v777 = vpop.f32.mrf.mxu0
  %v778 = vadd.f32 %v681, %v777
  %v779 = vpop.f32.mrf.mxu0
  %v780 = vpop.f32.mrf.mxu0
  %v781 = vadd.f32 %v684, %v780
  %v782 = vpop.f32.mrf.mxu0
  %783 = vmatprep.mubr.bf16.mxu0 %v328
  %784 = vmatmul.mubr.bf16.gmra.mxu0 %v327
  %v785 = vpop.f32.mrf.mxu0
  %v786 = vadd.f32 %v689, %v785
  %v787 = vpop.f32.mrf.mxu0
  %v788 = vpop.f32.mrf.mxu0
  %v789 = vadd.f32 %v692, %v788
  %v790 = vpop.f32.mrf.mxu0
  %791 = vmatprep.mubr.bf16.mxu0 %v333
  %792 = vmatmul.mubr.bf16.gmra.mxu0 %v332
  %v793 = vpop.f32.mrf.mxu0
  %v794 = vadd.f32 %v697, %v793
  %v795 = vpop.f32.mrf.mxu0
  %v796 = vpop.f32.mrf.mxu0
  %v797 = vadd.f32 %v700, %v796
  %v798 = vpop.f32.mrf.mxu0
  %799 = vmatprep.mubr.bf16.mxu0 %v338
  %800 = vmatmul.mubr.bf16.gmra.mxu0 %v337
  %v801 = vpop.f32.mrf.mxu0
  %v802 = vadd.f32 %v705, %v801
  %v803 = vpop.f32.mrf.mxu0
  %v804 = vpop.f32.mrf.mxu0
  %v805 = vadd.f32 %v708, %v804
  %v806 = vpop.f32.mrf.mxu0
  %807 = vmatprep.mubr.bf16.mxu0 %v343
  %808 = vmatmul.mubr.bf16.gmra.mxu0 %v342
  %v809 = vpop.f32.mrf.mxu0
  %v810 = vadd.f32 %v713, %v809
  %v811 = vpop.f32.mrf.mxu0
  %v812 = vpop.f32.mrf.mxu0
  %v813 = vadd.f32 %v716, %v812
  %v814 = vpop.f32.mrf.mxu0
  %815 = vmatprep.mubr.bf16.mxu0 %v348
  %816 = vmatmul.mubr.bf16.gmra.mxu0 %v347
  %v817 = vpop.f32.mrf.mxu0
  %v818 = vadd.f32 %v721, %v817
  %v819 = vpop.f32.mrf.mxu0
  %v820 = vpop.f32.mrf.mxu0
  %v821 = vadd.f32 %v724, %v820
  %v822 = vpop.f32.mrf.mxu0
  %823 = vdwg.mxu0
  %824 = vmatprep.subr.bf16.mxu0 0
  %825 = vmatpush1.bf16.msra.mxu0 %v589
  %826 = vmatprep.subr.bf16.mxu0 0
  %827 = vmatpush1.bf16.msra.mxu0 %v588
  %828 = vmatprep.subr.bf16.mxu0 0
  %829 = vmatpush1.bf16.msra.mxu0 %v587
  %830 = vmatprep.subr.bf16.mxu0 0
  %831 = vmatpush1.bf16.msra.mxu0 %v586
  %832 = vmatprep.subr.bf16.mxu0 0
  %833 = vmatpush1.bf16.msra.mxu0 %v585
  %834 = vmatprep.subr.bf16.mxu0 0
  %835 = vmatpush1.bf16.msra.mxu0 %v584
  %836 = vmatprep.subr.bf16.mxu0 0
  %837 = vmatpush1.bf16.msra.mxu0 %v583
  %838 = vmatprep.subr.bf16.mxu0 0
  %839 = vmatpush1.bf16.msra.mxu0 %v582
  %840 = vmatprep.subr.bf16.mxu0 0
  %841 = vmatpush2.bf16.msra.mxu0 0
  %842 = vmatprep.subr.bf16.mxu0 0
  %843 = vmatpush2.bf16.msra.mxu0 0
  %844 = vmatprep.subr.bf16.mxu0 0
  %845 = vmatpush2.bf16.msra.mxu0 0
  %846 = vmatprep.subr.bf16.mxu0 0
  %847 = vmatpush2.bf16.msra.mxu0 0
  %848 = vmatprep.subr.bf16.mxu0 0
  %849 = vmatpush2.bf16.msra.mxu0 0
  %850 = vmatprep.subr.bf16.mxu0 0
  %851 = vmatpush2.bf16.msra.mxu0 0
  %852 = vmatprep.subr.bf16.mxu0 0
  %853 = vmatpush2.bf16.msra.mxu0 0
  %854 = vmatprep.subr.bf16.mxu0 0
  %855 = vmatpush2.bf16.msra.mxu0 0
  %856 = vmatprep.mubr.bf16.mxu0 0
  %857 = vmatmul.mubr.bf16.gmra.mxu0 %v314
  %v858 = vpop.f32.mrf.mxu0
  %v859 = vadd.f32 %v762, %v858
  %v860 = vpop.f32.mrf.mxu0
  %v861 = vpop.f32.mrf.mxu0
  %v862 = vadd.f32 %v765, %v861
  %v863 = vpop.f32.mrf.mxu0
  %864 = vmatprep.mubr.bf16.mxu0 0
  %865 = vmatmul.mubr.bf16.gmra.mxu0 %v319
  %v866 = vpop.f32.mrf.mxu0
  %v867 = vadd.f32 %v770, %v866
  %v868 = vpop.f32.mrf.mxu0
  %v869 = vpop.f32.mrf.mxu0
  %v870 = vadd.f32 %v773, %v869
  %v871 = vpop.f32.mrf.mxu0
  %872 = vmatprep.mubr.bf16.mxu0 0
  %873 = vmatmul.mubr.bf16.gmra.mxu0 %v324
  %v874 = vpop.f32.mrf.mxu0
  %v875 = vadd.f32 %v778, %v874
  %v876 = vpop.f32.mrf.mxu0
  %v877 = vpop.f32.mrf.mxu0
  %v878 = vadd.f32 %v781, %v877
  %v879 = vpop.f32.mrf.mxu0
  %880 = vmatprep.mubr.bf16.mxu0 0
  %881 = vmatmul.mubr.bf16.gmra.mxu0 %v329
  %v882 = vpop.f32.mrf.mxu0
  %v883 = vadd.f32 %v786, %v882
  %v884 = vpop.f32.mrf.mxu0
  %v885 = vpop.f32.mrf.mxu0
  %v886 = vadd.f32 %v789, %v885
  %v887 = vpop.f32.mrf.mxu0
  %888 = vmatprep.mubr.bf16.mxu0 0
  %889 = vmatmul.mubr.bf16.gmra.mxu0 %v334
  %v890 = vpop.f32.mrf.mxu0
  %v891 = vadd.f32 %v794, %v890
  %v892 = vpop.f32.mrf.mxu0
  %v893 = vpop.f32.mrf.mxu0
  %v894 = vadd.f32 %v797, %v893
  %v895 = vpop.f32.mrf.mxu0
  %896 = vmatprep.mubr.bf16.mxu0 0
  %897 = vmatmul.mubr.bf16.gmra.mxu0 %v339
  %v898 = vpop.f32.mrf.mxu0
  %v899 = vadd.f32 %v802, %v898
  %v900 = vpop.f32.mrf.mxu0
  %v901 = vpop.f32.mrf.mxu0
  %v902 = vadd.f32 %v805, %v901
  %v903 = vpop.f32.mrf.mxu0
  %904 = vmatprep.mubr.bf16.mxu0 0
  %905 = vmatmul.mubr.bf16.gmra.mxu0 %v344
  %v906 = vpop.f32.mrf.mxu0
  %v907 = vadd.f32 %v810, %v906
  %v908 = vpop.f32.mrf.mxu0
  %v909 = vpop.f32.mrf.mxu0
  %v910 = vadd.f32 %v813, %v909
  %v911 = vpop.f32.mrf.mxu0
  %912 = vmatprep.mubr.bf16.mxu0 0
  %913 = vmatmul.mubr.bf16.gmra.mxu0 %v349
  %v914 = vpop.f32.mrf.mxu0
  %v915 = vadd.f32 %v818, %v914
  %v916 = vpop.f32.mrf.mxu0
  %v917 = vpop.f32.mrf.mxu0
  %v918 = vadd.f32 %v821, %v917
  %v919 = vpop.f32.mrf.mxu0
  %920 = vdwg.mxu0
  %v921 = vadd.f32 %v38, %v859
  %v922 = vadd.f32 %v39, %v862
  %v923 = vadd.f32 %v40, %v867
  %v924 = vadd.f32 %v41, %v870
  %v925 = vadd.f32 %v42, %v875
  %v926 = vadd.f32 %v43, %v878
  %v927 = vadd.f32 %v44, %v883
  %v928 = vadd.f32 %v45, %v886
  %v929 = vadd.f32 %v46, %v891
  %v930 = vadd.f32 %v47, %v894
  %v931 = vadd.f32 %v48, %v899
  %v932 = vadd.f32 %v49, %v902
  %v933 = vadd.f32 %v50, %v907
  %v934 = vadd.f32 %v51, %v910
  %v935 = vadd.f32 %v52, %v915
  %v936 = vadd.f32 %v53, %v918
  %937 = vst [vmem:[#allocation2] sm:$0xff] %v921
  %938 = vst [vmem:[#allocation2 + $0x8] sm:$0xff] %v922
  %939 = vst [vmem:[#allocation2 + $0x10] sm:$0xff] %v923
  %940 = vst [vmem:[#allocation2 + $0x18] sm:$0xff] %v924
  %941 = vst [vmem:[#allocation2 + $0x20] sm:$0xff] %v925
  %942 = vst [vmem:[#allocation2 + $0x28] sm:$0xff] %v926
  %943 = vst [vmem:[#allocation2 + $0x30] sm:$0xff] %v927
  %944 = vst [vmem:[#allocation2 + $0x38] sm:$0xff] %v928
  %945 = vst [vmem:[#allocation2 + $0x40] sm:$0xff] %v929
  %946 = vst [vmem:[#allocation2 + $0x48] sm:$0xff] %v930
  %947 = vst [vmem:[#allocation2 + $0x50] sm:$0xff] %v931
  %948 = vst [vmem:[#allocation2 + $0x58] sm:$0xff] %v932
  %949 = vst [vmem:[#allocation2 + $0x60] sm:$0xff] %v933
  %950 = vst [vmem:[#allocation2 + $0x68] sm:$0xff] %v934
  %951 = vst [vmem:[#allocation2 + $0x70] sm:$0xff] %v935
  %952 = vst [vmem:[#allocation2 + $0x78] sm:$0xff] %v936
  // Predicated region
  $region22: #{resnet_forward.13} parent=0 // pred_check
    %p953 = pneg %p18
  $region23: #{resnet_forward.13} parent=0 // pred_check_branch
    %955 = sbr.rel (%p953) target = $region25
  $region24: #{resnet_forward.13} parent=0 // pred_region
    %v956 = vld [vmem:[#allocation2] sm:$0xff]
    %v957 = vld [vmem:[#allocation2 + $0x8] sm:$0xff]
    %v958 = vld [vmem:[#allocation2 + $0x10] sm:$0xff]
    %v959 = vld [vmem:[#allocation2 + $0x18] sm:$0xff]
    %v960 = vld [vmem:[#allocation2 + $0x20] sm:$0xff]
    %v961 = vld [vmem:[#allocation2 + $0x28] sm:$0xff]
    %v962 = vld [vmem:[#allocation2 + $0x30] sm:$0xff]
    %v963 = vld [vmem:[#allocation2 + $0x38] sm:$0xff]
    %v964 = vld [vmem:[#allocation2 + $0x40] sm:$0xff]
    %v965 = vld [vmem:[#allocation2 + $0x48] sm:$0xff]
    %v966 = vld [vmem:[#allocation2 + $0x50] sm:$0xff]
    %v967 = vld [vmem:[#allocation2 + $0x58] sm:$0xff]
    %v968 = vld [vmem:[#allocation2 + $0x60] sm:$0xff]
    %v969 = vld [vmem:[#allocation2 + $0x68] sm:$0xff]
    %v970 = vld [vmem:[#allocation2 + $0x70] sm:$0xff]
    %v971 = vld [vmem:[#allocation2 + $0x78] sm:$0xff]
    %v972 = vld [vmem:[%s2] sm:$0x1]
    %v974 = vlaneseq
    %v975 = vshrl.u32 %v974, 7
    %v976 = vsub.s32 0, %v975
    %v977 = vrot.slane %v972, %v976
    %v979 = vmul.f32 %v956, %v977
    %v980 = vmul.f32 %v957, %v977
    %v981 = vmul.f32 %v958, %v977
    %v982 = vmul.f32 %v959, %v977
    %v983 = vmul.f32 %v960, %v977
    %v984 = vmul.f32 %v961, %v977
    %v985 = vmul.f32 %v962, %v977
    %v986 = vmul.f32 %v963, %v977
    %v987 = vmul.f32 %v964, %v977
    %v988 = vmul.f32 %v965, %v977
    %v989 = vmul.f32 %v966, %v977
    %v990 = vmul.f32 %v967, %v977
    %v991 = vmul.f32 %v968, %v977
    %v992 = vmul.f32 %v969, %v977
    %v993 = vmul.f32 %v970, %v977
    %v994 = vmul.f32 %v971, %v977
    %v995 = vld [vmem:[%s3] sm:$0x1]
    %v997 = vlaneseq
    %v998 = vshrl.u32 %v997, 7
    %v999 = vsub.s32 0, %v998
    %v1000 = vrot.slane %v995, %v999
    %v1002 = vadd.f32 %v979, %v1000
    %v1003 = vadd.f32 %v980, %v1000
    %v1004 = vadd.f32 %v981, %v1000
    %v1005 = vadd.f32 %v982, %v1000
    %v1006 = vadd.f32 %v983, %v1000
    %v1007 = vadd.f32 %v984, %v1000
    %v1008 = vadd.f32 %v985, %v1000
    %v1009 = vadd.f32 %v986, %v1000
    %v1010 = vadd.f32 %v987, %v1000
    %v1011 = vadd.f32 %v988, %v1000
    %v1012 = vadd.f32 %v989, %v1000
    %v1013 = vadd.f32 %v990, %v1000
    %v1014 = vadd.f32 %v991, %v1000
    %v1015 = vadd.f32 %v992, %v1000
    %v1016 = vadd.f32 %v993, %v1000
    %v1017 = vadd.f32 %v994, %v1000
    %v1018 = vmax.f32 %v1002, 0.0
    %v1019 = vmax.f32 %v1003, 0.0
    %v1020 = vmax.f32 %v1004, 0.0
    %v1021 = vmax.f32 %v1005, 0.0
    %v1022 = vmax.f32 %v1006, 0.0
    %v1023 = vmax.f32 %v1007, 0.0
    %v1024 = vmax.f32 %v1008, 0.0
    %v1025 = vmax.f32 %v1009, 0.0
    %v1026 = vmax.f32 %v1010, 0.0
    %v1027 = vmax.f32 %v1011, 0.0
    %v1028 = vmax.f32 %v1012, 0.0
    %v1029 = vmax.f32 %v1013, 0.0
    %v1030 = vmax.f32 %v1014, 0.0
    %v1031 = vmax.f32 %v1015, 0.0
    %v1032 = vmax.f32 %v1016, 0.0
    %v1033 = vmax.f32 %v1017, 0.0
    %v1034 = vpack.c.bf16 %v1019, %v1018
    %v1035 = vpack.c.bf16 %v1021, %v1020
    %v1036 = vpack.c.bf16 %v1023, %v1022
    %v1037 = vpack.c.bf16 %v1025, %v1024
    %v1038 = vpack.c.bf16 %v1027, %v1026
    %v1039 = vpack.c.bf16 %v1029, %v1028
    %v1040 = vpack.c.bf16 %v1031, %v1030
    %v1041 = vpack.c.bf16 %v1033, %v1032
    %v1050 = vunpack.c.l.b16 %v1034
    %v1051 = vunpack.c.h.b16 %v1034
    %v1052 = vunpack.c.l.b16 %v1035
    %v1053 = vunpack.c.h.b16 %v1035
    %v1054 = vunpack.c.l.b16 %v1036
    %v1055 = vunpack.c.h.b16 %v1036
    %v1056 = vunpack.c.l.b16 %v1037
    %v1057 = vunpack.c.h.b16 %v1037
    %v1058 = vunpack.c.l.b16 %v1038
    %v1059 = vunpack.c.h.b16 %v1038
    %v1060 = vunpack.c.l.b16 %v1039
    %v1061 = vunpack.c.h.b16 %v1039
    %v1062 = vunpack.c.l.b16 %v1040
    %v1063 = vunpack.c.h.b16 %v1040
    %v1064 = vunpack.c.l.b16 %v1041
    %v1065 = vunpack.c.h.b16 %v1041
    %v1066 = vpack.c.b16 %v1050, %v1050
    %v1067 = vpack.c.b16 %v1051, %v1051
    %v1068 = vpack.c.b16 %v1052, %v1052
    %v1069 = vpack.c.b16 %v1053, %v1053
    %v1070 = vpack.c.b16 %v1054, %v1054
    %v1071 = vpack.c.b16 %v1055, %v1055
    %v1072 = vpack.c.b16 %v1056, %v1056
    %v1073 = vpack.c.b16 %v1057, %v1057
    %v1074 = vpack.c.b16 %v1058, %v1058
    %v1075 = vpack.c.b16 %v1059, %v1059
    %v1076 = vpack.c.b16 %v1060, %v1060
    %v1077 = vpack.c.b16 %v1061, %v1061
    %v1078 = vpack.c.b16 %v1062, %v1062
    %v1079 = vpack.c.b16 %v1063, %v1063
    %v1080 = vpack.c.b16 %v1064, %v1064
    %v1081 = vpack.c.b16 %v1065, %v1065
    %1098 = vst [vmem:[%s4] sm:$0xf] %v1066
    %1099 = vst [vmem:[%s4 + $0x4] sm:$0xf] %v1067
    %1100 = vst [vmem:[%s4 + $0x8] sm:$0xf] %v1068
    %1101 = vst [vmem:[%s4 + $0xc] sm:$0xf] %v1069
    %1102 = vst [vmem:[%s4 + $0x10] sm:$0xf] %v1070
    %1103 = vst [vmem:[%s4 + $0x14] sm:$0xf] %v1071
    %1104 = vst [vmem:[%s4 + $0x18] sm:$0xf] %v1072
    %1105 = vst [vmem:[%s4 + $0x1c] sm:$0xf] %v1073
    %1106 = vst [vmem:[%s4 + $0x20] sm:$0xf] %v1074
    %1107 = vst [vmem:[%s4 + $0x24] sm:$0xf] %v1075
    %1108 = vst [vmem:[%s4 + $0x28] sm:$0xf] %v1076
    %1109 = vst [vmem:[%s4 + $0x2c] sm:$0xf] %v1077
    %1110 = vst [vmem:[%s4 + $0x30] sm:$0xf] %v1078
    %1111 = vst [vmem:[%s4 + $0x34] sm:$0xf] %v1079
    %1112 = vst [vmem:[%s4 + $0x38] sm:$0xf] %v1080
    %1113 = vst [vmem:[%s4 + $0x3c] sm:$0xf] %v1081
  $region25: #{resnet_forward.13} parent=0 // pred_fallthru
    _
  // Predicated region
  $region26: #{resnet_forward.13} parent=0 // pred_check
    _
  $region27: #{resnet_forward.13} parent=0 // pred_check_branch
    %1115 = sbr.rel (0) target = $region29
  $region28: #{resnet_forward.13} parent=0 // pred_region
    _
  $region29: #{resnet_forward.13} parent=0 // pred_fallthru
    _
  // Predicated region
  $region30: #{resnet_forward.13} parent=0 // pred_check
    _
  $region31: #{resnet_forward.13} parent=0 // pred_check_branch
    %1117 = sbr.rel (0) target = $region33
  $region32: #{resnet_forward.13} parent=0 // pred_region
    _
  $region33: #{resnet_forward.13} parent=0 // pred_fallthru
    _

// kernel: resnet_forward.15
$region0: #{resnet_forward.15}
  #allocation0 [shape = 'u32[]', space=smem, size = 0x4, offset = 0x4, fixed_abs, tag = 'smem constant byte address 0x4 - core index']
  #allocation1 [shape = 'u32[144,128]{1,0:T(1,128)}', space=vmem, size = 0x12000, scoped, tag = 'internal scratch']
  #allocation2 [shape = 'f32[2,256]{1,0:T(2,128)}', space=vmem, size = 0x800, scoped, tag = 'scratch operand']
  %s0 = inlined_call_operand.vmem [shape: bf16[2,64,256], index: 0, kind: input, shape index: {}]
  %s1 = inlined_call_operand.vmem [shape: f32[256,10], index: 1, kind: input, shape index: {}]
  %s2 = inlined_call_operand.vmem [shape: f32[1,10], index: 2, kind: input, shape index: {}]
  %s3 = inlined_call_operand.vmem [shape: f32[1,10], index: 3, kind: input, shape index: {}]
  %s4 = inlined_call_operand.hbm [shape: f32[2,10], index: 4, kind: output, shape index: {}]
  %s5 = sld [smem:[#allocation0]]
  $region34: #{resnet_forward.15} parent=0
    _
  %s7 = ssub.s32 1, %s5
  %s8 = scalar_select 0, %s7, %s5
  $region1: #{resnet_forward.15} parent=0
    #allocation3 [shape = 'u8[1024]{0}', space=vmem, size = 0x400, scoped, tag = 'output window, operand 0, single buffered']
    #allocation4 [shape = 's32[1]{0}', space=sflag, size = 0x4, scoped, tag = 'scoped memory for resnet_forward.15']
    %9 = vsyncpa [#allocation4], 0
    // Predicated region
    $region2: #{resnet_forward.15} parent=1 // pred_check
      _
    $region3: #{resnet_forward.15} parent=1 // pred_check_branch
      %11 = sbr.rel (0) target = $region5
    $region4: #{resnet_forward.15} parent=1 // pred_region
      _
    $region5: #{resnet_forward.15} parent=1 // pred_fallthru
      _
    // Predicated region
    $region6: #{resnet_forward.15} parent=1 // pred_check
      _
    $region7: #{resnet_forward.15} parent=1 // pred_check_branch
      %13 = sbr.rel (0) target = $region9
    $region8: #{resnet_forward.15} parent=1 // pred_region
      _
    $region9: #{resnet_forward.15} parent=1 // pred_fallthru
      _
    // Predicated region
    $region10: #{resnet_forward.15} parent=1 // pred_check
      _
    $region11: #{resnet_forward.15} parent=1 // pred_check_branch
      %15 = sbr.rel (0) target = $region13
    $region12: #{resnet_forward.15} parent=1 // pred_region
      _
    $region13: #{resnet_forward.15} parent=1 // pred_fallthru
      _
    // Predicated region
    $region14: #{resnet_forward.15} parent=1 // pred_check
      _
    $region15: #{resnet_forward.15} parent=1 // pred_check_branch
      %17 = sbr.rel (0) target = $region17
    $region16: #{resnet_forward.15} parent=1 // pred_region
      _
    $region17: #{resnet_forward.15} parent=1 // pred_fallthru
      _
    %p18 = scmp.eq.s32.totalorder 0, 0
    // Predicated region
    $region18: #{resnet_forward.15} parent=1 // pred_check
      %p19 = pneg %p18
    $region19: #{resnet_forward.15} parent=1 // pred_check_branch
      %21 = sbr.rel (%p19) target = $region21
    $region20: #{resnet_forward.15} parent=1 // pred_region
      %22 = vst [vmem:[#allocation2] sm:$0xf] 0.0
    $region21: #{resnet_forward.15} parent=1 // pred_fallthru
      _
    %v23 = vld [vmem:[#allocation2] sm:$0xf]
    %v24 = vld [vmem:[%s0] sm:$0xff]
    %v25 = vld [vmem:[%s0 + $0x8] sm:$0xff]
    %v26 = vld [vmem:[%s0 + $0x10] sm:$0xff]
    %v27 = vld [vmem:[%s0 + $0x18] sm:$0xff]
    %v28 = vld [vmem:[%s0 + $0x20] sm:$0xff]
    %v29 = vld [vmem:[%s0 + $0x28] sm:$0xff]
    %v30 = vld [vmem:[%s0 + $0x30] sm:$0xff]
    %v31 = vld [vmem:[%s0 + $0x38] sm:$0xff]
    %v32 = vld [vmem:[%s0 + $0x40] sm:$0xff]
    %v33 = vld [vmem:[%s0 + $0x48] sm:$0xff]
    %v34 = vld [vmem:[%s0 + $0x50] sm:$0xff]
    %v35 = vld [vmem:[%s0 + $0x58] sm:$0xff]
    %v36 = vld [vmem:[%s0 + $0x60] sm:$0xff]
    %v37 = vld [vmem:[%s0 + $0x68] sm:$0xff]
    %v38 = vld [vmem:[%s0 + $0x70] sm:$0xff]
    %v39 = vld [vmem:[%s0 + $0x78] sm:$0xff]
    %v40 = vunpack.c.l.bf16 %v24
    %v41 = vunpack.c.h.bf16 %v24
    %v42 = vunpack.c.l.bf16 %v25
    %v43 = vunpack.c.h.bf16 %v25
    %v44 = vunpack.c.l.bf16 %v26
    %v45 = vunpack.c.h.bf16 %v26
    %v46 = vunpack.c.l.bf16 %v27
    %v47 = vunpack.c.h.bf16 %v27
    %v48 = vunpack.c.l.bf16 %v28
    %v49 = vunpack.c.h.bf16 %v28
    %v50 = vunpack.c.l.bf16 %v29
    %v51 = vunpack.c.h.bf16 %v29
    %v52 = vunpack.c.l.bf16 %v30
    %v53 = vunpack.c.h.bf16 %v30
    %v54 = vunpack.c.l.bf16 %v31
    %v55 = vunpack.c.h.bf16 %v31
    %v56 = vunpack.c.l.bf16 %v32
    %v57 = vunpack.c.h.bf16 %v32
    %v58 = vunpack.c.l.bf16 %v33
    %v59 = vunpack.c.h.bf16 %v33
    %v60 = vunpack.c.l.bf16 %v34
    %v61 = vunpack.c.h.bf16 %v34
    %v62 = vunpack.c.l.bf16 %v35
    %v63 = vunpack.c.h.bf16 %v35
    %v64 = vunpack.c.l.bf16 %v36
    %v65 = vunpack.c.h.bf16 %v36
    %v66 = vunpack.c.l.bf16 %v37
    %v67 = vunpack.c.h.bf16 %v37
    %v68 = vunpack.c.l.bf16 %v38
    %v69 = vunpack.c.h.bf16 %v38
    %v70 = vunpack.c.l.bf16 %v39
    %v71 = vunpack.c.h.bf16 %v39
    %v72 = vadd.f32 %v40, %v42
    %v73 = vadd.f32 %v72, %v44
    %v74 = vadd.f32 %v73, %v46
    %v75 = vadd.f32 %v74, %v48
    %v76 = vadd.f32 %v75, %v50
    %v77 = vadd.f32 %v76, %v52
    %v78 = vadd.f32 %v77, %v54
    %v79 = vrot.slane %v78, 4
    %v80 = vadd.f32 %v78, %v79
    %v81 = vrot.slane %v80, 2
    %v82 = vadd.f32 %v80, %v81
    %v83 = vrot.slane %v82, 1
    %v84 = vadd.f32 %v82, %v83
    %v85 = vadd.f32 %v41, %v43
    %v86 = vadd.f32 %v85, %v45
    %v87 = vadd.f32 %v86, %v47
    %v88 = vadd.f32 %v87, %v49
    %v89 = vadd.f32 %v88, %v51
    %v90 = vadd.f32 %v89, %v53
    %v91 = vadd.f32 %v90, %v55
    %v92 = vrot.slane %v91, 4
    %v93 = vadd.f32 %v91, %v92
    %v94 = vrot.slane %v93, 2
    %v95 = vadd.f32 %v93, %v94
    %v96 = vrot.slane %v95, 1
    %v97 = vadd.f32 %v95, %v96
    %v98 = vadd.f32 %v56, %v58
    %v99 = vadd.f32 %v98, %v60
    %v100 = vadd.f32 %v99, %v62
    %v101 = vadd.f32 %v100, %v64
    %v102 = vadd.f32 %v101, %v66
    %v103 = vadd.f32 %v102, %v68
    %v104 = vadd.f32 %v103, %v70
    %v105 = vrot.slane %v104, 4
    %v106 = vadd.f32 %v104, %v105
    %v107 = vrot.slane %v106, 2
    %v108 = vadd.f32 %v106, %v107
    %v109 = vrot.slane %v108, 1
    %v110 = vadd.f32 %v108, %v109
    %v111 = vadd.f32 %v57, %v59
    %v112 = vadd.f32 %v111, %v61
    %v113 = vadd.f32 %v112, %v63
    %v114 = vadd.f32 %v113, %v65
    %v115 = vadd.f32 %v114, %v67
    %v116 = vadd.f32 %v115, %v69
    %v117 = vadd.f32 %v116, %v71
    %v118 = vrot.slane %v117, 4
    %v119 = vadd.f32 %v117, %v118
    %v120 = vrot.slane %v119, 2
    %v121 = vadd.f32 %v119, %v120
    %v122 = vrot.slane %v121, 1
    %v123 = vadd.f32 %v121, %v122
    %v128 = vcombine.low %v84, %v97
    %v130 = vunpack.c.l.s4 1983009808
    %v131 = vunpack.c.0.s8 %v130
    %v132 = vlaneseq
    %v133 = vshrl.u32 %v132, 7
    %v134 = vsub.s32 %v131, %v133
    %v135 = vrot.slane %v128, %v134
    %v136 = vcombine.low %v110, %v123
    %v138 = vunpack.c.l.s4 1983009808
    %v139 = vunpack.c.0.s8 %v138
    %v140 = vlaneseq
    %v141 = vshrl.u32 %v140, 7
    %v142 = vsub.s32 %v139, %v141
    %v143 = vrot.slane %v136, %v142
    %vm144 = vcmask 1044484
    %v145 = vsel %vm144, %v135, %v135
    %vm146 = vcmask 1046534
    %v147 = vsel %vm146, %v135, %v145
    %v148 = vrot.slane %v143, 7
    %vm149 = vcmask 1041409
    %v150 = vsel %vm149, %v148, %v147
    %vm151 = vcmask 1043459
    %v152 = vsel %vm151, %v148, %v150
    %vm153 = vcmask 1045509
    %v154 = vsel %vm153, %v148, %v152
    %vm155 = vcmask 1047559
    %v156 = vsel %vm155, %v148, %v154
    %v158 = vadd.f32 %v23, %v156
    %159 = vst [vmem:[#allocation2] sm:$0xf] %v158
    // Predicated region
    $region22: #{resnet_forward.15} parent=1 // pred_check
      %p160 = pneg %p18
    $region23: #{resnet_forward.15} parent=1 // pred_check_branch
      %162 = sbr.rel (%p160) target = $region25
    $region24: #{resnet_forward.15} parent=1 // pred_region
      %v163 = vld [vmem:[#allocation2] sm:$0xf]
      %v164 = vmul.f32 %v163, 0.015625
      %v165 = vld [vmem:[%s1] sm:$0xff]
      %v166 = vld [vmem:[%s1 + $0x8] sm:$0xff]
      %v167 = vld [vmem:[%s1 + $0x10] sm:$0xff]
      %v168 = vld [vmem:[%s1 + $0x18] sm:$0xff]
      %v169 = vld [vmem:[%s1 + $0x20] sm:$0xff]
      %v170 = vld [vmem:[%s1 + $0x28] sm:$0xff]
      %v171 = vld [vmem:[%s1 + $0x30] sm:$0xff]
      %v172 = vld [vmem:[%s1 + $0x38] sm:$0xff]
      %v173 = vld [vmem:[%s1 + $0x40] sm:$0xff]
      %v174 = vld [vmem:[%s1 + $0x48] sm:$0xff]
      %v175 = vld [vmem:[%s1 + $0x50] sm:$0xff]
      %v176 = vld [vmem:[%s1 + $0x58] sm:$0xff]
      %v177 = vld [vmem:[%s1 + $0x60] sm:$0xff]
      %v178 = vld [vmem:[%s1 + $0x68] sm:$0xff]
      %v179 = vld [vmem:[%s1 + $0x70] sm:$0xff]
      %v180 = vld [vmem:[%s1 + $0x78] sm:$0xff]
      %v181 = vld [vmem:[%s1 + $0x80] sm:$0xff]
      %v182 = vld [vmem:[%s1 + $0x88] sm:$0xff]
      %v183 = vld [vmem:[%s1 + $0x90] sm:$0xff]
      %v184 = vld [vmem:[%s1 + $0x98] sm:$0xff]
      %v185 = vld [vmem:[%s1 + $0xa0] sm:$0xff]
      %v186 = vld [vmem:[%s1 + $0xa8] sm:$0xff]
      %v187 = vld [vmem:[%s1 + $0xb0] sm:$0xff]
      %v188 = vld [vmem:[%s1 + $0xb8] sm:$0xff]
      %v189 = vld [vmem:[%s1 + $0xc0] sm:$0xff]
      %v190 = vld [vmem:[%s1 + $0xc8] sm:$0xff]
      %v191 = vld [vmem:[%s1 + $0xd0] sm:$0xff]
      %v192 = vld [vmem:[%s1 + $0xd8] sm:$0xff]
      %v193 = vld [vmem:[%s1 + $0xe0] sm:$0xff]
      %v194 = vld [vmem:[%s1 + $0xe8] sm:$0xff]
      %v195 = vld [vmem:[%s1 + $0xf0] sm:$0xff]
      %v196 = vld [vmem:[%s1 + $0xf8] sm:$0xff]
      %v199 = vunpack.c.l.s4 1983009808
      %v200 = vunpack.c.0.s8 %v199
      %v201 = vlaneseq
      %v202 = vshrl.u32 %v201, 7
      %v203 = vsub.s32 %v200, %v202
      %v204 = vrot.slane %v164, %v203
      %v205 = vcombine.high %v204, %v204
      %208 = vmatprep.subr.mxu0 0.0
      %209 = vmatpush1.msra.mxu0 %v180
      %210 = vmatprep.subr.mxu0 0.0
      %211 = vmatpush1.msra.mxu0 %v179
      %212 = vmatprep.subr.mxu0 0.0
      %213 = vmatpush1.msra.mxu0 %v178
      %214 = vmatprep.subr.mxu0 0.0
      %215 = vmatpush1.msra.mxu0 %v177
      %216 = vmatprep.subr.mxu0 0.0
      %217 = vmatpush1.msra.mxu0 %v176
      %218 = vmatprep.subr.mxu0 0.0
      %219 = vmatpush1.msra.mxu0 %v175
      %220 = vmatprep.subr.mxu0 0.0
      %221 = vmatpush1.msra.mxu0 %v174
      %222 = vmatprep.subr.mxu0 0.0
      %223 = vmatpush1.msra.mxu0 %v173
      %224 = vmatprep.subr.mxu0 0.0
      %225 = vmatpush1.msra.mxu0 %v172
      %226 = vmatprep.subr.mxu0 0.0
      %227 = vmatpush1.msra.mxu0 %v171
      %228 = vmatprep.subr.mxu0 0.0
      %229 = vmatpush1.msra.mxu0 %v170
      %230 = vmatprep.subr.mxu0 0.0
      %231 = vmatpush1.msra.mxu0 %v169
      %232 = vmatprep.subr.mxu0 0.0
      %233 = vmatpush1.msra.mxu0 %v168
      %234 = vmatprep.subr.mxu0 0.0
      %235 = vmatpush1.msra.mxu0 %v167
      %236 = vmatprep.subr.mxu0 0.0
      %237 = vmatpush1.msra.mxu0 %v166
      %238 = vmatprep.subr.mxu0 0.0
      %239 = vmatpush1.msra.mxu0 %v165
      %240 = vmatprep.subr.mxu0 0.0
      %241 = vmatpush2.msra.mxu0 %v196
      %242 = vmatprep.subr.mxu0 0.0
      %243 = vmatpush2.msra.mxu0 %v195
      %244 = vmatprep.subr.mxu0 0.0
      %245 = vmatpush2.msra.mxu0 %v194
      %246 = vmatprep.subr.mxu0 0.0
      %247 = vmatpush2.msra.mxu0 %v193
      %248 = vmatprep.subr.mxu0 0.0
      %249 = vmatpush2.msra.mxu0 %v192
      %250 = vmatprep.subr.mxu0 0.0
      %251 = vmatpush2.msra.mxu0 %v191
      %252 = vmatprep.subr.mxu0 0.0
      %253 = vmatpush2.msra.mxu0 %v190
      %254 = vmatprep.subr.mxu0 0.0
      %255 = vmatpush2.msra.mxu0 %v189
      %256 = vmatprep.subr.mxu0 0.0
      %257 = vmatpush2.msra.mxu0 %v188
      %258 = vmatprep.subr.mxu0 0.0
      %259 = vmatpush2.msra.mxu0 %v187
      %260 = vmatprep.subr.mxu0 0.0
      %261 = vmatpush2.msra.mxu0 %v186
      %262 = vmatprep.subr.mxu0 0.0
      %263 = vmatpush2.msra.mxu0 %v185
      %264 = vmatprep.subr.mxu0 0.0
      %265 = vmatpush2.msra.mxu0 %v184
      %266 = vmatprep.subr.mxu0 0.0
      %267 = vmatpush2.msra.mxu0 %v183
      %268 = vmatprep.subr.mxu0 0.0
      %269 = vmatpush2.msra.mxu0 %v182
      %270 = vmatprep.subr.mxu0 0.0
      %271 = vmatpush2.msra.mxu0 %v181
      %272 = vmatprep.mubr.f32.mxu0 %v205
      %273 = vmatmul.mubr.f32.gmra.mxu0 %v204
      %v274 = vpop.f32.mrf.mxu0
      %v275 = vadd.f32 0.0, %v274
      %v276 = vpop.f32.mrf.mxu0
      %277 = vdwg.mxu0
      %v278 = vld [vmem:[%s2] sm:$0x1]
      %v280 = vlaneseq
      %v281 = vshrl.u32 %v280, 7
      %v282 = vsub.s32 0, %v281
      %v283 = vrot.slane %v278, %v282
      %v285 = vmul.f32 %v275, %v283
      %v286 = vld [vmem:[%s3] sm:$0x1]
      %v288 = vlaneseq
      %v289 = vshrl.u32 %v288, 7
      %v290 = vsub.s32 0, %v289
      %v291 = vrot.slane %v286, %v290
      %v293 = vadd.f32 %v285, %v291
      %vm294 = vcmask 74752
      %v295 = vsel %vm294, %v293, -inf
      %296 = vmax.xlane.f32.xlu0 %v295
      %v297 = vpop.xlane.xlu0 %296
      %v298 = vsub.f32 %v293, %v297
      %v299 = vmul.f32 %v298, 1.442695
      %v300 = vpow.pop %v299
      %v301 = vsel %vm294, %v300, 0.0
      %302 = vadd.xlane.f32.xlu0 %v301
      %v303 = vpop.xlane.xlu0 %302
      %v304 = vrcp.pop %v303
      %v305 = vmul.f32 %v300, %v304
      %306 = vst.msk [vmem:[#allocation3] sm:$0x3] %vm294, %v305
    $region25: #{resnet_forward.15} parent=1 // pred_fallthru
      _
    // Predicated region
    $region26: #{resnet_forward.15} parent=1 // pred_check
      _
    $region27: #{resnet_forward.15} parent=1 // pred_check_branch
      %308 = sbr.rel (0) target = $region29
    $region28: #{resnet_forward.15} parent=1 // pred_region
      %s310 = ssub.s32 32, 32
      %311 = vsyncadd [#allocation4], %s310
      %s313 = sshll.u32 [#allocation3], 4
      %s314 = int_to_ptr.vmem [resolvable:$true] %s313
      %316 = dma.vmem_to_hbm [thread:$0]  %s314, 32, %s4, [#allocation4]
    $region29: #{resnet_forward.15} parent=1 // pred_fallthru
      _
    // Predicated region
    $region30: #{resnet_forward.15} parent=1 // pred_check
      _
    $region31: #{resnet_forward.15} parent=1 // pred_check_branch
      %318 = sbr.rel (0) target = $region33
    $region32: #{resnet_forward.15} parent=1 // pred_region
      %319 = dma.done [#allocation4], 32
    $region33: #{resnet_forward.15} parent=1 // pred_fallthru
      _
    %320 = vsyncpa [#allocation4], 1

// kernel: resnet_forward.14
$region0: #{resnet_forward.14}
  #allocation0 [shape = 'u32[]', space=smem, size = 0x4, offset = 0x4, fixed_abs, tag = 'smem constant byte address 0x4 - core index']
  #allocation1 [shape = 'u32[144,128]{1,0:T(1,128)}', space=vmem, size = 0x12000, scoped, tag = 'internal scratch']
  #allocation2 [shape = 'f32[128,256]{1,0:T(8,128)}', space=vmem, size = 0x20000, scoped, tag = 'scratch operand']
  %s0 = inlined_call_operand.vmem [shape: bf16[128,256], index: 0, kind: input, shape index: {}]
  %s1 = inlined_call_operand.vmem [shape: bf16[256,256], index: 1, kind: input, shape index: {}]
  %s2 = inlined_call_operand.vmem [shape: f32[1,256], index: 2, kind: input, shape index: {}]
  %s3 = inlined_call_operand.vmem [shape: f32[1,256], index: 3, kind: input, shape index: {}]
  %s4 = inlined_call_operand.vmem [shape: bf16[128,256], index: 4, kind: output, shape index: {}]
  %s5 = sld [smem:[#allocation0]]
  $region34: #{resnet_forward.14} parent=0
    _
  %s7 = ssub.s32 1, %s5
  %s8 = scalar_select 0, %s7, %s5
  // Predicated region
  $region2: #{resnet_forward.14} parent=0 // pred_check
    _
  $region3: #{resnet_forward.14} parent=0 // pred_check_branch
    %10 = sbr.rel (0) target = $region5
  $region4: #{resnet_forward.14} parent=0 // pred_region
    _
  $region5: #{resnet_forward.14} parent=0 // pred_fallthru
    _
  // Predicated region
  $region6: #{resnet_forward.14} parent=0 // pred_check
    _
  $region7: #{resnet_forward.14} parent=0 // pred_check_branch
    %12 = sbr.rel (0) target = $region9
  $region8: #{resnet_forward.14} parent=0 // pred_region
    _
  $region9: #{resnet_forward.14} parent=0 // pred_fallthru
    _
  // Predicated region
  $region10: #{resnet_forward.14} parent=0 // pred_check
    _
  $region11: #{resnet_forward.14} parent=0 // pred_check_branch
    %14 = sbr.rel (0) target = $region13
  $region12: #{resnet_forward.14} parent=0 // pred_region
    _
  $region13: #{resnet_forward.14} parent=0 // pred_fallthru
    _
  // Predicated region
  $region14: #{resnet_forward.14} parent=0 // pred_check
    _
  $region15: #{resnet_forward.14} parent=0 // pred_check_branch
    %16 = sbr.rel (0) target = $region17
  $region16: #{resnet_forward.14} parent=0 // pred_region
    _
  $region17: #{resnet_forward.14} parent=0 // pred_fallthru
    _
  %p17 = scmp.eq.s32.totalorder 0, 0
  // Predicated region
  $region18: #{resnet_forward.14} parent=0 // pred_check
    %p18 = pneg %p17
  $region19: #{resnet_forward.14} parent=0 // pred_check_branch
    %20 = sbr.rel (%p18) target = $region21
  $region20: #{resnet_forward.14} parent=0 // pred_region
    %21 = vst [vmem:[#allocation2] sm:$0xff] 0.0
    %22 = vst [vmem:[#allocation2 + $0x8] sm:$0xff] 0.0
    %23 = vst [vmem:[#allocation2 + $0x10] sm:$0xff] 0.0
    %24 = vst [vmem:[#allocation2 + $0x18] sm:$0xff] 0.0
    %25 = vst [vmem:[#allocation2 + $0x20] sm:$0xff] 0.0
    %26 = vst [vmem:[#allocation2 + $0x28] sm:$0xff] 0.0
    %27 = vst [vmem:[#allocation2 + $0x30] sm:$0xff] 0.0
    %28 = vst [vmem:[#allocation2 + $0x38] sm:$0xff] 0.0
    %29 = vst [vmem:[#allocation2 + $0x40] sm:$0xff] 0.0
    %30 = vst [vmem:[#allocation2 + $0x48] sm:$0xff] 0.0
    %31 = vst [vmem:[#allocation2 + $0x50] sm:$0xff] 0.0
    %32 = vst [vmem:[#allocation2 + $0x58] sm:$0xff] 0.0
    %33 = vst [vmem:[#allocation2 + $0x60] sm:$0xff] 0.0
    %34 = vst [vmem:[#allocation2 + $0x68] sm:$0xff] 0.0
    %35 = vst [vmem:[#allocation2 + $0x70] sm:$0xff] 0.0
    %36 = vst [vmem:[#allocation2 + $0x78] sm:$0xff] 0.0
    %37 = vst [vmem:[#allocation2 + $0x80] sm:$0xff] 0.0
    %38 = vst [vmem:[#allocation2 + $0x88] sm:$0xff] 0.0
    %39 = vst [vmem:[#allocation2 + $0x90] sm:$0xff] 0.0
    %40 = vst [vmem:[#allocation2 + $0x98] sm:$0xff] 0.0
    %41 = vst [vmem:[#allocation2 + $0xa0] sm:$0xff] 0.0
    %42 = vst [vmem:[#allocation2 + $0xa8] sm:$0xff] 0.0
    %43 = vst [vmem:[#allocation2 + $0xb0] sm:$0xff] 0.0
    %44 = vst [vmem:[#allocation2 + $0xb8] sm:$0xff] 0.0
    %45 = vst [vmem:[#allocation2 + $0xc0] sm:$0xff] 0.0
    %46 = vst [vmem:[#allocation2 + $0xc8] sm:$0xff] 0.0
    %47 = vst [vmem:[#allocation2 + $0xd0] sm:$0xff] 0.0
    %48 = vst [vmem:[#allocation2 + $0xd8] sm:$0xff] 0.0
    %49 = vst [vmem:[#allocation2 + $0xe0] sm:$0xff] 0.0
    %50 = vst [vmem:[#allocation2 + $0xe8] sm:$0xff] 0.0
    %51 = vst [vmem:[#allocation2 + $0xf0] sm:$0xff] 0.0
    %52 = vst [vmem:[#allocation2 + $0xf8] sm:$0xff] 0.0
  $region21: #{resnet_forward.14} parent=0 // pred_fallthru
    _
  %v53 = vld [vmem:[#allocation2] sm:$0xff]
  %v54 = vld [vmem:[#allocation2 + $0x8] sm:$0xff]
  %v55 = vld [vmem:[#allocation2 + $0x10] sm:$0xff]
  %v56 = vld [vmem:[#allocation2 + $0x18] sm:$0xff]
  %v57 = vld [vmem:[#allocation2 + $0x20] sm:$0xff]
  %v58 = vld [vmem:[#allocation2 + $0x28] sm:$0xff]
  %v59 = vld [vmem:[#allocation2 + $0x30] sm:$0xff]
  %v60 = vld [vmem:[#allocation2 + $0x38] sm:$0xff]
  %v61 = vld [vmem:[#allocation2 + $0x40] sm:$0xff]
  %v62 = vld [vmem:[#allocation2 + $0x48] sm:$0xff]
  %v63 = vld [vmem:[#allocation2 + $0x50] sm:$0xff]
  %v64 = vld [vmem:[#allocation2 + $0x58] sm:$0xff]
  %v65 = vld [vmem:[#allocation2 + $0x60] sm:$0xff]
  %v66 = vld [vmem:[#allocation2 + $0x68] sm:$0xff]
  %v67 = vld [vmem:[#allocation2 + $0x70] sm:$0xff]
  %v68 = vld [vmem:[#allocation2 + $0x78] sm:$0xff]
  %v69 = vld [vmem:[#allocation2 + $0x80] sm:$0xff]
  %v70 = vld [vmem:[#allocation2 + $0x88] sm:$0xff]
  %v71 = vld [vmem:[#allocation2 + $0x90] sm:$0xff]
  %v72 = vld [vmem:[#allocation2 + $0x98] sm:$0xff]
  %v73 = vld [vmem:[#allocation2 + $0xa0] sm:$0xff]
  %v74 = vld [vmem:[#allocation2 + $0xa8] sm:$0xff]
  %v75 = vld [vmem:[#allocation2 + $0xb0] sm:$0xff]
  %v76 = vld [vmem:[#allocation2 + $0xb8] sm:$0xff]
  %v77 = vld [vmem:[#allocation2 + $0xc0] sm:$0xff]
  %v78 = vld [vmem:[#allocation2 + $0xc8] sm:$0xff]
  %v79 = vld [vmem:[#allocation2 + $0xd0] sm:$0xff]
  %v80 = vld [vmem:[#allocation2 + $0xd8] sm:$0xff]
  %v81 = vld [vmem:[#allocation2 + $0xe0] sm:$0xff]
  %v82 = vld [vmem:[#allocation2 + $0xe8] sm:$0xff]
  %v83 = vld [vmem:[#allocation2 + $0xf0] sm:$0xff]
  %v84 = vld [vmem:[#allocation2 + $0xf8] sm:$0xff]
  %v85 = vld [vmem:[%s0] sm:$0xff]
  %v86 = vld [vmem:[%s0 + $0x8] sm:$0xff]
  %v87 = vld [vmem:[%s0 + $0x10] sm:$0xff]
  %v88 = vld [vmem:[%s0 + $0x18] sm:$0xff]
  %v89 = vld [vmem:[%s0 + $0x20] sm:$0xff]
  %v90 = vld [vmem:[%s0 + $0x28] sm:$0xff]
  %v91 = vld [vmem:[%s0 + $0x30] sm:$0xff]
  %v92 = vld [vmem:[%s0 + $0x38] sm:$0xff]
  %v93 = vld [vmem:[%s0 + $0x40] sm:$0xff]
  %v94 = vld [vmem:[%s0 + $0x48] sm:$0xff]
  %v95 = vld [vmem:[%s0 + $0x50] sm:$0xff]
  %v96 = vld [vmem:[%s0 + $0x58] sm:$0xff]
  %v97 = vld [vmem:[%s0 + $0x60] sm:$0xff]
  %v98 = vld [vmem:[%s0 + $0x68] sm:$0xff]
  %v99 = vld [vmem:[%s0 + $0x70] sm:$0xff]
  %v100 = vld [vmem:[%s0 + $0x78] sm:$0xff]
  %v101 = vld [vmem:[%s1] sm:$0xff]
  %v102 = vld [vmem:[%s1 + $0x8] sm:$0xff]
  %v103 = vld [vmem:[%s1 + $0x10] sm:$0xff]
  %v104 = vld [vmem:[%s1 + $0x18] sm:$0xff]
  %v105 = vld [vmem:[%s1 + $0x20] sm:$0xff]
  %v106 = vld [vmem:[%s1 + $0x28] sm:$0xff]
  %v107 = vld [vmem:[%s1 + $0x30] sm:$0xff]
  %v108 = vld [vmem:[%s1 + $0x38] sm:$0xff]
  %v109 = vld [vmem:[%s1 + $0x40] sm:$0xff]
  %v110 = vld [vmem:[%s1 + $0x48] sm:$0xff]
  %v111 = vld [vmem:[%s1 + $0x50] sm:$0xff]
  %v112 = vld [vmem:[%s1 + $0x58] sm:$0xff]
  %v113 = vld [vmem:[%s1 + $0x60] sm:$0xff]
  %v114 = vld [vmem:[%s1 + $0x68] sm:$0xff]
  %v115 = vld [vmem:[%s1 + $0x70] sm:$0xff]
  %v116 = vld [vmem:[%s1 + $0x78] sm:$0xff]
  %v117 = vld [vmem:[%s1 + $0x80] sm:$0xff]
  %v118 = vld [vmem:[%s1 + $0x88] sm:$0xff]
  %v119 = vld [vmem:[%s1 + $0x90] sm:$0xff]
  %v120 = vld [vmem:[%s1 + $0x98] sm:$0xff]
  %v121 = vld [vmem:[%s1 + $0xa0] sm:$0xff]
  %v122 = vld [vmem:[%s1 + $0xa8] sm:$0xff]
  %v123 = vld [vmem:[%s1 + $0xb0] sm:$0xff]
  %v124 = vld [vmem:[%s1 + $0xb8] sm:$0xff]
  %v125 = vld [vmem:[%s1 + $0xc0] sm:$0xff]
  %v126 = vld [vmem:[%s1 + $0xc8] sm:$0xff]
  %v127 = vld [vmem:[%s1 + $0xd0] sm:$0xff]
  %v128 = vld [vmem:[%s1 + $0xd8] sm:$0xff]
  %v129 = vld [vmem:[%s1 + $0xe0] sm:$0xff]
  %v130 = vld [vmem:[%s1 + $0xe8] sm:$0xff]
  %v131 = vld [vmem:[%s1 + $0xf0] sm:$0xff]
  %v132 = vld [vmem:[%s1 + $0xf8] sm:$0xff]
  %v149 = vunpack.c.l.b16 %v85
  %v150 = vunpack.c.h.b16 %v85
  %v151 = vunpack.c.l.b16 %v86
  %v152 = vunpack.c.h.b16 %v86
  %v153 = vunpack.c.l.b16 %v87
  %v154 = vunpack.c.h.b16 %v87
  %v155 = vunpack.c.l.b16 %v88
  %v156 = vunpack.c.h.b16 %v88
  %v157 = vunpack.c.l.b16 %v89
  %v158 = vunpack.c.h.b16 %v89
  %v159 = vunpack.c.l.b16 %v90
  %v160 = vunpack.c.h.b16 %v90
  %v161 = vunpack.c.l.b16 %v91
  %v162 = vunpack.c.h.b16 %v91
  %v163 = vunpack.c.l.b16 %v92
  %v164 = vunpack.c.h.b16 %v92
  %v165 = vunpack.c.l.b16 %v93
  %v166 = vunpack.c.h.b16 %v93
  %v167 = vunpack.c.l.b16 %v94
  %v168 = vunpack.c.h.b16 %v94
  %v169 = vunpack.c.l.b16 %v95
  %v170 = vunpack.c.h.b16 %v95
  %v171 = vunpack.c.l.b16 %v96
  %v172 = vunpack.c.h.b16 %v96
  %v173 = vunpack.c.l.b16 %v97
  %v174 = vunpack.c.h.b16 %v97
  %v175 = vunpack.c.l.b16 %v98
  %v176 = vunpack.c.h.b16 %v98
  %v177 = vunpack.c.l.b16 %v99
  %v178 = vunpack.c.h.b16 %v99
  %v179 = vunpack.c.l.b16 %v100
  %v180 = vunpack.c.h.b16 %v100
  %v181 = vpack.c.b16 %v151, %v149
  %v182 = vpack.c.b16 %v152, %v150
  %v183 = vpack.c.b16 %v155, %v153
  %v184 = vpack.c.b16 %v156, %v154
  %v185 = vpack.c.b16 %v159, %v157
  %v186 = vpack.c.b16 %v160, %v158
  %v187 = vpack.c.b16 %v163, %v161
  %v188 = vpack.c.b16 %v164, %v162
  %v189 = vpack.c.b16 %v167, %v165
  %v190 = vpack.c.b16 %v168, %v166
  %v191 = vpack.c.b16 %v171, %v169
  %v192 = vpack.c.b16 %v172, %v170
  %v193 = vpack.c.b16 %v175, %v173
  %v194 = vpack.c.b16 %v176, %v174
  %v195 = vpack.c.b16 %v179, %v177
  %v196 = vpack.c.b16 %v180, %v178
  %v245 = vunpack.c.l.b16 %v101
  %v246 = vunpack.c.h.b16 %v101
  %v247 = vunpack.c.l.b16 %v102
  %v248 = vunpack.c.h.b16 %v102
  %v249 = vunpack.c.l.b16 %v103
  %v250 = vunpack.c.h.b16 %v103
  %v251 = vunpack.c.l.b16 %v104
  %v252 = vunpack.c.h.b16 %v104
  %v253 = vunpack.c.l.b16 %v105
  %v254 = vunpack.c.h.b16 %v105
  %v255 = vunpack.c.l.b16 %v106
  %v256 = vunpack.c.h.b16 %v106
  %v257 = vunpack.c.l.b16 %v107
  %v258 = vunpack.c.h.b16 %v107
  %v259 = vunpack.c.l.b16 %v108
  %v260 = vunpack.c.h.b16 %v108
  %v261 = vunpack.c.l.b16 %v109
  %v262 = vunpack.c.h.b16 %v109
  %v263 = vunpack.c.l.b16 %v110
  %v264 = vunpack.c.h.b16 %v110
  %v265 = vunpack.c.l.b16 %v111
  %v266 = vunpack.c.h.b16 %v111
  %v267 = vunpack.c.l.b16 %v112
  %v268 = vunpack.c.h.b16 %v112
  %v269 = vunpack.c.l.b16 %v113
  %v270 = vunpack.c.h.b16 %v113
  %v271 = vunpack.c.l.b16 %v114
  %v272 = vunpack.c.h.b16 %v114
  %v273 = vunpack.c.l.b16 %v115
  %v274 = vunpack.c.h.b16 %v115
  %v275 = vunpack.c.l.b16 %v116
  %v276 = vunpack.c.h.b16 %v116
  %v277 = vunpack.c.l.b16 %v117
  %v278 = vunpack.c.h.b16 %v117
  %v279 = vunpack.c.l.b16 %v118
  %v280 = vunpack.c.h.b16 %v118
  %v281 = vunpack.c.l.b16 %v119
  %v282 = vunpack.c.h.b16 %v119
  %v283 = vunpack.c.l.b16 %v120
  %v284 = vunpack.c.h.b16 %v120
  %v285 = vunpack.c.l.b16 %v121
  %v286 = vunpack.c.h.b16 %v121
  %v287 = vunpack.c.l.b16 %v122
  %v288 = vunpack.c.h.b16 %v122
  %v289 = vunpack.c.l.b16 %v123
  %v290 = vunpack.c.h.b16 %v123
  %v291 = vunpack.c.l.b16 %v124
  %v292 = vunpack.c.h.b16 %v124
  %v293 = vunpack.c.l.b16 %v125
  %v294 = vunpack.c.h.b16 %v125
  %v295 = vunpack.c.l.b16 %v126
  %v296 = vunpack.c.h.b16 %v126
  %v297 = vunpack.c.l.b16 %v127
  %v298 = vunpack.c.h.b16 %v127
  %v299 = vunpack.c.l.b16 %v128
  %v300 = vunpack.c.h.b16 %v128
  %v301 = vunpack.c.l.b16 %v129
  %v302 = vunpack.c.h.b16 %v129
  %v303 = vunpack.c.l.b16 %v130
  %v304 = vunpack.c.h.b16 %v130
  %v305 = vunpack.c.l.b16 %v131
  %v306 = vunpack.c.h.b16 %v131
  %v307 = vunpack.c.l.b16 %v132
  %v308 = vunpack.c.h.b16 %v132
  %v309 = vpack.c.b16 %v247, %v245
  %v310 = vpack.c.b16 %v248, %v246
  %v311 = vpack.c.b16 %v251, %v249
  %v312 = vpack.c.b16 %v252, %v250
  %v313 = vpack.c.b16 %v255, %v253
  %v314 = vpack.c.b16 %v256, %v254
  %v315 = vpack.c.b16 %v259, %v257
  %v316 = vpack.c.b16 %v260, %v258
  %v317 = vpack.c.b16 %v263, %v261
  %v318 = vpack.c.b16 %v264, %v262
  %v319 = vpack.c.b16 %v267, %v265
  %v320 = vpack.c.b16 %v268, %v266
  %v321 = vpack.c.b16 %v271, %v269
  %v322 = vpack.c.b16 %v272, %v270
  %v323 = vpack.c.b16 %v275, %v273
  %v324 = vpack.c.b16 %v276, %v274
  %v325 = vpack.c.b16 %v279, %v277
  %v326 = vpack.c.b16 %v280, %v278
  %v327 = vpack.c.b16 %v283, %v281
  %v328 = vpack.c.b16 %v284, %v282
  %v329 = vpack.c.b16 %v287, %v285
  %v330 = vpack.c.b16 %v288, %v286
  %v331 = vpack.c.b16 %v291, %v289
  %v332 = vpack.c.b16 %v292, %v290
  %v333 = vpack.c.b16 %v295, %v293
  %v334 = vpack.c.b16 %v296, %v294
  %v335 = vpack.c.b16 %v299, %v297
  %v336 = vpack.c.b16 %v300, %v298
  %v337 = vpack.c.b16 %v303, %v301
  %v338 = vpack.c.b16 %v304, %v302
  %v339 = vpack.c.b16 %v307, %v305
  %v340 = vpack.c.b16 %v308, %v306
  %373 = vmatprep.subr.bf16.mxu0 %v324
  %374 = vmatpush1.bf16.msra.mxu0 %v323
  %375 = vmatprep.subr.bf16.mxu0 %v322
  %376 = vmatpush1.bf16.msra.mxu0 %v321
  %377 = vmatprep.subr.bf16.mxu0 %v320
  %378 = vmatpush1.bf16.msra.mxu0 %v319
  %379 = vmatprep.subr.bf16.mxu0 %v318
  %380 = vmatpush1.bf16.msra.mxu0 %v317
  %381 = vmatprep.subr.bf16.mxu0 %v316
  %382 = vmatpush1.bf16.msra.mxu0 %v315
  %383 = vmatprep.subr.bf16.mxu0 %v314
  %384 = vmatpush1.bf16.msra.mxu0 %v313
  %385 = vmatprep.subr.bf16.mxu0 %v312
  %386 = vmatpush1.bf16.msra.mxu0 %v311
  %387 = vmatprep.subr.bf16.mxu0 %v310
  %388 = vmatpush1.bf16.msra.mxu0 %v309
  %389 = vmatprep.subr.bf16.mxu0 %v340
  %390 = vmatpush2.bf16.msra.mxu0 %v339
  %391 = vmatprep.subr.bf16.mxu0 %v338
  %392 = vmatpush2.bf16.msra.mxu0 %v337
  %393 = vmatprep.subr.bf16.mxu0 %v336
  %394 = vmatpush2.bf16.msra.mxu0 %v335
  %395 = vmatprep.subr.bf16.mxu0 %v334
  %396 = vmatpush2.bf16.msra.mxu0 %v333
  %397 = vmatprep.subr.bf16.mxu0 %v332
  %398 = vmatpush2.bf16.msra.mxu0 %v331
  %399 = vmatprep.subr.bf16.mxu0 %v330
  %400 = vmatpush2.bf16.msra.mxu0 %v329
  %401 = vmatprep.subr.bf16.mxu0 %v328
  %402 = vmatpush2.bf16.msra.mxu0 %v327
  %403 = vmatprep.subr.bf16.mxu0 %v326
  %404 = vmatpush2.bf16.msra.mxu0 %v325
  %405 = vmatprep.mubr.bf16.mxu0 %v182
  %406 = vmatmul.mubr.bf16.gmra.mxu0 %v181
  %v407 = vpop.f32.mrf.mxu0
  %v408 = vadd.f32 0.0, %v407
  %v409 = vpop.f32.mrf.mxu0
  %v410 = vadd.f32 0.0, %v409
  %v411 = vpop.f32.mrf.mxu0
  %v412 = vadd.f32 0.0, %v411
  %v413 = vpop.f32.mrf.mxu0
  %v414 = vadd.f32 0.0, %v413
  %415 = vmatprep.mubr.bf16.mxu0 %v184
  %416 = vmatmul.mubr.bf16.gmra.mxu0 %v183
  %v417 = vpop.f32.mrf.mxu0
  %v418 = vadd.f32 0.0, %v417
  %v419 = vpop.f32.mrf.mxu0
  %v420 = vadd.f32 0.0, %v419
  %v421 = vpop.f32.mrf.mxu0
  %v422 = vadd.f32 0.0, %v421
  %v423 = vpop.f32.mrf.mxu0
  %v424 = vadd.f32 0.0, %v423
  %425 = vmatprep.mubr.bf16.mxu0 %v186
  %426 = vmatmul.mubr.bf16.gmra.mxu0 %v185
  %v427 = vpop.f32.mrf.mxu0
  %v428 = vadd.f32 0.0, %v427
  %v429 = vpop.f32.mrf.mxu0
  %v430 = vadd.f32 0.0, %v429
  %v431 = vpop.f32.mrf.mxu0
  %v432 = vadd.f32 0.0, %v431
  %v433 = vpop.f32.mrf.mxu0
  %v434 = vadd.f32 0.0, %v433
  %435 = vmatprep.mubr.bf16.mxu0 %v188
  %436 = vmatmul.mubr.bf16.gmra.mxu0 %v187
  %v437 = vpop.f32.mrf.mxu0
  %v438 = vadd.f32 0.0, %v437
  %v439 = vpop.f32.mrf.mxu0
  %v440 = vadd.f32 0.0, %v439
  %v441 = vpop.f32.mrf.mxu0
  %v442 = vadd.f32 0.0, %v441
  %v443 = vpop.f32.mrf.mxu0
  %v444 = vadd.f32 0.0, %v443
  %445 = vmatprep.mubr.bf16.mxu0 %v190
  %446 = vmatmul.mubr.bf16.gmra.mxu0 %v189
  %v447 = vpop.f32.mrf.mxu0
  %v448 = vadd.f32 0.0, %v447
  %v449 = vpop.f32.mrf.mxu0
  %v450 = vadd.f32 0.0, %v449
  %v451 = vpop.f32.mrf.mxu0
  %v452 = vadd.f32 0.0, %v451
  %v453 = vpop.f32.mrf.mxu0
  %v454 = vadd.f32 0.0, %v453
  %455 = vmatprep.mubr.bf16.mxu0 %v192
  %456 = vmatmul.mubr.bf16.gmra.mxu0 %v191
  %v457 = vpop.f32.mrf.mxu0
  %v458 = vadd.f32 0.0, %v457
  %v459 = vpop.f32.mrf.mxu0
  %v460 = vadd.f32 0.0, %v459
  %v461 = vpop.f32.mrf.mxu0
  %v462 = vadd.f32 0.0, %v461
  %v463 = vpop.f32.mrf.mxu0
  %v464 = vadd.f32 0.0, %v463
  %465 = vmatprep.mubr.bf16.mxu0 %v194
  %466 = vmatmul.mubr.bf16.gmra.mxu0 %v193
  %v467 = vpop.f32.mrf.mxu0
  %v468 = vadd.f32 0.0, %v467
  %v469 = vpop.f32.mrf.mxu0
  %v470 = vadd.f32 0.0, %v469
  %v471 = vpop.f32.mrf.mxu0
  %v472 = vadd.f32 0.0, %v471
  %v473 = vpop.f32.mrf.mxu0
  %v474 = vadd.f32 0.0, %v473
  %475 = vmatprep.mubr.bf16.mxu0 %v196
  %476 = vmatmul.mubr.bf16.gmra.mxu0 %v195
  %v477 = vpop.f32.mrf.mxu0
  %v478 = vadd.f32 0.0, %v477
  %v479 = vpop.f32.mrf.mxu0
  %v480 = vadd.f32 0.0, %v479
  %v481 = vpop.f32.mrf.mxu0
  %v482 = vadd.f32 0.0, %v481
  %v483 = vpop.f32.mrf.mxu0
  %v484 = vadd.f32 0.0, %v483
  %485 = vdwg.mxu0
  %v486 = vadd.f32 %v53, %v408
  %v487 = vadd.f32 %v54, %v410
  %v488 = vadd.f32 %v55, %v412
  %v489 = vadd.f32 %v56, %v414
  %v490 = vadd.f32 %v57, %v418
  %v491 = vadd.f32 %v58, %v420
  %v492 = vadd.f32 %v59, %v422
  %v493 = vadd.f32 %v60, %v424
  %v494 = vadd.f32 %v61, %v428
  %v495 = vadd.f32 %v62, %v430
  %v496 = vadd.f32 %v63, %v432
  %v497 = vadd.f32 %v64, %v434
  %v498 = vadd.f32 %v65, %v438
  %v499 = vadd.f32 %v66, %v440
  %v500 = vadd.f32 %v67, %v442
  %v501 = vadd.f32 %v68, %v444
  %v502 = vadd.f32 %v69, %v448
  %v503 = vadd.f32 %v70, %v450
  %v504 = vadd.f32 %v71, %v452
  %v505 = vadd.f32 %v72, %v454
  %v506 = vadd.f32 %v73, %v458
  %v507 = vadd.f32 %v74, %v460
  %v508 = vadd.f32 %v75, %v462
  %v509 = vadd.f32 %v76, %v464
  %v510 = vadd.f32 %v77, %v468
  %v511 = vadd.f32 %v78, %v470
  %v512 = vadd.f32 %v79, %v472
  %v513 = vadd.f32 %v80, %v474
  %v514 = vadd.f32 %v81, %v478
  %v515 = vadd.f32 %v82, %v480
  %v516 = vadd.f32 %v83, %v482
  %v517 = vadd.f32 %v84, %v484
  %518 = vst [vmem:[#allocation2] sm:$0xff] %v486
  %519 = vst [vmem:[#allocation2 + $0x8] sm:$0xff] %v487
  %520 = vst [vmem:[#allocation2 + $0x10] sm:$0xff] %v488
  %521 = vst [vmem:[#allocation2 + $0x18] sm:$0xff] %v489
  %522 = vst [vmem:[#allocation2 + $0x20] sm:$0xff] %v490
  %523 = vst [vmem:[#allocation2 + $0x28] sm:$0xff] %v491
  %524 = vst [vmem:[#allocation2 + $0x30] sm:$0xff] %v492
  %525 = vst [vmem:[#allocation2 + $0x38] sm:$0xff] %v493
  %526 = vst [vmem:[#allocation2 + $0x40] sm:$0xff] %v494
  %527 = vst [vmem:[#allocation2 + $0x48] sm:$0xff] %v495
  %528 = vst [vmem:[#allocation2 + $0x50] sm:$0xff] %v496
  %529 = vst [vmem:[#allocation2 + $0x58] sm:$0xff] %v497
  %530 = vst [vmem:[#allocation2 + $0x60] sm:$0xff] %v498
  %531 = vst [vmem:[#allocation2 + $0x68] sm:$0xff] %v499
  %532 = vst [vmem:[#allocation2 + $0x70] sm:$0xff] %v500
  %533 = vst [vmem:[#allocation2 + $0x78] sm:$0xff] %v501
  %534 = vst [vmem:[#allocation2 + $0x80] sm:$0xff] %v502
  %535 = vst [vmem:[#allocation2 + $0x88] sm:$0xff] %v503
  %536 = vst [vmem:[#allocation2 + $0x90] sm:$0xff] %v504
  %537 = vst [vmem:[#allocation2 + $0x98] sm:$0xff] %v505
  %538 = vst [vmem:[#allocation2 + $0xa0] sm:$0xff] %v506
  %539 = vst [vmem:[#allocation2 + $0xa8] sm:$0xff] %v507
  %540 = vst [vmem:[#allocation2 + $0xb0] sm:$0xff] %v508
  %541 = vst [vmem:[#allocation2 + $0xb8] sm:$0xff] %v509
  %542 = vst [vmem:[#allocation2 + $0xc0] sm:$0xff] %v510
  %543 = vst [vmem:[#allocation2 + $0xc8] sm:$0xff] %v511
  %544 = vst [vmem:[#allocation2 + $0xd0] sm:$0xff] %v512
  %545 = vst [vmem:[#allocation2 + $0xd8] sm:$0xff] %v513
  %546 = vst [vmem:[#allocation2 + $0xe0] sm:$0xff] %v514
  %547 = vst [vmem:[#allocation2 + $0xe8] sm:$0xff] %v515
  %548 = vst [vmem:[#allocation2 + $0xf0] sm:$0xff] %v516
  %549 = vst [vmem:[#allocation2 + $0xf8] sm:$0xff] %v517
  // Predicated region
  $region22: #{resnet_forward.14} parent=0 // pred_check
    %p550 = pneg %p17
  $region23: #{resnet_forward.14} parent=0 // pred_check_branch
    %552 = sbr.rel (%p550) target = $region25
  $region24: #{resnet_forward.14} parent=0 // pred_region
    %v553 = vld [vmem:[#allocation2] sm:$0xff]
    %v554 = vld [vmem:[#allocation2 + $0x8] sm:$0xff]
    %v555 = vld [vmem:[#allocation2 + $0x10] sm:$0xff]
    %v556 = vld [vmem:[#allocation2 + $0x18] sm:$0xff]
    %v557 = vld [vmem:[#allocation2 + $0x20] sm:$0xff]
    %v558 = vld [vmem:[#allocation2 + $0x28] sm:$0xff]
    %v559 = vld [vmem:[#allocation2 + $0x30] sm:$0xff]
    %v560 = vld [vmem:[#allocation2 + $0x38] sm:$0xff]
    %v561 = vld [vmem:[#allocation2 + $0x40] sm:$0xff]
    %v562 = vld [vmem:[#allocation2 + $0x48] sm:$0xff]
    %v563 = vld [vmem:[#allocation2 + $0x50] sm:$0xff]
    %v564 = vld [vmem:[#allocation2 + $0x58] sm:$0xff]
    %v565 = vld [vmem:[#allocation2 + $0x60] sm:$0xff]
    %v566 = vld [vmem:[#allocation2 + $0x68] sm:$0xff]
    %v567 = vld [vmem:[#allocation2 + $0x70] sm:$0xff]
    %v568 = vld [vmem:[#allocation2 + $0x78] sm:$0xff]
    %v569 = vld [vmem:[#allocation2 + $0x80] sm:$0xff]
    %v570 = vld [vmem:[#allocation2 + $0x88] sm:$0xff]
    %v571 = vld [vmem:[#allocation2 + $0x90] sm:$0xff]
    %v572 = vld [vmem:[#allocation2 + $0x98] sm:$0xff]
    %v573 = vld [vmem:[#allocation2 + $0xa0] sm:$0xff]
    %v574 = vld [vmem:[#allocation2 + $0xa8] sm:$0xff]
    %v575 = vld [vmem:[#allocation2 + $0xb0] sm:$0xff]
    %v576 = vld [vmem:[#allocation2 + $0xb8] sm:$0xff]
    %v577 = vld [vmem:[#allocation2 + $0xc0] sm:$0xff]
    %v578 = vld [vmem:[#allocation2 + $0xc8] sm:$0xff]
    %v579 = vld [vmem:[#allocation2 + $0xd0] sm:$0xff]
    %v580 = vld [vmem:[#allocation2 + $0xd8] sm:$0xff]
    %v581 = vld [vmem:[#allocation2 + $0xe0] sm:$0xff]
    %v582 = vld [vmem:[#allocation2 + $0xe8] sm:$0xff]
    %v583 = vld [vmem:[#allocation2 + $0xf0] sm:$0xff]
    %v584 = vld [vmem:[#allocation2 + $0xf8] sm:$0xff]
    %v585 = vld [vmem:[%s2] sm:$0x3]
    %v587 = vlaneseq
    %v588 = vshrl.u32 %v587, 7
    %v589 = vsub.s32 0, %v588
    %v590 = vrot.slane %v585, %v589
    %v591 = vlaneseq
    %v592 = vshrl.u32 %v591, 7
    %v593 = vsub.s32 1, %v592
    %v594 = vrot.slane %v585, %v593
    %v597 = vmul.f32 %v553, %v590
    %v598 = vmul.f32 %v554, %v594
    %v599 = vmul.f32 %v555, %v590
    %v600 = vmul.f32 %v556, %v594
    %v601 = vmul.f32 %v557, %v590
    %v602 = vmul.f32 %v558, %v594
    %v603 = vmul.f32 %v559, %v590
    %v604 = vmul.f32 %v560, %v594
    %v605 = vmul.f32 %v561, %v590
    %v606 = vmul.f32 %v562, %v594
    %v607 = vmul.f32 %v563, %v590
    %v608 = vmul.f32 %v564, %v594
    %v609 = vmul.f32 %v565, %v590
    %v610 = vmul.f32 %v566, %v594
    %v611 = vmul.f32 %v567, %v590
    %v612 = vmul.f32 %v568, %v594
    %v613 = vmul.f32 %v569, %v590
    %v614 = vmul.f32 %v570, %v594
    %v615 = vmul.f32 %v571, %v590
    %v616 = vmul.f32 %v572, %v594
    %v617 = vmul.f32 %v573, %v590
    %v618 = vmul.f32 %v574, %v594
    %v619 = vmul.f32 %v575, %v590
    %v620 = vmul.f32 %v576, %v594
    %v621 = vmul.f32 %v577, %v590
    %v622 = vmul.f32 %v578, %v594
    %v623 = vmul.f32 %v579, %v590
    %v624 = vmul.f32 %v580, %v594
    %v625 = vmul.f32 %v581, %v590
    %v626 = vmul.f32 %v582, %v594
    %v627 = vmul.f32 %v583, %v590
    %v628 = vmul.f32 %v584, %v594
    %v629 = vld [vmem:[%s3] sm:$0x3]
    %v631 = vlaneseq
    %v632 = vshrl.u32 %v631, 7
    %v633 = vsub.s32 0, %v632
    %v634 = vrot.slane %v629, %v633
    %v635 = vlaneseq
    %v636 = vshrl.u32 %v635, 7
    %v637 = vsub.s32 1, %v636
    %v638 = vrot.slane %v629, %v637
    %v641 = vadd.f32 %v597, %v634
    %v642 = vadd.f32 %v598, %v638
    %v643 = vadd.f32 %v599, %v634
    %v644 = vadd.f32 %v600, %v638
    %v645 = vadd.f32 %v601, %v634
    %v646 = vadd.f32 %v602, %v638
    %v647 = vadd.f32 %v603, %v634
    %v648 = vadd.f32 %v604, %v638
    %v649 = vadd.f32 %v605, %v634
    %v650 = vadd.f32 %v606, %v638
    %v651 = vadd.f32 %v607, %v634
    %v652 = vadd.f32 %v608, %v638
    %v653 = vadd.f32 %v609, %v634
    %v654 = vadd.f32 %v610, %v638
    %v655 = vadd.f32 %v611, %v634
    %v656 = vadd.f32 %v612, %v638
    %v657 = vadd.f32 %v613, %v634
    %v658 = vadd.f32 %v614, %v638
    %v659 = vadd.f32 %v615, %v634
    %v660 = vadd.f32 %v616, %v638
    %v661 = vadd.f32 %v617, %v634
    %v662 = vadd.f32 %v618, %v638
    %v663 = vadd.f32 %v619, %v634
    %v664 = vadd.f32 %v620, %v638
    %v665 = vadd.f32 %v621, %v634
    %v666 = vadd.f32 %v622, %v638
    %v667 = vadd.f32 %v623, %v634
    %v668 = vadd.f32 %v624, %v638
    %v669 = vadd.f32 %v625, %v634
    %v670 = vadd.f32 %v626, %v638
    %v671 = vadd.f32 %v627, %v634
    %v672 = vadd.f32 %v628, %v638
    %v673 = vmax.f32 %v641, 0.0
    %v674 = vmax.f32 %v642, 0.0
    %v675 = vmax.f32 %v643, 0.0
    %v676 = vmax.f32 %v644, 0.0
    %v677 = vmax.f32 %v645, 0.0
    %v678 = vmax.f32 %v646, 0.0
    %v679 = vmax.f32 %v647, 0.0
    %v680 = vmax.f32 %v648, 0.0
    %v681 = vmax.f32 %v649, 0.0
    %v682 = vmax.f32 %v650, 0.0
    %v683 = vmax.f32 %v651, 0.0
    %v684 = vmax.f32 %v652, 0.0
    %v685 = vmax.f32 %v653, 0.0
    %v686 = vmax.f32 %v654, 0.0
    %v687 = vmax.f32 %v655, 0.0
    %v688 = vmax.f32 %v656, 0.0
    %v689 = vmax.f32 %v657, 0.0
    %v690 = vmax.f32 %v658, 0.0
    %v691 = vmax.f32 %v659, 0.0
    %v692 = vmax.f32 %v660, 0.0
    %v693 = vmax.f32 %v661, 0.0
    %v694 = vmax.f32 %v662, 0.0
    %v695 = vmax.f32 %v663, 0.0
    %v696 = vmax.f32 %v664, 0.0
    %v697 = vmax.f32 %v665, 0.0
    %v698 = vmax.f32 %v666, 0.0
    %v699 = vmax.f32 %v667, 0.0
    %v700 = vmax.f32 %v668, 0.0
    %v701 = vmax.f32 %v669, 0.0
    %v702 = vmax.f32 %v670, 0.0
    %v703 = vmax.f32 %v671, 0.0
    %v704 = vmax.f32 %v672, 0.0
    %v705 = vpack.c.bf16 %v675, %v673
    %v706 = vpack.c.bf16 %v676, %v674
    %v707 = vpack.c.bf16 %v679, %v677
    %v708 = vpack.c.bf16 %v680, %v678
    %v709 = vpack.c.bf16 %v683, %v681
    %v710 = vpack.c.bf16 %v684, %v682
    %v711 = vpack.c.bf16 %v687, %v685
    %v712 = vpack.c.bf16 %v688, %v686
    %v713 = vpack.c.bf16 %v691, %v689
    %v714 = vpack.c.bf16 %v692, %v690
    %v715 = vpack.c.bf16 %v695, %v693
    %v716 = vpack.c.bf16 %v696, %v694
    %v717 = vpack.c.bf16 %v699, %v697
    %v718 = vpack.c.bf16 %v700, %v698
    %v719 = vpack.c.bf16 %v703, %v701
    %v720 = vpack.c.bf16 %v704, %v702
    %v737 = vunpack.c.l.b16 %v705
    %v738 = vunpack.c.l.b16 %v706
    %v739 = vunpack.c.h.b16 %v705
    %v740 = vunpack.c.h.b16 %v706
    %v741 = vunpack.c.l.b16 %v707
    %v742 = vunpack.c.l.b16 %v708
    %v743 = vunpack.c.h.b16 %v707
    %v744 = vunpack.c.h.b16 %v708
    %v745 = vunpack.c.l.b16 %v709
    %v746 = vunpack.c.l.b16 %v710
    %v747 = vunpack.c.h.b16 %v709
    %v748 = vunpack.c.h.b16 %v710
    %v749 = vunpack.c.l.b16 %v711
    %v750 = vunpack.c.l.b16 %v712
    %v751 = vunpack.c.h.b16 %v711
    %v752 = vunpack.c.h.b16 %v712
    %v753 = vunpack.c.l.b16 %v713
    %v754 = vunpack.c.l.b16 %v714
    %v755 = vunpack.c.h.b16 %v713
    %v756 = vunpack.c.h.b16 %v714
    %v757 = vunpack.c.l.b16 %v715
    %v758 = vunpack.c.l.b16 %v716
    %v759 = vunpack.c.h.b16 %v715
    %v760 = vunpack.c.h.b16 %v716
    %v761 = vunpack.c.l.b16 %v717
    %v762 = vunpack.c.l.b16 %v718
    %v763 = vunpack.c.h.b16 %v717
    %v764 = vunpack.c.h.b16 %v718
    %v765 = vunpack.c.l.b16 %v719
    %v766 = vunpack.c.l.b16 %v720
    %v767 = vunpack.c.h.b16 %v719
    %v768 = vunpack.c.h.b16 %v720
    %v769 = vpack.c.b16 %v738, %v737
    %v770 = vpack.c.b16 %v740, %v739
    %v771 = vpack.c.b16 %v742, %v741
    %v772 = vpack.c.b16 %v744, %v743
    %v773 = vpack.c.b16 %v746, %v745
    %v774 = vpack.c.b16 %v748, %v747
    %v775 = vpack.c.b16 %v750, %v749
    %v776 = vpack.c.b16 %v752, %v751
    %v777 = vpack.c.b16 %v754, %v753
    %v778 = vpack.c.b16 %v756, %v755
    %v779 = vpack.c.b16 %v758, %v757
    %v780 = vpack.c.b16 %v760, %v759
    %v781 = vpack.c.b16 %v762, %v761
    %v782 = vpack.c.b16 %v764, %v763
    %v783 = vpack.c.b16 %v766, %v765
    %v784 = vpack.c.b16 %v768, %v767
    %801 = vst [vmem:[%s4] sm:$0xff] %v769
    %802 = vst [vmem:[%s4 + $0x8] sm:$0xff] %v770
    %803 = vst [vmem:[%s4 + $0x10] sm:$0xff] %v771
    %804 = vst [vmem:[%s4 + $0x18] sm:$0xff] %v772
    %805 = vst [vmem:[%s4 + $0x20] sm:$0xff] %v773
    %806 = vst [vmem:[%s4 + $0x28] sm:$0xff] %v774
    %807 = vst [vmem:[%s4 + $0x30] sm:$0xff] %v775
    %808 = vst [vmem:[%s4 + $0x38] sm:$0xff] %v776
    %809 = vst [vmem:[%s4 + $0x40] sm:$0xff] %v777
    %810 = vst [vmem:[%s4 + $0x48] sm:$0xff] %v778
    %811 = vst [vmem:[%s4 + $0x50] sm:$0xff] %v779
    %812 = vst [vmem:[%s4 + $0x58] sm:$0xff] %v780
    %813 = vst [vmem:[%s4 + $0x60] sm:$0xff] %v781
    %814 = vst [vmem:[%s4 + $0x68] sm:$0xff] %v782
    %815 = vst [vmem:[%s4 + $0x70] sm:$0xff] %v783
    %816 = vst [vmem:[%s4 + $0x78] sm:$0xff] %v784
  $region25: #{resnet_forward.14} parent=0 // pred_fallthru
    _
  // Predicated region
  $region26: #{resnet_forward.14} parent=0 // pred_check
    _
  $region27: #{resnet_forward.14} parent=0 // pred_check_branch
    %818 = sbr.rel (0) target = $region29
  $region28: #{resnet_forward.14} parent=0 // pred_region
    _
  $region29: #{resnet_forward.14} parent=0 // pred_fallthru
    _
  // Predicated region
  $region30: #{resnet_forward.14} parent=0 // pred_check
    _
  $region31: #{resnet_forward.14} parent=0 // pred_check_branch
    %820 = sbr.rel (0) target = $region33
  $region32: #{resnet_forward.14} parent=0 // pred_region
    _
  $region33: #{resnet_forward.14} parent=0 // pred_fallthru
    _

</llo_original>
